<compile_context>
chip_gen: v7x
topology: tpu7x:2x2x1
jax: 0.10.0
libtpu: 0.0.40
codegen_flags: <defaults>
</compile_context>

<pallas_src>
import functools
import math

import jax
import jax.numpy as jnp
from jax import lax
from jax.experimental import pallas as pl
from jax.experimental.pallas import tpu as pltpu


def clip_layer_kernel(x_ref, g1_ref, b1_ref,
                      win_ref, bin_ref, wout_ref, bout_ref,
                      g2_ref, b2_ref,
                      w1_ref, bl1_ref, w2_ref, bl2_ref,
                      o_ref, *, n_head: int):
    x = x_ref[0].astype(jnp.float32)                    # (S, D), f32 for LN/residual
    S, D = x.shape
    dh = D // n_head
    eps = 1e-5

    def layernorm(v, g, b):
        mu = jnp.mean(v, axis=-1, keepdims=True)
        var = jnp.mean((v - mu) ** 2, axis=-1, keepdims=True)
        return (v - mu) * lax.rsqrt(var + eps) * g.astype(jnp.float32) + b.astype(jnp.float32)

    def mm(a_f32, w_ref):                               # bf16 MXU matmul, f32 accumulate
        return jnp.dot(a_f32.astype(jnp.bfloat16), w_ref[...],
                       preferred_element_type=jnp.float32)

    # ---- LayerNorm 1 + causal self-attention + residual ----
    res1 = x
    h = layernorm(x, g1_ref[...], b1_ref[...])

    qkv = mm(h, win_ref) + bin_ref[...].astype(jnp.float32)          # (S, 3D)

    scale = jnp.float32(1.0 / math.sqrt(dh))
    q = (qkv[:, :D] * scale).astype(jnp.bfloat16)        # fold 1/sqrt(dh) into q
    k = qkv[:, D:2 * D].astype(jnp.bfloat16)
    v = qkv[:, 2 * D:].astype(jnp.bfloat16)

    # Loop-invariant causal mask (computed once, reused by every head).
    row = lax.broadcasted_iota(jnp.int32, (S, S), 0)
    col = lax.broadcasted_iota(jnp.int32, (S, S), 1)
    causal = col > row
    neg_inf = jnp.float32(-jnp.inf)

    # dh (64 at real CLIP sizes) fills only part of the MXU contraction, so a
    # static head loop + lane-dense concat beats masked sub-lane writes.
    head_outs = []
    for hd in range(n_head):                             # static unroll over heads
        sl = slice(hd * dh, (hd + 1) * dh)
        scores = lax.dot_general(q[:, sl], k[:, sl],
                                 (((1,), (1,)), ((), ())),
                                 preferred_element_type=jnp.float32)  # (S, S)
        scores = jnp.where(causal, neg_inf, scores)
        scores = scores - jnp.max(scores, axis=-1, keepdims=True)
        p = jnp.exp(scores)
        p = p * pl.reciprocal(jnp.sum(p, axis=-1, keepdims=True), approx=True)
        head_outs.append(jnp.dot(p.astype(jnp.bfloat16), v[:, sl],
                                 preferred_element_type=jnp.float32))
    attn_out = jnp.concatenate(head_outs, axis=-1)       # single lane-dense (S, D)

    attn = mm(attn_out, wout_ref) + bout_ref[...].astype(jnp.float32)
    x1 = attn + res1

    # ---- LayerNorm 2 + MLP with quick-GELU + residual ----
    res2 = x1
    h2 = layernorm(x1, g2_ref[...], b2_ref[...])
    h3 = mm(h2, w1_ref) + bl1_ref[...].astype(jnp.float32)
    h3 = h3 * jax.nn.sigmoid(1.702 * h3)                 # quick-GELU (EUP)
    h4 = mm(h3, w2_ref) + bl2_ref[...].astype(jnp.float32)

    o_ref[0] = (h4 + res2).astype(o_ref.dtype)


_PARAM_ORDER = ("g1", "b1", "win", "bin", "wout", "bout",
                "g2", "b2", "w1", "bl1", "w2", "bl2")
_MATMUL_WEIGHTS = {"win", "wout", "w1", "w2"}


def _build_call(x, plist, n_head, single_buffer_weights):
    B, S, D = x.shape
    kernel = functools.partial(clip_layer_kernel, n_head=n_head)

    wkw = {"pipeline_mode": pl.Buffered(1)} if single_buffer_weights else {}
    in_specs = [pl.BlockSpec((1, S, D), lambda b: (b, 0, 0))]
    # Weights: constant index_map -> resident across the grid; single-buffered
    # (when supported) so they are not pointlessly double-buffered in VMEM.
    in_specs += [pl.BlockSpec(p.shape, lambda b: (0, 0), **wkw) for p in plist]

    flops = 2 * B * S * (12 * D * D + 2 * S * D)
    transcendentals = B * S * (n_head * S + 4 * D)
    bytes_accessed = (sum(int(p.size) * p.dtype.itemsize for p in plist)
                      + 2 * B * S * D * x.dtype.itemsize)

    return pl.pallas_call(
        kernel,
        out_shape=jax.ShapeDtypeStruct((B, S, D), x.dtype),
        grid=(B,),
        in_specs=in_specs,
        out_specs=pl.BlockSpec((1, S, D), lambda b: (b, 0, 0)),
        compiler_params=pltpu.CompilerParams(
            dimension_semantics=("parallel",),
            vmem_limit_bytes=64 * 1024 * 1024),
        cost_estimate=pl.CostEstimate(flops=flops,
                                      transcendentals=transcendentals,
                                      bytes_accessed=bytes_accessed),
    )


def clip_layer_pallas(x, params, n_head):
    # Matmul weights go to the kernel in bf16 (halves VMEM/HBM traffic, lets
    # the MXU run at its bf16 rate); LN params and biases stay f32.
    plist = [params[k].astype(jnp.bfloat16) if k in _MATMUL_WEIGHTS
             else params[k].astype(jnp.float32)
             for k in _PARAM_ORDER]
    try:
        out = _build_call(x, plist, n_head, single_buffer_weights=True)(x, *plist)
        return jax.block_until_ready(out)
    except Exception:
        # pl.Buffered(1) unsupported on this jax build: fall back to the
        # default (double-buffered) weight pipelining — identical numerics.
        return _build_call(x, plist, n_head, single_buffer_weights=False)(x, *plist)


def ref_clip_layer(x, p, n_head):
    # Pure-JAX (full f32) reference mirroring the PyTorch forward pass exactly.
    def ln(v, g, b):
        mu = v.mean(-1, keepdims=True)
        var = ((v - mu) ** 2).mean(-1, keepdims=True)
        return (v - mu) / jnp.sqrt(var + 1e-5) * g + b

    B, S, D = x.shape
    dh = D // n_head
    res = x
    h = ln(x, p["g1"], p["b1"])
    qkv = h @ p["win"] + p["bin"]
    q, k, v = jnp.split(qkv, 3, axis=-1)
    q = q.reshape(B, S, n_head, dh).transpose(0, 2, 1, 3)
    k = k.reshape(B, S, n_head, dh).transpose(0, 2, 1, 3)
    v = v.reshape(B, S, n_head, dh).transpose(0, 2, 1, 3)
    w = jnp.einsum("bhqd,bhkd->bhqk", q, k)
    mask = jnp.triu(jnp.ones((S, S), bool), 1)
    w = jnp.where(mask, -jnp.inf, w) / math.sqrt(dh)
    w = jax.nn.softmax(w, axis=-1)
    o = jnp.einsum("bhqk,bhkd->bhqd", w, v).transpose(0, 2, 1, 3).reshape(B, S, D)
    o = o @ p["wout"] + p["bout"]
    x = o + res
    res = x
    h = ln(x, p["g2"], p["b2"])
    h = h @ p["w1"] + p["bl1"]
    h = h * jax.nn.sigmoid(1.702 * h)
    h = h @ p["w2"] + p["bl2"]
    return h + res


def init_params(key, n_embd):
    D = n_embd
    ks = jax.random.split(key, 6)
    s = 0.02
    # Linear weights stored pre-transposed: (in_features, out_features).
    return {
        "g1": jnp.ones((1, D), jnp.float32),
        "b1": jnp.zeros((1, D), jnp.float32),
        "win": s * jax.random.normal(ks[0], (D, 3 * D), jnp.float32),
        "bin": s * jax.random.normal(ks[1], (1, 3 * D), jnp.float32),
        "wout": s * jax.random.normal(ks[2], (D, D), jnp.float32),
        "bout": jnp.zeros((1, D), jnp.float32),
        "g2": jnp.ones((1, D), jnp.float32),
        "b2": jnp.zeros((1, D), jnp.float32),
        "w1": s * jax.random.normal(ks[3], (D, 4 * D), jnp.float32),
        "bl1": s * jax.random.normal(ks[4], (1, 4 * D), jnp.float32),
        "w2": s * jax.random.normal(ks[5], (4 * D, D), jnp.float32),
        "bl2": jnp.zeros((1, D), jnp.float32),
    }


if __name__ == "__main__":
    # Small but tile-friendly shapes: D = 128 (one lane tile), S multiple of 8.
    B, S, D, H = 2, 16, 128, 4
    key = jax.random.PRNGKey(0)
    kx, kp = jax.random.split(key)
    x = jax.random.normal(kx, (B, S, D), jnp.float32)
    params = init_params(kp, D)

    out = clip_layer_pallas(x, params, H)
    out = jax.block_until_ready(out)

    ref = ref_clip_layer(x, params, H)
    assert out.shape == (B, S, D)
    err = float(jnp.max(jnp.abs(out - ref)))
    # bf16 matmul inputs + approx reciprocal vs. full-f32 reference.
    assert err < 2e-2, f"mismatch vs reference: max abs err {err}"
    print("KERNEL_OK")
</pallas_src>

<mosaic_0001>
module attributes {stable_mosaic.version = 11 : i64} {
  func.func @clip_layer_kernel(%arg0: i32, %arg1: memref<1x16x128xf32, #tpu.memory_space<vmem>>, %arg2: memref<1x128xf32, #tpu.memory_space<vmem>>, %arg3: memref<1x128xf32, #tpu.memory_space<vmem>>, %arg4: memref<128x384xbf16, #tpu.memory_space<vmem>>, %arg5: memref<1x384xf32, #tpu.memory_space<vmem>>, %arg6: memref<128x128xbf16, #tpu.memory_space<vmem>>, %arg7: memref<1x128xf32, #tpu.memory_space<vmem>>, %arg8: memref<1x128xf32, #tpu.memory_space<vmem>>, %arg9: memref<1x128xf32, #tpu.memory_space<vmem>>, %arg10: memref<128x512xbf16, #tpu.memory_space<vmem>>, %arg11: memref<1x512xf32, #tpu.memory_space<vmem>>, %arg12: memref<512x128xbf16, #tpu.memory_space<vmem>>, %arg13: memref<1x128xf32, #tpu.memory_space<vmem>>, %arg14: memref<1x16x128xf32, #tpu.memory_space<vmem>>) attributes {dimension_semantics = [#tpu.dimension_semantics<parallel>], iteration_bounds = array<i64: 2>, scalar_prefetch = 0 : i64, scratch_operands = 0 : i64, tpu.core_type = #tpu.core_type<tc>, window_params = [{transform_indices = @transform_0, window_bounds = array<i64: 1, 16, 128>}, {pipeline_mode = #tpu.pipeline_mode<synchronous>, transform_indices = @transform_1, window_bounds = array<i64: 1, 128>}, {pipeline_mode = #tpu.pipeline_mode<synchronous>, transform_indices = @transform_2, window_bounds = array<i64: 1, 128>}, {pipeline_mode = #tpu.pipeline_mode<synchronous>, transform_indices = @transform_3, window_bounds = array<i64: 128, 384>}, {pipeline_mode = #tpu.pipeline_mode<synchronous>, transform_indices = @transform_4, window_bounds = array<i64: 1, 384>}, {pipeline_mode = #tpu.pipeline_mode<synchronous>, transform_indices = @transform_5, window_bounds = array<i64: 128, 128>}, {pipeline_mode = #tpu.pipeline_mode<synchronous>, transform_indices = @transform_6, window_bounds = array<i64: 1, 128>}, {pipeline_mode = #tpu.pipeline_mode<synchronous>, transform_indices = @transform_7, window_bounds = array<i64: 1, 128>}, {pipeline_mode = #tpu.pipeline_mode<synchronous>, transform_indices = @transform_8, window_bounds = array<i64: 1, 128>}, {pipeline_mode = #tpu.pipeline_mode<synchronous>, transform_indices = @transform_9, window_bounds = array<i64: 128, 512>}, {pipeline_mode = #tpu.pipeline_mode<synchronous>, transform_indices = @transform_10, window_bounds = array<i64: 1, 512>}, {pipeline_mode = #tpu.pipeline_mode<synchronous>, transform_indices = @transform_11, window_bounds = array<i64: 512, 128>}, {pipeline_mode = #tpu.pipeline_mode<synchronous>, transform_indices = @transform_12, window_bounds = array<i64: 1, 128>}, {transform_indices = @transform_13, window_bounds = array<i64: 1, 16, 128>}]} {
    %c0 = arith.constant 0 : index
    %c0_0 = arith.constant 0 : index
    %c0_1 = arith.constant 0 : index
    %0 = vector.load %arg1[%c0, %c0_0, %c0_1] : memref<1x16x128xf32, #tpu.memory_space<vmem>>, vector<1x16x128xf32>
    %1 = vector.shape_cast %0 : vector<1x16x128xf32> to vector<16x128xf32>
    %c0_2 = arith.constant 0 : index
    %c0_3 = arith.constant 0 : index
    %2 = vector.load %arg2[%c0_2, %c0_3] : memref<1x128xf32, #tpu.memory_space<vmem>>, vector<1x128xf32>
    %c0_4 = arith.constant 0 : index
    %c0_5 = arith.constant 0 : index
    %3 = vector.load %arg3[%c0_4, %c0_5] : memref<1x128xf32, #tpu.memory_space<vmem>>, vector<1x128xf32>
    %cst = arith.constant dense<0.000000e+00> : vector<16xf32>
    %4 = vector.multi_reduction <add>, %1, %cst [1] : vector<16x128xf32> to vector<16xf32>
    %5 = vector.shape_cast %4 : vector<16xf32> to vector<16x1xf32>
    %cst_6 = arith.constant 1.280000e+02 : f32
    %6 = vector.broadcast %cst_6 : f32 to vector<16x1xf32>
    %7 = arith.divf %5, %6 : vector<16x1xf32>
    %8 = vector.broadcast %7 : vector<16x1xf32> to vector<16x128xf32>
    %9 = arith.subf %1, %8 : vector<16x128xf32>
    %10 = arith.mulf %9, %9 : vector<16x128xf32>
    %cst_7 = arith.constant dense<0.000000e+00> : vector<16xf32>
    %11 = vector.multi_reduction <add>, %10, %cst_7 [1] : vector<16x128xf32> to vector<16xf32>
    %12 = vector.shape_cast %11 : vector<16xf32> to vector<16x1xf32>
    %cst_8 = arith.constant 1.280000e+02 : f32
    %13 = vector.broadcast %cst_8 : f32 to vector<16x1xf32>
    %14 = arith.divf %12, %13 : vector<16x1xf32>
    %15 = vector.broadcast %7 : vector<16x1xf32> to vector<16x128xf32>
    %16 = arith.subf %1, %15 : vector<16x128xf32>
    %cst_9 = arith.constant 9.99999974E-6 : f32
    %17 = vector.broadcast %cst_9 : f32 to vector<16x1xf32>
    %18 = arith.addf %14, %17 : vector<16x1xf32>
    %19 = math.rsqrt %18 : vector<16x1xf32>
    %20 = vector.broadcast %19 : vector<16x1xf32> to vector<16x128xf32>
    %21 = arith.mulf %16, %20 : vector<16x128xf32>
    %22 = vector.broadcast %2 : vector<1x128xf32> to vector<16x128xf32>
    %23 = arith.mulf %21, %22 : vector<16x128xf32>
    %24 = vector.broadcast %3 : vector<1x128xf32> to vector<16x128xf32>
    %25 = arith.addf %23, %24 : vector<16x128xf32>
    %26 = arith.truncf %25 : vector<16x128xf32> to vector<16x128xbf16>
    %c0_10 = arith.constant 0 : index
    %c0_11 = arith.constant 0 : index
    %27 = vector.load %arg4[%c0_10, %c0_11] : memref<128x384xbf16, #tpu.memory_space<vmem>>, vector<128x384xbf16>
    %cst_12 = arith.constant dense<0.000000e+00> : vector<16x384xf32>
    %28 = tpu.matmul %26, %27, %cst_12 {dimension_numbers = #tpu.dot_dimension_numbers<[1], [0], [0], [1], [0, 0, 1, 1], [], []>} : vector<16x128xbf16>, vector<128x384xbf16>, vector<16x384xf32> -> vector<16x384xf32>
    %c0_13 = arith.constant 0 : index
    %c0_14 = arith.constant 0 : index
    %29 = vector.load %arg5[%c0_13, %c0_14] : memref<1x384xf32, #tpu.memory_space<vmem>>, vector<1x384xf32>
    %30 = vector.broadcast %29 : vector<1x384xf32> to vector<16x384xf32>
    %31 = arith.addf %28, %30 : vector<16x384xf32>
    %32 = vector.extract_strided_slice %31 {offsets = [0, 0], sizes = [16, 128], strides = [1, 1]} : vector<16x384xf32> to vector<16x128xf32>
    %cst_15 = arith.constant 0.176776692 : f32
    %33 = vector.broadcast %cst_15 : f32 to vector<16x128xf32>
    %34 = arith.mulf %32, %33 : vector<16x128xf32>
    %35 = arith.truncf %34 : vector<16x128xf32> to vector<16x128xbf16>
    %36 = vector.extract_strided_slice %31 {offsets = [0, 128], sizes = [16, 128], strides = [1, 1]} : vector<16x384xf32> to vector<16x128xf32>
    %37 = arith.truncf %36 : vector<16x128xf32> to vector<16x128xbf16>
    %38 = vector.extract_strided_slice %31 {offsets = [0, 256], sizes = [16, 128], strides = [1, 1]} : vector<16x384xf32> to vector<16x128xf32>
    %39 = arith.truncf %38 : vector<16x128xf32> to vector<16x128xbf16>
    %40 = tpu.iota {dimensions = array<i32: 0>} : vector<16x16xi32>
    %41 = tpu.iota {dimensions = array<i32: 1>} : vector<16x16xi32>
    %42 = arith.cmpi sgt, %41, %40 : vector<16x16xi32>
    %43 = vector.extract_strided_slice %35 {offsets = [0, 0], sizes = [16, 32], strides = [1, 1]} : vector<16x128xbf16> to vector<16x32xbf16>
    %44 = vector.extract_strided_slice %37 {offsets = [0, 0], sizes = [16, 32], strides = [1, 1]} : vector<16x128xbf16> to vector<16x32xbf16>
    %cst_16 = arith.constant dense<0.000000e+00> : vector<16x16xf32>
    %45 = tpu.matmul %43, %44, %cst_16 {dimension_numbers = #tpu.dot_dimension_numbers<[1], [1], [0], [0], [0, 0, 1, 0], [], []>} : vector<16x32xbf16>, vector<16x32xbf16>, vector<16x16xf32> -> vector<16x16xf32>
    %cst_17 = arith.constant 0xFF800000 : f32
    %46 = vector.broadcast %cst_17 : f32 to vector<16x16xf32>
    %47 = arith.select %42, %46, %45 : vector<16x16xi1>, vector<16x16xf32>
    %cst_18 = arith.constant dense<0xFF800000> : vector<16xf32>
    %48 = vector.multi_reduction <maximumf>, %47, %cst_18 [1] : vector<16x16xf32> to vector<16xf32>
    %49 = vector.shape_cast %48 : vector<16xf32> to vector<16x1xf32>
    %50 = vector.broadcast %49 : vector<16x1xf32> to vector<16x16xf32>
    %51 = arith.subf %47, %50 : vector<16x16xf32>
    %52 = math.exp %51 : vector<16x16xf32>
    %cst_19 = arith.constant dense<0.000000e+00> : vector<16xf32>
    %53 = vector.multi_reduction <add>, %52, %cst_19 [1] : vector<16x16xf32> to vector<16xf32>
    %54 = vector.shape_cast %53 : vector<16xf32> to vector<16x1xf32>
    %55 = tpu.reciprocal %54 {approx = true} : vector<16x1xf32> -> vector<16x1xf32>
    %56 = vector.broadcast %55 : vector<16x1xf32> to vector<16x16xf32>
    %57 = arith.mulf %52, %56 : vector<16x16xf32>
    %58 = arith.truncf %57 : vector<16x16xf32> to vector<16x16xbf16>
    %59 = vector.extract_strided_slice %39 {offsets = [0, 0], sizes = [16, 32], strides = [1, 1]} : vector<16x128xbf16> to vector<16x32xbf16>
    %cst_20 = arith.constant dense<0.000000e+00> : vector<16x32xf32>
    %60 = tpu.matmul %58, %59, %cst_20 {dimension_numbers = #tpu.dot_dimension_numbers<[1], [0], [0], [1], [0, 0, 1, 1], [], []>} : vector<16x16xbf16>, vector<16x32xbf16>, vector<16x32xf32> -> vector<16x32xf32>
    %61 = vector.extract_strided_slice %35 {offsets = [0, 32], sizes = [16, 32], strides = [1, 1]} : vector<16x128xbf16> to vector<16x32xbf16>
    %62 = vector.extract_strided_slice %37 {offsets = [0, 32], sizes = [16, 32], strides = [1, 1]} : vector<16x128xbf16> to vector<16x32xbf16>
    %cst_21 = arith.constant dense<0.000000e+00> : vector<16x16xf32>
    %63 = tpu.matmul %61, %62, %cst_21 {dimension_numbers = #tpu.dot_dimension_numbers<[1], [1], [0], [0], [0, 0, 1, 0], [], []>} : vector<16x32xbf16>, vector<16x32xbf16>, vector<16x16xf32> -> vector<16x16xf32>
    %cst_22 = arith.constant 0xFF800000 : f32
    %64 = vector.broadcast %cst_22 : f32 to vector<16x16xf32>
    %65 = arith.select %42, %64, %63 : vector<16x16xi1>, vector<16x16xf32>
    %cst_23 = arith.constant dense<0xFF800000> : vector<16xf32>
    %66 = vector.multi_reduction <maximumf>, %65, %cst_23 [1] : vector<16x16xf32> to vector<16xf32>
    %67 = vector.shape_cast %66 : vector<16xf32> to vector<16x1xf32>
    %68 = vector.broadcast %67 : vector<16x1xf32> to vector<16x16xf32>
    %69 = arith.subf %65, %68 : vector<16x16xf32>
    %70 = math.exp %69 : vector<16x16xf32>
    %cst_24 = arith.constant dense<0.000000e+00> : vector<16xf32>
    %71 = vector.multi_reduction <add>, %70, %cst_24 [1] : vector<16x16xf32> to vector<16xf32>
    %72 = vector.shape_cast %71 : vector<16xf32> to vector<16x1xf32>
    %73 = tpu.reciprocal %72 {approx = true} : vector<16x1xf32> -> vector<16x1xf32>
    %74 = vector.broadcast %73 : vector<16x1xf32> to vector<16x16xf32>
    %75 = arith.mulf %70, %74 : vector<16x16xf32>
    %76 = arith.truncf %75 : vector<16x16xf32> to vector<16x16xbf16>
    %77 = vector.extract_strided_slice %39 {offsets = [0, 32], sizes = [16, 32], strides = [1, 1]} : vector<16x128xbf16> to vector<16x32xbf16>
    %cst_25 = arith.constant dense<0.000000e+00> : vector<16x32xf32>
    %78 = tpu.matmul %76, %77, %cst_25 {dimension_numbers = #tpu.dot_dimension_numbers<[1], [0], [0], [1], [0, 0, 1, 1], [], []>} : vector<16x16xbf16>, vector<16x32xbf16>, vector<16x32xf32> -> vector<16x32xf32>
    %79 = vector.extract_strided_slice %35 {offsets = [0, 64], sizes = [16, 32], strides = [1, 1]} : vector<16x128xbf16> to vector<16x32xbf16>
    %80 = vector.extract_strided_slice %37 {offsets = [0, 64], sizes = [16, 32], strides = [1, 1]} : vector<16x128xbf16> to vector<16x32xbf16>
    %cst_26 = arith.constant dense<0.000000e+00> : vector<16x16xf32>
    %81 = tpu.matmul %79, %80, %cst_26 {dimension_numbers = #tpu.dot_dimension_numbers<[1], [1], [0], [0], [0, 0, 1, 0], [], []>} : vector<16x32xbf16>, vector<16x32xbf16>, vector<16x16xf32> -> vector<16x16xf32>
    %cst_27 = arith.constant 0xFF800000 : f32
    %82 = vector.broadcast %cst_27 : f32 to vector<16x16xf32>
    %83 = arith.select %42, %82, %81 : vector<16x16xi1>, vector<16x16xf32>
    %cst_28 = arith.constant dense<0xFF800000> : vector<16xf32>
    %84 = vector.multi_reduction <maximumf>, %83, %cst_28 [1] : vector<16x16xf32> to vector<16xf32>
    %85 = vector.shape_cast %84 : vector<16xf32> to vector<16x1xf32>
    %86 = vector.broadcast %85 : vector<16x1xf32> to vector<16x16xf32>
    %87 = arith.subf %83, %86 : vector<16x16xf32>
    %88 = math.exp %87 : vector<16x16xf32>
    %cst_29 = arith.constant dense<0.000000e+00> : vector<16xf32>
    %89 = vector.multi_reduction <add>, %88, %cst_29 [1] : vector<16x16xf32> to vector<16xf32>
    %90 = vector.shape_cast %89 : vector<16xf32> to vector<16x1xf32>
    %91 = tpu.reciprocal %90 {approx = true} : vector<16x1xf32> -> vector<16x1xf32>
    %92 = vector.broadcast %91 : vector<16x1xf32> to vector<16x16xf32>
    %93 = arith.mulf %88, %92 : vector<16x16xf32>
    %94 = arith.truncf %93 : vector<16x16xf32> to vector<16x16xbf16>
    %95 = vector.extract_strided_slice %39 {offsets = [0, 64], sizes = [16, 32], strides = [1, 1]} : vector<16x128xbf16> to vector<16x32xbf16>
    %cst_30 = arith.constant dense<0.000000e+00> : vector<16x32xf32>
    %96 = tpu.matmul %94, %95, %cst_30 {dimension_numbers = #tpu.dot_dimension_numbers<[1], [0], [0], [1], [0, 0, 1, 1], [], []>} : vector<16x16xbf16>, vector<16x32xbf16>, vector<16x32xf32> -> vector<16x32xf32>
    %97 = vector.extract_strided_slice %35 {offsets = [0, 96], sizes = [16, 32], strides = [1, 1]} : vector<16x128xbf16> to vector<16x32xbf16>
    %98 = vector.extract_strided_slice %37 {offsets = [0, 96], sizes = [16, 32], strides = [1, 1]} : vector<16x128xbf16> to vector<16x32xbf16>
    %cst_31 = arith.constant dense<0.000000e+00> : vector<16x16xf32>
    %99 = tpu.matmul %97, %98, %cst_31 {dimension_numbers = #tpu.dot_dimension_numbers<[1], [1], [0], [0], [0, 0, 1, 0], [], []>} : vector<16x32xbf16>, vector<16x32xbf16>, vector<16x16xf32> -> vector<16x16xf32>
    %cst_32 = arith.constant 0xFF800000 : f32
    %100 = vector.broadcast %cst_32 : f32 to vector<16x16xf32>
    %101 = arith.select %42, %100, %99 : vector<16x16xi1>, vector<16x16xf32>
    %cst_33 = arith.constant dense<0xFF800000> : vector<16xf32>
    %102 = vector.multi_reduction <maximumf>, %101, %cst_33 [1] : vector<16x16xf32> to vector<16xf32>
    %103 = vector.shape_cast %102 : vector<16xf32> to vector<16x1xf32>
    %104 = vector.broadcast %103 : vector<16x1xf32> to vector<16x16xf32>
    %105 = arith.subf %101, %104 : vector<16x16xf32>
    %106 = math.exp %105 : vector<16x16xf32>
    %cst_34 = arith.constant dense<0.000000e+00> : vector<16xf32>
    %107 = vector.multi_reduction <add>, %106, %cst_34 [1] : vector<16x16xf32> to vector<16xf32>
    %108 = vector.shape_cast %107 : vector<16xf32> to vector<16x1xf32>
    %109 = tpu.reciprocal %108 {approx = true} : vector<16x1xf32> -> vector<16x1xf32>
    %110 = vector.broadcast %109 : vector<16x1xf32> to vector<16x16xf32>
    %111 = arith.mulf %106, %110 : vector<16x16xf32>
    %112 = arith.truncf %111 : vector<16x16xf32> to vector<16x16xbf16>
    %113 = vector.extract_strided_slice %39 {offsets = [0, 96], sizes = [16, 32], strides = [1, 1]} : vector<16x128xbf16> to vector<16x32xbf16>
    %cst_35 = arith.constant dense<0.000000e+00> : vector<16x32xf32>
    %114 = tpu.matmul %112, %113, %cst_35 {dimension_numbers = #tpu.dot_dimension_numbers<[1], [0], [0], [1], [0, 0, 1, 1], [], []>} : vector<16x16xbf16>, vector<16x32xbf16>, vector<16x32xf32> -> vector<16x32xf32>
    %115 = tpu.concatenate %60, %78, %96, %114 in 1 : vector<16x32xf32>, vector<16x32xf32>, vector<16x32xf32>, vector<16x32xf32> -> vector<16x128xf32>
    %116 = arith.truncf %115 : vector<16x128xf32> to vector<16x128xbf16>
    %c0_36 = arith.constant 0 : index
    %c0_37 = arith.constant 0 : index
    %117 = vector.load %arg6[%c0_36, %c0_37] : memref<128x128xbf16, #tpu.memory_space<vmem>>, vector<128x128xbf16>
    %cst_38 = arith.constant dense<0.000000e+00> : vector<16x128xf32>
    %118 = tpu.matmul %116, %117, %cst_38 {dimension_numbers = #tpu.dot_dimension_numbers<[1], [0], [0], [1], [0, 0, 1, 1], [], []>} : vector<16x128xbf16>, vector<128x128xbf16>, vector<16x128xf32> -> vector<16x128xf32>
    %c0_39 = arith.constant 0 : index
    %c0_40 = arith.constant 0 : index
    %119 = vector.load %arg7[%c0_39, %c0_40] : memref<1x128xf32, #tpu.memory_space<vmem>>, vector<1x128xf32>
    %120 = vector.broadcast %119 : vector<1x128xf32> to vector<16x128xf32>
    %121 = arith.addf %118, %120 : vector<16x128xf32>
    %122 = arith.addf %121, %1 : vector<16x128xf32>
    %c0_41 = arith.constant 0 : index
    %c0_42 = arith.constant 0 : index
    %123 = vector.load %arg8[%c0_41, %c0_42] : memref<1x128xf32, #tpu.memory_space<vmem>>, vector<1x128xf32>
    %c0_43 = arith.constant 0 : index
    %c0_44 = arith.constant 0 : index
    %124 = vector.load %arg9[%c0_43, %c0_44] : memref<1x128xf32, #tpu.memory_space<vmem>>, vector<1x128xf32>
    %cst_45 = arith.constant dense<0.000000e+00> : vector<16xf32>
    %125 = vector.multi_reduction <add>, %122, %cst_45 [1] : vector<16x128xf32> to vector<16xf32>
    %126 = vector.shape_cast %125 : vector<16xf32> to vector<16x1xf32>
    %cst_46 = arith.constant 1.280000e+02 : f32
    %127 = vector.broadcast %cst_46 : f32 to vector<16x1xf32>
    %128 = arith.divf %126, %127 : vector<16x1xf32>
    %129 = vector.broadcast %128 : vector<16x1xf32> to vector<16x128xf32>
    %130 = arith.subf %122, %129 : vector<16x128xf32>
    %131 = arith.mulf %130, %130 : vector<16x128xf32>
    %cst_47 = arith.constant dense<0.000000e+00> : vector<16xf32>
    %132 = vector.multi_reduction <add>, %131, %cst_47 [1] : vector<16x128xf32> to vector<16xf32>
    %133 = vector.shape_cast %132 : vector<16xf32> to vector<16x1xf32>
    %cst_48 = arith.constant 1.280000e+02 : f32
    %134 = vector.broadcast %cst_48 : f32 to vector<16x1xf32>
    %135 = arith.divf %133, %134 : vector<16x1xf32>
    %136 = vector.broadcast %128 : vector<16x1xf32> to vector<16x128xf32>
    %137 = arith.subf %122, %136 : vector<16x128xf32>
    %cst_49 = arith.constant 9.99999974E-6 : f32
    %138 = vector.broadcast %cst_49 : f32 to vector<16x1xf32>
    %139 = arith.addf %135, %138 : vector<16x1xf32>
    %140 = math.rsqrt %139 : vector<16x1xf32>
    %141 = vector.broadcast %140 : vector<16x1xf32> to vector<16x128xf32>
    %142 = arith.mulf %137, %141 : vector<16x128xf32>
    %143 = vector.broadcast %123 : vector<1x128xf32> to vector<16x128xf32>
    %144 = arith.mulf %142, %143 : vector<16x128xf32>
    %145 = vector.broadcast %124 : vector<1x128xf32> to vector<16x128xf32>
    %146 = arith.addf %144, %145 : vector<16x128xf32>
    %147 = arith.truncf %146 : vector<16x128xf32> to vector<16x128xbf16>
    %c0_50 = arith.constant 0 : index
    %c0_51 = arith.constant 0 : index
    %148 = vector.load %arg10[%c0_50, %c0_51] : memref<128x512xbf16, #tpu.memory_space<vmem>>, vector<128x512xbf16>
    %cst_52 = arith.constant dense<0.000000e+00> : vector<16x512xf32>
    %149 = tpu.matmul %147, %148, %cst_52 {dimension_numbers = #tpu.dot_dimension_numbers<[1], [0], [0], [1], [0, 0, 1, 1], [], []>} : vector<16x128xbf16>, vector<128x512xbf16>, vector<16x512xf32> -> vector<16x512xf32>
    %c0_53 = arith.constant 0 : index
    %c0_54 = arith.constant 0 : index
    %150 = vector.load %arg11[%c0_53, %c0_54] : memref<1x512xf32, #tpu.memory_space<vmem>>, vector<1x512xf32>
    %151 = vector.broadcast %150 : vector<1x512xf32> to vector<16x512xf32>
    %152 = arith.addf %149, %151 : vector<16x512xf32>
    %cst_55 = arith.constant 1.702000e+00 : f32
    %153 = vector.broadcast %cst_55 : f32 to vector<16x512xf32>
    %154 = arith.mulf %153, %152 : vector<16x512xf32>
    %155 = arith.negf %154 : vector<16x512xf32>
    %156 = math.exp %155 : vector<16x512xf32>
    %cst_56 = arith.constant 1.000000e+00 : f32
    %157 = vector.broadcast %cst_56 : f32 to vector<16x512xf32>
    %158 = arith.addf %157, %156 : vector<16x512xf32>
    %159 = arith.divf %157, %158 : vector<16x512xf32>
    %160 = arith.mulf %152, %159 : vector<16x512xf32>
    %161 = arith.truncf %160 : vector<16x512xf32> to vector<16x512xbf16>
    %c0_57 = arith.constant 0 : index
    %c0_58 = arith.constant 0 : index
    %162 = vector.load %arg12[%c0_57, %c0_58] : memref<512x128xbf16, #tpu.memory_space<vmem>>, vector<512x128xbf16>
    %cst_59 = arith.constant dense<0.000000e+00> : vector<16x128xf32>
    %163 = tpu.matmul %161, %162, %cst_59 {dimension_numbers = #tpu.dot_dimension_numbers<[1], [0], [0], [1], [0, 0, 1, 1], [], []>} : vector<16x512xbf16>, vector<512x128xbf16>, vector<16x128xf32> -> vector<16x128xf32>
    %c0_60 = arith.constant 0 : index
    %c0_61 = arith.constant 0 : index
    %164 = vector.load %arg13[%c0_60, %c0_61] : memref<1x128xf32, #tpu.memory_space<vmem>>, vector<1x128xf32>
    %165 = vector.broadcast %164 : vector<1x128xf32> to vector<16x128xf32>
    %166 = arith.addf %163, %165 : vector<16x128xf32>
    %167 = arith.addf %166, %122 : vector<16x128xf32>
    %c0_62 = arith.constant 0 : index
    %c0_63 = arith.constant 0 : index
    %c0_64 = arith.constant 0 : index
    %168 = vector.load %arg14[%c0_62, %c0_63, %c0_64] : memref<1x16x128xf32, #tpu.memory_space<vmem>>, vector<1x16x128xf32>
    %169 = vector.shape_cast %168 : vector<1x16x128xf32> to vector<16x128xf32>
    %170 = vector.shape_cast %167 : vector<16x128xf32> to vector<1x16x128xf32>
    tpu.vector_store %arg14[%c0_62, %c0_63, %c0_64], %170 {strides = array<i32>} : memref<1x16x128xf32, #tpu.memory_space<vmem>>, vector<1x16x128xf32>,
    return
  }
  func.func @transform_0(%arg0: i32) -> (i32, i32, i32) {
    %c0_i32 = arith.constant 0 : i32
    %c0_i32_0 = arith.constant 0 : i32
    %c0_i32_1 = arith.constant 0 : i32
    return %arg0, %c0_i32, %c0_i32_0 : i32, i32, i32
  }
  func.func @transform_1(%arg0: i32) -> (i32, i32) {
    %c0_i32 = arith.constant 0 : i32
    %c0_i32_0 = arith.constant 0 : i32
    %c0_i32_1 = arith.constant 0 : i32
    return %c0_i32, %c0_i32_0 : i32, i32
  }
  func.func @transform_2(%arg0: i32) -> (i32, i32) {
    %c0_i32 = arith.constant 0 : i32
    %c0_i32_0 = arith.constant 0 : i32
    %c0_i32_1 = arith.constant 0 : i32
    return %c0_i32, %c0_i32_0 : i32, i32
  }
  func.func @transform_3(%arg0: i32) -> (i32, i32) {
    %c0_i32 = arith.constant 0 : i32
    %c0_i32_0 = arith.constant 0 : i32
    %c0_i32_1 = arith.constant 0 : i32
    return %c0_i32, %c0_i32_0 : i32, i32
  }
  func.func @transform_4(%arg0: i32) -> (i32, i32) {
    %c0_i32 = arith.constant 0 : i32
    %c0_i32_0 = arith.constant 0 : i32
    %c0_i32_1 = arith.constant 0 : i32
    return %c0_i32, %c0_i32_0 : i32, i32
  }
  func.func @transform_5(%arg0: i32) -> (i32, i32) {
    %c0_i32 = arith.constant 0 : i32
    %c0_i32_0 = arith.constant 0 : i32
    %c0_i32_1 = arith.constant 0 : i32
    return %c0_i32, %c0_i32_0 : i32, i32
  }
  func.func @transform_6(%arg0: i32) -> (i32, i32) {
    %c0_i32 = arith.constant 0 : i32
    %c0_i32_0 = arith.constant 0 : i32
    %c0_i32_1 = arith.constant 0 : i32
    return %c0_i32, %c0_i32_0 : i32, i32
  }
  func.func @transform_7(%arg0: i32) -> (i32, i32) {
    %c0_i32 = arith.constant 0 : i32
    %c0_i32_0 = arith.constant 0 : i32
    %c0_i32_1 = arith.constant 0 : i32
    return %c0_i32, %c0_i32_0 : i32, i32
  }
  func.func @transform_8(%arg0: i32) -> (i32, i32) {
    %c0_i32 = arith.constant 0 : i32
    %c0_i32_0 = arith.constant 0 : i32
    %c0_i32_1 = arith.constant 0 : i32
    return %c0_i32, %c0_i32_0 : i32, i32
  }
  func.func @transform_9(%arg0: i32) -> (i32, i32) {
    %c0_i32 = arith.constant 0 : i32
    %c0_i32_0 = arith.constant 0 : i32
    %c0_i32_1 = arith.constant 0 : i32
    return %c0_i32, %c0_i32_0 : i32, i32
  }
  func.func @transform_10(%arg0: i32) -> (i32, i32) {
    %c0_i32 = arith.constant 0 : i32
    %c0_i32_0 = arith.constant 0 : i32
    %c0_i32_1 = arith.constant 0 : i32
    return %c0_i32, %c0_i32_0 : i32, i32
  }
  func.func @transform_11(%arg0: i32) -> (i32, i32) {
    %c0_i32 = arith.constant 0 : i32
    %c0_i32_0 = arith.constant 0 : i32
    %c0_i32_1 = arith.constant 0 : i32
    return %c0_i32, %c0_i32_0 : i32, i32
  }
  func.func @transform_12(%arg0: i32) -> (i32, i32) {
    %c0_i32 = arith.constant 0 : i32
    %c0_i32_0 = arith.constant 0 : i32
    %c0_i32_1 = arith.constant 0 : i32
    return %c0_i32, %c0_i32_0 : i32, i32
  }
  func.func @transform_13(%arg0: i32) -> (i32, i32, i32) {
    %c0_i32 = arith.constant 0 : i32
    %c0_i32_0 = arith.constant 0 : i32
    %c0_i32_1 = arith.constant 0 : i32
    return %arg0, %c0_i32, %c0_i32_0 : i32, i32, i32
  }
}

module attributes {stable_mosaic.version = 11 : i64} {
  func.func @clip_layer_kernel(%arg0: i32, %arg1: memref<1x16x128xf32, #tpu.memory_space<vmem>>, %arg2: memref<1x128xf32, #tpu.memory_space<vmem>>, %arg3: memref<1x128xf32, #tpu.memory_space<vmem>>, %arg4: memref<128x384xbf16, #tpu.memory_space<vmem>>, %arg5: memref<1x384xf32, #tpu.memory_space<vmem>>, %arg6: memref<128x128xbf16, #tpu.memory_space<vmem>>, %arg7: memref<1x128xf32, #tpu.memory_space<vmem>>, %arg8: memref<1x128xf32, #tpu.memory_space<vmem>>, %arg9: memref<1x128xf32, #tpu.memory_space<vmem>>, %arg10: memref<128x512xbf16, #tpu.memory_space<vmem>>, %arg11: memref<1x512xf32, #tpu.memory_space<vmem>>, %arg12: memref<512x128xbf16, #tpu.memory_space<vmem>>, %arg13: memref<1x128xf32, #tpu.memory_space<vmem>>, %arg14: memref<1x16x128xf32, #tpu.memory_space<vmem>>) attributes {dimension_semantics = [#tpu.dimension_semantics<parallel>], iteration_bounds = array<i64: 2>, scalar_prefetch = 0 : i64, scratch_operands = 0 : i64, tpu.core_type = #tpu.core_type<tc>, window_params = [{transform_indices = @transform_0, window_bounds = array<i64: 1, 16, 128>}, {pipeline_mode = #tpu.pipeline_mode<synchronous>, transform_indices = @transform_1, window_bounds = array<i64: 1, 128>}, {pipeline_mode = #tpu.pipeline_mode<synchronous>, transform_indices = @transform_2, window_bounds = array<i64: 1, 128>}, {pipeline_mode = #tpu.pipeline_mode<synchronous>, transform_indices = @transform_3, window_bounds = array<i64: 128, 384>}, {pipeline_mode = #tpu.pipeline_mode<synchronous>, transform_indices = @transform_4, window_bounds = array<i64: 1, 384>}, {pipeline_mode = #tpu.pipeline_mode<synchronous>, transform_indices = @transform_5, window_bounds = array<i64: 128, 128>}, {pipeline_mode = #tpu.pipeline_mode<synchronous>, transform_indices = @transform_6, window_bounds = array<i64: 1, 128>}, {pipeline_mode = #tpu.pipeline_mode<synchronous>, transform_indices = @transform_7, window_bounds = array<i64: 1, 128>}, {pipeline_mode = #tpu.pipeline_mode<synchronous>, transform_indices = @transform_8, window_bounds = array<i64: 1, 128>}, {pipeline_mode = #tpu.pipeline_mode<synchronous>, transform_indices = @transform_9, window_bounds = array<i64: 128, 512>}, {pipeline_mode = #tpu.pipeline_mode<synchronous>, transform_indices = @transform_10, window_bounds = array<i64: 1, 512>}, {pipeline_mode = #tpu.pipeline_mode<synchronous>, transform_indices = @transform_11, window_bounds = array<i64: 512, 128>}, {pipeline_mode = #tpu.pipeline_mode<synchronous>, transform_indices = @transform_12, window_bounds = array<i64: 1, 128>}, {transform_indices = @transform_13, window_bounds = array<i64: 1, 16, 128>}]} {
    %c0 = arith.constant 0 : index
    %c0_0 = arith.constant 0 : index
    %c0_1 = arith.constant 0 : index
    %0 = vector.load %arg1[%c0, %c0_0, %c0_1] : memref<1x16x128xf32, #tpu.memory_space<vmem>>, vector<1x16x128xf32>
    %1 = vector.shape_cast %0 : vector<1x16x128xf32> to vector<16x128xf32>
    %c0_2 = arith.constant 0 : index
    %c0_3 = arith.constant 0 : index
    %2 = vector.load %arg2[%c0_2, %c0_3] : memref<1x128xf32, #tpu.memory_space<vmem>>, vector<1x128xf32>
    %c0_4 = arith.constant 0 : index
    %c0_5 = arith.constant 0 : index
    %3 = vector.load %arg3[%c0_4, %c0_5] : memref<1x128xf32, #tpu.memory_space<vmem>>, vector<1x128xf32>
    %cst = arith.constant dense<0.000000e+00> : vector<16xf32>
    %4 = vector.multi_reduction <add>, %1, %cst [1] : vector<16x128xf32> to vector<16xf32>
    %5 = vector.shape_cast %4 : vector<16xf32> to vector<16x1xf32>
    %cst_6 = arith.constant 1.280000e+02 : f32
    %6 = vector.broadcast %cst_6 : f32 to vector<16x1xf32>
    %7 = arith.divf %5, %6 : vector<16x1xf32>
    %8 = vector.broadcast %7 : vector<16x1xf32> to vector<16x128xf32>
    %9 = arith.subf %1, %8 : vector<16x128xf32>
    %10 = arith.mulf %9, %9 : vector<16x128xf32>
    %cst_7 = arith.constant dense<0.000000e+00> : vector<16xf32>
    %11 = vector.multi_reduction <add>, %10, %cst_7 [1] : vector<16x128xf32> to vector<16xf32>
    %12 = vector.shape_cast %11 : vector<16xf32> to vector<16x1xf32>
    %cst_8 = arith.constant 1.280000e+02 : f32
    %13 = vector.broadcast %cst_8 : f32 to vector<16x1xf32>
    %14 = arith.divf %12, %13 : vector<16x1xf32>
    %15 = vector.broadcast %7 : vector<16x1xf32> to vector<16x128xf32>
    %16 = arith.subf %1, %15 : vector<16x128xf32>
    %cst_9 = arith.constant 9.99999974E-6 : f32
    %17 = vector.broadcast %cst_9 : f32 to vector<16x1xf32>
    %18 = arith.addf %14, %17 : vector<16x1xf32>
    %19 = math.rsqrt %18 : vector<16x1xf32>
    %20 = vector.broadcast %19 : vector<16x1xf32> to vector<16x128xf32>
    %21 = arith.mulf %16, %20 : vector<16x128xf32>
    %22 = vector.broadcast %2 : vector<1x128xf32> to vector<16x128xf32>
    %23 = arith.mulf %21, %22 : vector<16x128xf32>
    %24 = vector.broadcast %3 : vector<1x128xf32> to vector<16x128xf32>
    %25 = arith.addf %23, %24 : vector<16x128xf32>
    %26 = arith.truncf %25 : vector<16x128xf32> to vector<16x128xbf16>
    %c0_10 = arith.constant 0 : index
    %c0_11 = arith.constant 0 : index
    %27 = vector.load %arg4[%c0_10, %c0_11] : memref<128x384xbf16, #tpu.memory_space<vmem>>, vector<128x384xbf16>
    %cst_12 = arith.constant dense<0.000000e+00> : vector<16x384xf32>
    %28 = tpu.matmul %26, %27, %cst_12 {dimension_numbers = #tpu.dot_dimension_numbers<[1], [0], [0], [1], [0, 0, 1, 1], [], []>} : vector<16x128xbf16>, vector<128x384xbf16>, vector<16x384xf32> -> vector<16x384xf32>
    %c0_13 = arith.constant 0 : index
    %c0_14 = arith.constant 0 : index
    %29 = vector.load %arg5[%c0_13, %c0_14] : memref<1x384xf32, #tpu.memory_space<vmem>>, vector<1x384xf32>
    %30 = vector.broadcast %29 : vector<1x384xf32> to vector<16x384xf32>
    %31 = arith.addf %28, %30 : vector<16x384xf32>
    %32 = vector.extract_strided_slice %31 {offsets = [0, 0], sizes = [16, 128], strides = [1, 1]} : vector<16x384xf32> to vector<16x128xf32>
    %cst_15 = arith.constant 0.176776692 : f32
    %33 = vector.broadcast %cst_15 : f32 to vector<16x128xf32>
    %34 = arith.mulf %32, %33 : vector<16x128xf32>
    %35 = arith.truncf %34 : vector<16x128xf32> to vector<16x128xbf16>
    %36 = vector.extract_strided_slice %31 {offsets = [0, 128], sizes = [16, 128], strides = [1, 1]} : vector<16x384xf32> to vector<16x128xf32>
    %37 = arith.truncf %36 : vector<16x128xf32> to vector<16x128xbf16>
    %38 = vector.extract_strided_slice %31 {offsets = [0, 256], sizes = [16, 128], strides = [1, 1]} : vector<16x384xf32> to vector<16x128xf32>
    %39 = arith.truncf %38 : vector<16x128xf32> to vector<16x128xbf16>
    %40 = tpu.iota {dimensions = array<i32: 0>} : vector<16x16xi32>
    %41 = tpu.iota {dimensions = array<i32: 1>} : vector<16x16xi32>
    %42 = arith.cmpi sgt, %41, %40 : vector<16x16xi32>
    %43 = vector.extract_strided_slice %35 {offsets = [0, 0], sizes = [16, 32], strides = [1, 1]} : vector<16x128xbf16> to vector<16x32xbf16>
    %44 = vector.extract_strided_slice %37 {offsets = [0, 0], sizes = [16, 32], strides = [1, 1]} : vector<16x128xbf16> to vector<16x32xbf16>
    %cst_16 = arith.constant dense<0.000000e+00> : vector<16x16xf32>
    %45 = tpu.matmul %43, %44, %cst_16 {dimension_numbers = #tpu.dot_dimension_numbers<[1], [1], [0], [0], [0, 0, 1, 0], [], []>} : vector<16x32xbf16>, vector<16x32xbf16>, vector<16x16xf32> -> vector<16x16xf32>
    %cst_17 = arith.constant 0xFF800000 : f32
    %46 = vector.broadcast %cst_17 : f32 to vector<16x16xf32>
    %47 = arith.select %42, %46, %45 : vector<16x16xi1>, vector<16x16xf32>
    %cst_18 = arith.constant dense<0xFF800000> : vector<16xf32>
    %48 = vector.multi_reduction <maximumf>, %47, %cst_18 [1] : vector<16x16xf32> to vector<16xf32>
    %49 = vector.shape_cast %48 : vector<16xf32> to vector<16x1xf32>
    %50 = vector.broadcast %49 : vector<16x1xf32> to vector<16x16xf32>
    %51 = arith.subf %47, %50 : vector<16x16xf32>
    %52 = math.exp %51 : vector<16x16xf32>
    %cst_19 = arith.constant dense<0.000000e+00> : vector<16xf32>
    %53 = vector.multi_reduction <add>, %52, %cst_19 [1] : vector<16x16xf32> to vector<16xf32>
    %54 = vector.shape_cast %53 : vector<16xf32> to vector<16x1xf32>
    %55 = tpu.reciprocal %54 {approx = true} : vector<16x1xf32> -> vector<16x1xf32>
    %56 = vector.broadcast %55 : vector<16x1xf32> to vector<16x16xf32>
    %57 = arith.mulf %52, %56 : vector<16x16xf32>
    %58 = arith.truncf %57 : vector<16x16xf32> to vector<16x16xbf16>
    %59 = vector.extract_strided_slice %39 {offsets = [0, 0], sizes = [16, 32], strides = [1, 1]} : vector<16x128xbf16> to vector<16x32xbf16>
    %cst_20 = arith.constant dense<0.000000e+00> : vector<16x32xf32>
    %60 = tpu.matmul %58, %59, %cst_20 {dimension_numbers = #tpu.dot_dimension_numbers<[1], [0], [0], [1], [0, 0, 1, 1], [], []>} : vector<16x16xbf16>, vector<16x32xbf16>, vector<16x32xf32> -> vector<16x32xf32>
    %61 = vector.extract_strided_slice %35 {offsets = [0, 32], sizes = [16, 32], strides = [1, 1]} : vector<16x128xbf16> to vector<16x32xbf16>
    %62 = vector.extract_strided_slice %37 {offsets = [0, 32], sizes = [16, 32], strides = [1, 1]} : vector<16x128xbf16> to vector<16x32xbf16>
    %cst_21 = arith.constant dense<0.000000e+00> : vector<16x16xf32>
    %63 = tpu.matmul %61, %62, %cst_21 {dimension_numbers = #tpu.dot_dimension_numbers<[1], [1], [0], [0], [0, 0, 1, 0], [], []>} : vector<16x32xbf16>, vector<16x32xbf16>, vector<16x16xf32> -> vector<16x16xf32>
    %cst_22 = arith.constant 0xFF800000 : f32
    %64 = vector.broadcast %cst_22 : f32 to vector<16x16xf32>
    %65 = arith.select %42, %64, %63 : vector<16x16xi1>, vector<16x16xf32>
    %cst_23 = arith.constant dense<0xFF800000> : vector<16xf32>
    %66 = vector.multi_reduction <maximumf>, %65, %cst_23 [1] : vector<16x16xf32> to vector<16xf32>
    %67 = vector.shape_cast %66 : vector<16xf32> to vector<16x1xf32>
    %68 = vector.broadcast %67 : vector<16x1xf32> to vector<16x16xf32>
    %69 = arith.subf %65, %68 : vector<16x16xf32>
    %70 = math.exp %69 : vector<16x16xf32>
    %cst_24 = arith.constant dense<0.000000e+00> : vector<16xf32>
    %71 = vector.multi_reduction <add>, %70, %cst_24 [1] : vector<16x16xf32> to vector<16xf32>
    %72 = vector.shape_cast %71 : vector<16xf32> to vector<16x1xf32>
    %73 = tpu.reciprocal %72 {approx = true} : vector<16x1xf32> -> vector<16x1xf32>
    %74 = vector.broadcast %73 : vector<16x1xf32> to vector<16x16xf32>
    %75 = arith.mulf %70, %74 : vector<16x16xf32>
    %76 = arith.truncf %75 : vector<16x16xf32> to vector<16x16xbf16>
    %77 = vector.extract_strided_slice %39 {offsets = [0, 32], sizes = [16, 32], strides = [1, 1]} : vector<16x128xbf16> to vector<16x32xbf16>
    %cst_25 = arith.constant dense<0.000000e+00> : vector<16x32xf32>
    %78 = tpu.matmul %76, %77, %cst_25 {dimension_numbers = #tpu.dot_dimension_numbers<[1], [0], [0], [1], [0, 0, 1, 1], [], []>} : vector<16x16xbf16>, vector<16x32xbf16>, vector<16x32xf32> -> vector<16x32xf32>
    %79 = vector.extract_strided_slice %35 {offsets = [0, 64], sizes = [16, 32], strides = [1, 1]} : vector<16x128xbf16> to vector<16x32xbf16>
    %80 = vector.extract_strided_slice %37 {offsets = [0, 64], sizes = [16, 32], strides = [1, 1]} : vector<16x128xbf16> to vector<16x32xbf16>
    %cst_26 = arith.constant dense<0.000000e+00> : vector<16x16xf32>
    %81 = tpu.matmul %79, %80, %cst_26 {dimension_numbers = #tpu.dot_dimension_numbers<[1], [1], [0], [0], [0, 0, 1, 0], [], []>} : vector<16x32xbf16>, vector<16x32xbf16>, vector<16x16xf32> -> vector<16x16xf32>
    %cst_27 = arith.constant 0xFF800000 : f32
    %82 = vector.broadcast %cst_27 : f32 to vector<16x16xf32>
    %83 = arith.select %42, %82, %81 : vector<16x16xi1>, vector<16x16xf32>
    %cst_28 = arith.constant dense<0xFF800000> : vector<16xf32>
    %84 = vector.multi_reduction <maximumf>, %83, %cst_28 [1] : vector<16x16xf32> to vector<16xf32>
    %85 = vector.shape_cast %84 : vector<16xf32> to vector<16x1xf32>
    %86 = vector.broadcast %85 : vector<16x1xf32> to vector<16x16xf32>
    %87 = arith.subf %83, %86 : vector<16x16xf32>
    %88 = math.exp %87 : vector<16x16xf32>
    %cst_29 = arith.constant dense<0.000000e+00> : vector<16xf32>
    %89 = vector.multi_reduction <add>, %88, %cst_29 [1] : vector<16x16xf32> to vector<16xf32>
    %90 = vector.shape_cast %89 : vector<16xf32> to vector<16x1xf32>
    %91 = tpu.reciprocal %90 {approx = true} : vector<16x1xf32> -> vector<16x1xf32>
    %92 = vector.broadcast %91 : vector<16x1xf32> to vector<16x16xf32>
    %93 = arith.mulf %88, %92 : vector<16x16xf32>
    %94 = arith.truncf %93 : vector<16x16xf32> to vector<16x16xbf16>
    %95 = vector.extract_strided_slice %39 {offsets = [0, 64], sizes = [16, 32], strides = [1, 1]} : vector<16x128xbf16> to vector<16x32xbf16>
    %cst_30 = arith.constant dense<0.000000e+00> : vector<16x32xf32>
    %96 = tpu.matmul %94, %95, %cst_30 {dimension_numbers = #tpu.dot_dimension_numbers<[1], [0], [0], [1], [0, 0, 1, 1], [], []>} : vector<16x16xbf16>, vector<16x32xbf16>, vector<16x32xf32> -> vector<16x32xf32>
    %97 = vector.extract_strided_slice %35 {offsets = [0, 96], sizes = [16, 32], strides = [1, 1]} : vector<16x128xbf16> to vector<16x32xbf16>
    %98 = vector.extract_strided_slice %37 {offsets = [0, 96], sizes = [16, 32], strides = [1, 1]} : vector<16x128xbf16> to vector<16x32xbf16>
    %cst_31 = arith.constant dense<0.000000e+00> : vector<16x16xf32>
    %99 = tpu.matmul %97, %98, %cst_31 {dimension_numbers = #tpu.dot_dimension_numbers<[1], [1], [0], [0], [0, 0, 1, 0], [], []>} : vector<16x32xbf16>, vector<16x32xbf16>, vector<16x16xf32> -> vector<16x16xf32>
    %cst_32 = arith.constant 0xFF800000 : f32
    %100 = vector.broadcast %cst_32 : f32 to vector<16x16xf32>
    %101 = arith.select %42, %100, %99 : vector<16x16xi1>, vector<16x16xf32>
    %cst_33 = arith.constant dense<0xFF800000> : vector<16xf32>
    %102 = vector.multi_reduction <maximumf>, %101, %cst_33 [1] : vector<16x16xf32> to vector<16xf32>
    %103 = vector.shape_cast %102 : vector<16xf32> to vector<16x1xf32>
    %104 = vector.broadcast %103 : vector<16x1xf32> to vector<16x16xf32>
    %105 = arith.subf %101, %104 : vector<16x16xf32>
    %106 = math.exp %105 : vector<16x16xf32>
    %cst_34 = arith.constant dense<0.000000e+00> : vector<16xf32>
    %107 = vector.multi_reduction <add>, %106, %cst_34 [1] : vector<16x16xf32> to vector<16xf32>
    %108 = vector.shape_cast %107 : vector<16xf32> to vector<16x1xf32>
    %109 = tpu.reciprocal %108 {approx = true} : vector<16x1xf32> -> vector<16x1xf32>
    %110 = vector.broadcast %109 : vector<16x1xf32> to vector<16x16xf32>
    %111 = arith.mulf %106, %110 : vector<16x16xf32>
    %112 = arith.truncf %111 : vector<16x16xf32> to vector<16x16xbf16>
    %113 = vector.extract_strided_slice %39 {offsets = [0, 96], sizes = [16, 32], strides = [1, 1]} : vector<16x128xbf16> to vector<16x32xbf16>
    %cst_35 = arith.constant dense<0.000000e+00> : vector<16x32xf32>
    %114 = tpu.matmul %112, %113, %cst_35 {dimension_numbers = #tpu.dot_dimension_numbers<[1], [0], [0], [1], [0, 0, 1, 1], [], []>} : vector<16x16xbf16>, vector<16x32xbf16>, vector<16x32xf32> -> vector<16x32xf32>
    %115 = tpu.concatenate %60, %78, %96, %114 in 1 : vector<16x32xf32>, vector<16x32xf32>, vector<16x32xf32>, vector<16x32xf32> -> vector<16x128xf32>
    %116 = arith.truncf %115 : vector<16x128xf32> to vector<16x128xbf16>
    %c0_36 = arith.constant 0 : index
    %c0_37 = arith.constant 0 : index
    %117 = vector.load %arg6[%c0_36, %c0_37] : memref<128x128xbf16, #tpu.memory_space<vmem>>, vector<128x128xbf16>
    %cst_38 = arith.constant dense<0.000000e+00> : vector<16x128xf32>
    %118 = tpu.matmul %116, %117, %cst_38 {dimension_numbers = #tpu.dot_dimension_numbers<[1], [0], [0], [1], [0, 0, 1, 1], [], []>} : vector<16x128xbf16>, vector<128x128xbf16>, vector<16x128xf32> -> vector<16x128xf32>
    %c0_39 = arith.constant 0 : index
    %c0_40 = arith.constant 0 : index
    %119 = vector.load %arg7[%c0_39, %c0_40] : memref<1x128xf32, #tpu.memory_space<vmem>>, vector<1x128xf32>
    %120 = vector.broadcast %119 : vector<1x128xf32> to vector<16x128xf32>
    %121 = arith.addf %118, %120 : vector<16x128xf32>
    %122 = arith.addf %121, %1 : vector<16x128xf32>
    %c0_41 = arith.constant 0 : index
    %c0_42 = arith.constant 0 : index
    %123 = vector.load %arg8[%c0_41, %c0_42] : memref<1x128xf32, #tpu.memory_space<vmem>>, vector<1x128xf32>
    %c0_43 = arith.constant 0 : index
    %c0_44 = arith.constant 0 : index
    %124 = vector.load %arg9[%c0_43, %c0_44] : memref<1x128xf32, #tpu.memory_space<vmem>>, vector<1x128xf32>
    %cst_45 = arith.constant dense<0.000000e+00> : vector<16xf32>
    %125 = vector.multi_reduction <add>, %122, %cst_45 [1] : vector<16x128xf32> to vector<16xf32>
    %126 = vector.shape_cast %125 : vector<16xf32> to vector<16x1xf32>
    %cst_46 = arith.constant 1.280000e+02 : f32
    %127 = vector.broadcast %cst_46 : f32 to vector<16x1xf32>
    %128 = arith.divf %126, %127 : vector<16x1xf32>
    %129 = vector.broadcast %128 : vector<16x1xf32> to vector<16x128xf32>
    %130 = arith.subf %122, %129 : vector<16x128xf32>
    %131 = arith.mulf %130, %130 : vector<16x128xf32>
    %cst_47 = arith.constant dense<0.000000e+00> : vector<16xf32>
    %132 = vector.multi_reduction <add>, %131, %cst_47 [1] : vector<16x128xf32> to vector<16xf32>
    %133 = vector.shape_cast %132 : vector<16xf32> to vector<16x1xf32>
    %cst_48 = arith.constant 1.280000e+02 : f32
    %134 = vector.broadcast %cst_48 : f32 to vector<16x1xf32>
    %135 = arith.divf %133, %134 : vector<16x1xf32>
    %136 = vector.broadcast %128 : vector<16x1xf32> to vector<16x128xf32>
    %137 = arith.subf %122, %136 : vector<16x128xf32>
    %cst_49 = arith.constant 9.99999974E-6 : f32
    %138 = vector.broadcast %cst_49 : f32 to vector<16x1xf32>
    %139 = arith.addf %135, %138 : vector<16x1xf32>
    %140 = math.rsqrt %139 : vector<16x1xf32>
    %141 = vector.broadcast %140 : vector<16x1xf32> to vector<16x128xf32>
    %142 = arith.mulf %137, %141 : vector<16x128xf32>
    %143 = vector.broadcast %123 : vector<1x128xf32> to vector<16x128xf32>
    %144 = arith.mulf %142, %143 : vector<16x128xf32>
    %145 = vector.broadcast %124 : vector<1x128xf32> to vector<16x128xf32>
    %146 = arith.addf %144, %145 : vector<16x128xf32>
    %147 = arith.truncf %146 : vector<16x128xf32> to vector<16x128xbf16>
    %c0_50 = arith.constant 0 : index
    %c0_51 = arith.constant 0 : index
    %148 = vector.load %arg10[%c0_50, %c0_51] : memref<128x512xbf16, #tpu.memory_space<vmem>>, vector<128x512xbf16>
    %cst_52 = arith.constant dense<0.000000e+00> : vector<16x512xf32>
    %149 = tpu.matmul %147, %148, %cst_52 {dimension_numbers = #tpu.dot_dimension_numbers<[1], [0], [0], [1], [0, 0, 1, 1], [], []>} : vector<16x128xbf16>, vector<128x512xbf16>, vector<16x512xf32> -> vector<16x512xf32>
    %c0_53 = arith.constant 0 : index
    %c0_54 = arith.constant 0 : index
    %150 = vector.load %arg11[%c0_53, %c0_54] : memref<1x512xf32, #tpu.memory_space<vmem>>, vector<1x512xf32>
    %151 = vector.broadcast %150 : vector<1x512xf32> to vector<16x512xf32>
    %152 = arith.addf %149, %151 : vector<16x512xf32>
    %cst_55 = arith.constant 1.702000e+00 : f32
    %153 = vector.broadcast %cst_55 : f32 to vector<16x512xf32>
    %154 = arith.mulf %153, %152 : vector<16x512xf32>
    %155 = arith.negf %154 : vector<16x512xf32>
    %156 = math.exp %155 : vector<16x512xf32>
    %cst_56 = arith.constant 1.000000e+00 : f32
    %157 = vector.broadcast %cst_56 : f32 to vector<16x512xf32>
    %158 = arith.addf %157, %156 : vector<16x512xf32>
    %159 = arith.divf %157, %158 : vector<16x512xf32>
    %160 = arith.mulf %152, %159 : vector<16x512xf32>
    %161 = arith.truncf %160 : vector<16x512xf32> to vector<16x512xbf16>
    %c0_57 = arith.constant 0 : index
    %c0_58 = arith.constant 0 : index
    %162 = vector.load %arg12[%c0_57, %c0_58] : memref<512x128xbf16, #tpu.memory_space<vmem>>, vector<512x128xbf16>
    %cst_59 = arith.constant dense<0.000000e+00> : vector<16x128xf32>
    %163 = tpu.matmul %161, %162, %cst_59 {dimension_numbers = #tpu.dot_dimension_numbers<[1], [0], [0], [1], [0, 0, 1, 1], [], []>} : vector<16x512xbf16>, vector<512x128xbf16>, vector<16x128xf32> -> vector<16x128xf32>
    %c0_60 = arith.constant 0 : index
    %c0_61 = arith.constant 0 : index
    %164 = vector.load %arg13[%c0_60, %c0_61] : memref<1x128xf32, #tpu.memory_space<vmem>>, vector<1x128xf32>
    %165 = vector.broadcast %164 : vector<1x128xf32> to vector<16x128xf32>
    %166 = arith.addf %163, %165 : vector<16x128xf32>
    %167 = arith.addf %166, %122 : vector<16x128xf32>
    %c0_62 = arith.constant 0 : index
    %c0_63 = arith.constant 0 : index
    %c0_64 = arith.constant 0 : index
    %168 = vector.load %arg14[%c0_62, %c0_63, %c0_64] : memref<1x16x128xf32, #tpu.memory_space<vmem>>, vector<1x16x128xf32>
    %169 = vector.shape_cast %168 : vector<1x16x128xf32> to vector<16x128xf32>
    %170 = vector.shape_cast %167 : vector<16x128xf32> to vector<1x16x128xf32>
    tpu.vector_store %arg14[%c0_62, %c0_63, %c0_64], %170 {strides = array<i32>} : memref<1x16x128xf32, #tpu.memory_space<vmem>>, vector<1x16x128xf32>,
    return
  }
  func.func @transform_0(%arg0: i32) -> (i32, i32, i32) {
    %c0_i32 = arith.constant 0 : i32
    %c0_i32_0 = arith.constant 0 : i32
    %c0_i32_1 = arith.constant 0 : i32
    return %arg0, %c0_i32, %c0_i32_0 : i32, i32, i32
  }
  func.func @transform_1(%arg0: i32) -> (i32, i32) {
    %c0_i32 = arith.constant 0 : i32
    %c0_i32_0 = arith.constant 0 : i32
    %c0_i32_1 = arith.constant 0 : i32
    return %c0_i32, %c0_i32_0 : i32, i32
  }
  func.func @transform_2(%arg0: i32) -> (i32, i32) {
    %c0_i32 = arith.constant 0 : i32
    %c0_i32_0 = arith.constant 0 : i32
    %c0_i32_1 = arith.constant 0 : i32
    return %c0_i32, %c0_i32_0 : i32, i32
  }
  func.func @transform_3(%arg0: i32) -> (i32, i32) {
    %c0_i32 = arith.constant 0 : i32
    %c0_i32_0 = arith.constant 0 : i32
    %c0_i32_1 = arith.constant 0 : i32
    return %c0_i32, %c0_i32_0 : i32, i32
  }
  func.func @transform_4(%arg0: i32) -> (i32, i32) {
    %c0_i32 = arith.constant 0 : i32
    %c0_i32_0 = arith.constant 0 : i32
    %c0_i32_1 = arith.constant 0 : i32
    return %c0_i32, %c0_i32_0 : i32, i32
  }
  func.func @transform_5(%arg0: i32) -> (i32, i32) {
    %c0_i32 = arith.constant 0 : i32
    %c0_i32_0 = arith.constant 0 : i32
    %c0_i32_1 = arith.constant 0 : i32
    return %c0_i32, %c0_i32_0 : i32, i32
  }
  func.func @transform_6(%arg0: i32) -> (i32, i32) {
    %c0_i32 = arith.constant 0 : i32
    %c0_i32_0 = arith.constant 0 : i32
    %c0_i32_1 = arith.constant 0 : i32
    return %c0_i32, %c0_i32_0 : i32, i32
  }
  func.func @transform_7(%arg0: i32) -> (i32, i32) {
    %c0_i32 = arith.constant 0 : i32
    %c0_i32_0 = arith.constant 0 : i32
    %c0_i32_1 = arith.constant 0 : i32
    return %c0_i32, %c0_i32_0 : i32, i32
  }
  func.func @transform_8(%arg0: i32) -> (i32, i32) {
    %c0_i32 = arith.constant 0 : i32
    %c0_i32_0 = arith.constant 0 : i32
    %c0_i32_1 = arith.constant 0 : i32
    return %c0_i32, %c0_i32_0 : i32, i32
  }
  func.func @transform_9(%arg0: i32) -> (i32, i32) {
    %c0_i32 = arith.constant 0 : i32
    %c0_i32_0 = arith.constant 0 : i32
    %c0_i32_1 = arith.constant 0 : i32
    return %c0_i32, %c0_i32_0 : i32, i32
  }
  func.func @transform_10(%arg0: i32) -> (i32, i32) {
    %c0_i32 = arith.constant 0 : i32
    %c0_i32_0 = arith.constant 0 : i32
    %c0_i32_1 = arith.constant 0 : i32
    return %c0_i32, %c0_i32_0 : i32, i32
  }
  func.func @transform_11(%arg0: i32) -> (i32, i32) {
    %c0_i32 = arith.constant 0 : i32
    %c0_i32_0 = arith.constant 0 : i32
    %c0_i32_1 = arith.constant 0 : i32
    return %c0_i32, %c0_i32_0 : i32, i32
  }
  func.func @transform_12(%arg0: i32) -> (i32, i32) {
    %c0_i32 = arith.constant 0 : i32
    %c0_i32_0 = arith.constant 0 : i32
    %c0_i32_1 = arith.constant 0 : i32
    return %c0_i32, %c0_i32_0 : i32, i32
  }
  func.func @transform_13(%arg0: i32) -> (i32, i32, i32) {
    %c0_i32 = arith.constant 0 : i32
    %c0_i32_0 = arith.constant 0 : i32
    %c0_i32_1 = arith.constant 0 : i32
    return %arg0, %c0_i32, %c0_i32_0 : i32, i32, i32
  }
}

</mosaic_0001>

<llo_original>
// kernel: tpu_custom_call.1
$region0: #{tpu_custom_call.1}
  #allocation0 [shape = 'u32[]', space=smem, size = 0x4, offset = 0x4, fixed_abs, tag = 'smem constant byte address 0x4 - core index']
  #allocation1 [shape = 'u32[144,128]{1,0:T(1,128)}', space=vmem, size = 0x12000, scoped, tag = 'internal scratch']
  %s0 = inlined_call_operand.hbm [shape: f32[2,16,128], index: 0, kind: input, shape index: {}]
  %s1 = inlined_call_operand.hbm [shape: f32[1,128], index: 1, kind: input, shape index: {}]
  %s2 = inlined_call_operand.hbm [shape: f32[1,128], index: 2, kind: input, shape index: {}]
  %s3 = inlined_call_operand.hbm [shape: bf16[128,384], index: 3, kind: input, shape index: {}]
  %s4 = inlined_call_operand.hbm [shape: f32[1,384], index: 4, kind: input, shape index: {}]
  %s5 = inlined_call_operand.hbm [shape: bf16[128,128], index: 5, kind: input, shape index: {}]
  %s6 = inlined_call_operand.hbm [shape: f32[1,128], index: 6, kind: input, shape index: {}]
  %s7 = inlined_call_operand.hbm [shape: f32[1,128], index: 7, kind: input, shape index: {}]
  %s8 = inlined_call_operand.hbm [shape: f32[1,128], index: 8, kind: input, shape index: {}]
  %s9 = inlined_call_operand.hbm [shape: bf16[128,512], index: 9, kind: input, shape index: {}]
  %s10 = inlined_call_operand.hbm [shape: f32[1,512], index: 10, kind: input, shape index: {}]
  %s11 = inlined_call_operand.hbm [shape: bf16[512,128], index: 11, kind: input, shape index: {}]
  %s12 = inlined_call_operand.hbm [shape: f32[1,128], index: 12, kind: input, shape index: {}]
  %s13 = inlined_call_operand.hbm [shape: f32[2,16,128], index: 13, kind: output, shape index: {}]
  %s14 = sld [smem:[#allocation0]]
  $region137: #{tpu_custom_call.1} parent=0
    _
  %s16 = ssub.s32 1, %s14
  %s17 = scalar_select 0, %s16, %s14
  $region1: #{tpu_custom_call.1} parent=0
    #allocation2 [shape = 'u8[16384]{0}', space=vmem, size = 0x4000, scoped, tag = 'input window, operand 0']
    #allocation3 [shape = 's32[2]{0}', space=sflag, size = 0x8, scoped, tag = 'scoped memory for tpu_custom_call.1']
    #allocation4 [shape = 's32[2]{0}', space=sflag, size = 0x8, scoped, tag = 'scoped memory for tpu_custom_call.1']
    #allocation5 [shape = 'u8[512]{0}', space=vmem, size = 0x400, scoped, tag = 'input window, operand 1, single buffered']
    #allocation6 [shape = 's32[1]{0}', space=sflag, size = 0x4, scoped, tag = 'scoped memory for tpu_custom_call.1']
    #allocation7 [shape = 'u8[512]{0}', space=vmem, size = 0x400, scoped, tag = 'input window, operand 2, single buffered']
    #allocation8 [shape = 'u8[98304]{0}', space=vmem, size = 0x18000, scoped, tag = 'input window, operand 3, single buffered']
    #allocation9 [shape = 's32[1]{0}', space=sflag, size = 0x4, scoped, tag = 'scoped memory for tpu_custom_call.1']
    #allocation10 [shape = 'u8[1536]{0}', space=vmem, size = 0x800, scoped, tag = 'input window, operand 4, single buffered']
    #allocation11 [shape = 'u8[32768]{0}', space=vmem, size = 0x8000, scoped, tag = 'input window, operand 5, single buffered']
    #allocation12 [shape = 's32[1]{0}', space=sflag, size = 0x4, scoped, tag = 'scoped memory for tpu_custom_call.1']
    #allocation13 [shape = 'u8[512]{0}', space=vmem, size = 0x400, scoped, tag = 'input window, operand 6, single buffered']
    #allocation14 [shape = 'u8[512]{0}', space=vmem, size = 0x400, scoped, tag = 'input window, operand 7, single buffered']
    #allocation15 [shape = 's32[1]{0}', space=sflag, size = 0x4, scoped, tag = 'scoped memory for tpu_custom_call.1']
    #allocation16 [shape = 'u8[512]{0}', space=vmem, size = 0x400, scoped, tag = 'input window, operand 8, single buffered']
    #allocation17 [shape = 'u8[131072]{0}', space=vmem, size = 0x20000, scoped, tag = 'input window, operand 9, single buffered']
    #allocation18 [shape = 's32[1]{0}', space=sflag, size = 0x4, scoped, tag = 'scoped memory for tpu_custom_call.1']
    #allocation19 [shape = 'u8[2048]{0}', space=vmem, size = 0x800, scoped, tag = 'input window, operand 10, single buffered']
    #allocation20 [shape = 'u8[131072]{0}', space=vmem, size = 0x20000, scoped, tag = 'input window, operand 11, single buffered']
    #allocation21 [shape = 's32[1]{0}', space=sflag, size = 0x4, scoped, tag = 'scoped memory for tpu_custom_call.1']
    #allocation22 [shape = 'u8[512]{0}', space=vmem, size = 0x400, scoped, tag = 'input window, operand 12, single buffered']
    #allocation23 [shape = 'u8[16384]{0}', space=vmem, size = 0x4000, scoped, tag = 'output window, operand 0']
    %18 = vsyncpa [#allocation3], 0
    %s19 = scalar_lea.sflag [#allocation3], 1
    %20 = vsyncpa %s19, 0
    %21 = vsyncpa [#allocation6], 0
    %22 = vsyncpa [#allocation9], 0
    %23 = vsyncpa [#allocation12], 0
    %24 = vsyncpa [#allocation15], 0
    %25 = vsyncpa [#allocation18], 0
    %26 = vsyncpa [#allocation21], 0
    %27 = vsyncpa [#allocation4], 0
    %s28 = scalar_lea.sflag [#allocation4], 1
    %29 = vsyncpa %s28, 0
    loop: start=0, step=1, limit=4
    $region2: #{tpu_custom_call.1} parent=1 // loop_pre_header
      _
    $region3: #{tpu_custom_call.1} parent=1 // loop_header
      %s31 = sphi 0, %s35
      %p32 = scmp.ge.s32.totalorder %s31, 4
      %s41 = sphi 0, %s43
      %s44 = sphi 0, %s41
      %s45 = sphi 0, %s44
      %s61 = sphi 0, %s45
      %s65 = sphi 0, %s65
      %s67 = sphi 0, %s65
      %s68 = sphi 0, %s67
      %s82 = sphi 0, %s68
      %s86 = sphi 0, %s86
      %s88 = sphi 0, %s86
      %s89 = sphi 0, %s88
      %s103 = sphi 0, %s89
      %s107 = sphi 0, %s107
      %s109 = sphi 0, %s107
      %s110 = sphi 0, %s109
      %s124 = sphi 0, %s110
      %s128 = sphi 0, %s128
      %s130 = sphi 0, %s128
      %s131 = sphi 0, %s130
      %s145 = sphi 0, %s131
      %s149 = sphi 0, %s149
      %s151 = sphi 0, %s149
      %s152 = sphi 0, %s151
      %s166 = sphi 0, %s152
      %s170 = sphi 0, %s170
      %s172 = sphi 0, %s170
      %s173 = sphi 0, %s172
      %s187 = sphi 0, %s173
      %s191 = sphi 0, %s191
      %s193 = sphi 0, %s191
      %s194 = sphi 0, %s193
      %s208 = sphi 0, %s194
      %s212 = sphi 0, %s212
      %s214 = sphi 0, %s212
      %s215 = sphi 0, %s214
      %s229 = sphi 0, %s215
      %s233 = sphi 0, %s233
      %s235 = sphi 0, %s233
      %s236 = sphi 0, %s235
      %s250 = sphi 0, %s236
      %s254 = sphi 0, %s254
      %s256 = sphi 0, %s254
      %s257 = sphi 0, %s256
      %s271 = sphi 0, %s257
      %s275 = sphi 0, %s275
      %s277 = sphi 0, %s275
      %s278 = sphi 0, %s277
      %s292 = sphi 0, %s278
      %s296 = sphi 0, %s296
      %s298 = sphi 0, %s296
      %s299 = sphi 0, %s298
      %s313 = sphi 0, %s299
      %s319 = sphi 0, %s321
      %s322 = sphi 0, %s319
      %s323 = sphi 0, %s322
      %s339 = sphi 0, %s323
    $region4: #{tpu_custom_call.1} parent=1 // loop_header_branch
      %34 = sbr.rel (%p32) target = $region8
    $region5: #{tpu_custom_call.1} parent=1 // loop_body
      %s36 = ssub.s32 %s31, 1
      %s37 = ssub.s32 %s31, 2
      %s38 = sadd.s32 %s31, 1
      %s39 = ssub.s32 %s31, %s38
      %p40 = scmp.eq.s32.totalorder %s39, 0
      %s42 = sadd.s32 %s41, 1
      %s43 = scalar_select %p40, %s41, %s42
      %p46 = pneg %p40
      %p47 = scmp.eq.s32.totalorder %s31, 1
      %p48 = por %p46, %p47
      %p49 = scmp.ne.s32.totalorder %s41, %s44
      %p50 = scmp.eq.s32.totalorder %s31, 0
      %p51 = por %p49, %p50
      %p52 = scmp.ne.s32.totalorder %s41, %s44
      %p53 = scmp.eq.s32.totalorder %s36, 1
      %p54 = por %p52, %p53
      %p55 = scmp.ne.s32.totalorder %s44, %s45
      %p56 = scmp.eq.s32.totalorder %s36, 0
      %p57 = por %p55, %p56
      %p58 = scmp.ne.s32.totalorder %s44, %s45
      %p59 = scmp.eq.s32.totalorder %s37, 1
      %p60 = por %p58, %p59
      %p62 = scmp.ne.s32.totalorder %s45, %s61
      %p63 = scmp.eq.s32.totalorder %s37, 0
      %p64 = por %p62, %p63
      %s66 = sadd.s32 %s65, 1
      %p69 = scmp.eq.s32.totalorder %s31, 1
      %p70 = scmp.ne.s32.totalorder %s65, %s67
      %p71 = scmp.eq.s32.totalorder %s31, 0
      %p72 = por %p70, %p71
      %p73 = scmp.ne.s32.totalorder %s65, %s67
      %p74 = scmp.eq.s32.totalorder %s36, 1
      %p75 = por %p73, %p74
      %p76 = scmp.ne.s32.totalorder %s67, %s68
      %p77 = scmp.eq.s32.totalorder %s36, 0
      %p78 = por %p76, %p77
      %p79 = scmp.ne.s32.totalorder %s67, %s68
      %p80 = scmp.eq.s32.totalorder %s37, 1
      %p81 = por %p79, %p80
      %p83 = scmp.ne.s32.totalorder %s68, %s82
      %p84 = scmp.eq.s32.totalorder %s37, 0
      %p85 = por %p83, %p84
      %s87 = sadd.s32 %s86, 1
      %p90 = scmp.eq.s32.totalorder %s31, 1
      %p91 = scmp.ne.s32.totalorder %s86, %s88
      %p92 = scmp.eq.s32.totalorder %s31, 0
      %p93 = por %p91, %p92
      %p94 = scmp.ne.s32.totalorder %s86, %s88
      %p95 = scmp.eq.s32.totalorder %s36, 1
      %p96 = por %p94, %p95
      %p97 = scmp.ne.s32.totalorder %s88, %s89
      %p98 = scmp.eq.s32.totalorder %s36, 0
      %p99 = por %p97, %p98
      %p100 = scmp.ne.s32.totalorder %s88, %s89
      %p101 = scmp.eq.s32.totalorder %s37, 1
      %p102 = por %p100, %p101
      %p104 = scmp.ne.s32.totalorder %s89, %s103
      %p105 = scmp.eq.s32.totalorder %s37, 0
      %p106 = por %p104, %p105
      %s108 = sadd.s32 %s107, 1
      %p111 = scmp.eq.s32.totalorder %s31, 1
      %p112 = scmp.ne.s32.totalorder %s107, %s109
      %p113 = scmp.eq.s32.totalorder %s31, 0
      %p114 = por %p112, %p113
      %p115 = scmp.ne.s32.totalorder %s107, %s109
      %p116 = scmp.eq.s32.totalorder %s36, 1
      %p117 = por %p115, %p116
      %p118 = scmp.ne.s32.totalorder %s109, %s110
      %p119 = scmp.eq.s32.totalorder %s36, 0
      %p120 = por %p118, %p119
      %p121 = scmp.ne.s32.totalorder %s109, %s110
      %p122 = scmp.eq.s32.totalorder %s37, 1
      %p123 = por %p121, %p122
      %p125 = scmp.ne.s32.totalorder %s110, %s124
      %p126 = scmp.eq.s32.totalorder %s37, 0
      %p127 = por %p125, %p126
      %s129 = sadd.s32 %s128, 1
      %p132 = scmp.eq.s32.totalorder %s31, 1
      %p133 = scmp.ne.s32.totalorder %s128, %s130
      %p134 = scmp.eq.s32.totalorder %s31, 0
      %p135 = por %p133, %p134
      %p136 = scmp.ne.s32.totalorder %s128, %s130
      %p137 = scmp.eq.s32.totalorder %s36, 1
      %p138 = por %p136, %p137
      %p139 = scmp.ne.s32.totalorder %s130, %s131
      %p140 = scmp.eq.s32.totalorder %s36, 0
      %p141 = por %p139, %p140
      %p142 = scmp.ne.s32.totalorder %s130, %s131
      %p143 = scmp.eq.s32.totalorder %s37, 1
      %p144 = por %p142, %p143
      %p146 = scmp.ne.s32.totalorder %s131, %s145
      %p147 = scmp.eq.s32.totalorder %s37, 0
      %p148 = por %p146, %p147
      %s150 = sadd.s32 %s149, 1
      %p153 = scmp.eq.s32.totalorder %s31, 1
      %p154 = scmp.ne.s32.totalorder %s149, %s151
      %p155 = scmp.eq.s32.totalorder %s31, 0
      %p156 = por %p154, %p155
      %p157 = scmp.ne.s32.totalorder %s149, %s151
      %p158 = scmp.eq.s32.totalorder %s36, 1
      %p159 = por %p157, %p158
      %p160 = scmp.ne.s32.totalorder %s151, %s152
      %p161 = scmp.eq.s32.totalorder %s36, 0
      %p162 = por %p160, %p161
      %p163 = scmp.ne.s32.totalorder %s151, %s152
      %p164 = scmp.eq.s32.totalorder %s37, 1
      %p165 = por %p163, %p164
      %p167 = scmp.ne.s32.totalorder %s152, %s166
      %p168 = scmp.eq.s32.totalorder %s37, 0
      %p169 = por %p167, %p168
      %s171 = sadd.s32 %s170, 1
      %p174 = scmp.eq.s32.totalorder %s31, 1
      %p175 = scmp.ne.s32.totalorder %s170, %s172
      %p176 = scmp.eq.s32.totalorder %s31, 0
      %p177 = por %p175, %p176
      %p178 = scmp.ne.s32.totalorder %s170, %s172
      %p179 = scmp.eq.s32.totalorder %s36, 1
      %p180 = por %p178, %p179
      %p181 = scmp.ne.s32.totalorder %s172, %s173
      %p182 = scmp.eq.s32.totalorder %s36, 0
      %p183 = por %p181, %p182
      %p184 = scmp.ne.s32.totalorder %s172, %s173
      %p185 = scmp.eq.s32.totalorder %s37, 1
      %p186 = por %p184, %p185
      %p188 = scmp.ne.s32.totalorder %s173, %s187
      %p189 = scmp.eq.s32.totalorder %s37, 0
      %p190 = por %p188, %p189
      %s192 = sadd.s32 %s191, 1
      %p195 = scmp.eq.s32.totalorder %s31, 1
      %p196 = scmp.ne.s32.totalorder %s191, %s193
      %p197 = scmp.eq.s32.totalorder %s31, 0
      %p198 = por %p196, %p197
      %p199 = scmp.ne.s32.totalorder %s191, %s193
      %p200 = scmp.eq.s32.totalorder %s36, 1
      %p201 = por %p199, %p200
      %p202 = scmp.ne.s32.totalorder %s193, %s194
      %p203 = scmp.eq.s32.totalorder %s36, 0
      %p204 = por %p202, %p203
      %p205 = scmp.ne.s32.totalorder %s193, %s194
      %p206 = scmp.eq.s32.totalorder %s37, 1
      %p207 = por %p205, %p206
      %p209 = scmp.ne.s32.totalorder %s194, %s208
      %p210 = scmp.eq.s32.totalorder %s37, 0
      %p211 = por %p209, %p210
      %s213 = sadd.s32 %s212, 1
      %p216 = scmp.eq.s32.totalorder %s31, 1
      %p217 = scmp.ne.s32.totalorder %s212, %s214
      %p218 = scmp.eq.s32.totalorder %s31, 0
      %p219 = por %p217, %p218
      %p220 = scmp.ne.s32.totalorder %s212, %s214
      %p221 = scmp.eq.s32.totalorder %s36, 1
      %p222 = por %p220, %p221
      %p223 = scmp.ne.s32.totalorder %s214, %s215
      %p224 = scmp.eq.s32.totalorder %s36, 0
      %p225 = por %p223, %p224
      %p226 = scmp.ne.s32.totalorder %s214, %s215
      %p227 = scmp.eq.s32.totalorder %s37, 1
      %p228 = por %p226, %p227
      %p230 = scmp.ne.s32.totalorder %s215, %s229
      %p231 = scmp.eq.s32.totalorder %s37, 0
      %p232 = por %p230, %p231
      %s234 = sadd.s32 %s233, 1
      %p237 = scmp.eq.s32.totalorder %s31, 1
      %p238 = scmp.ne.s32.totalorder %s233, %s235
      %p239 = scmp.eq.s32.totalorder %s31, 0
      %p240 = por %p238, %p239
      %p241 = scmp.ne.s32.totalorder %s233, %s235
      %p242 = scmp.eq.s32.totalorder %s36, 1
      %p243 = por %p241, %p242
      %p244 = scmp.ne.s32.totalorder %s235, %s236
      %p245 = scmp.eq.s32.totalorder %s36, 0
      %p246 = por %p244, %p245
      %p247 = scmp.ne.s32.totalorder %s235, %s236
      %p248 = scmp.eq.s32.totalorder %s37, 1
      %p249 = por %p247, %p248
      %p251 = scmp.ne.s32.totalorder %s236, %s250
      %p252 = scmp.eq.s32.totalorder %s37, 0
      %p253 = por %p251, %p252
      %s255 = sadd.s32 %s254, 1
      %p258 = scmp.eq.s32.totalorder %s31, 1
      %p259 = scmp.ne.s32.totalorder %s254, %s256
      %p260 = scmp.eq.s32.totalorder %s31, 0
      %p261 = por %p259, %p260
      %p262 = scmp.ne.s32.totalorder %s254, %s256
      %p263 = scmp.eq.s32.totalorder %s36, 1
      %p264 = por %p262, %p263
      %p265 = scmp.ne.s32.totalorder %s256, %s257
      %p266 = scmp.eq.s32.totalorder %s36, 0
      %p267 = por %p265, %p266
      %p268 = scmp.ne.s32.totalorder %s256, %s257
      %p269 = scmp.eq.s32.totalorder %s37, 1
      %p270 = por %p268, %p269
      %p272 = scmp.ne.s32.totalorder %s257, %s271
      %p273 = scmp.eq.s32.totalorder %s37, 0
      %p274 = por %p272, %p273
      %s276 = sadd.s32 %s275, 1
      %p279 = scmp.eq.s32.totalorder %s31, 1
      %p280 = scmp.ne.s32.totalorder %s275, %s277
      %p281 = scmp.eq.s32.totalorder %s31, 0
      %p282 = por %p280, %p281
      %p283 = scmp.ne.s32.totalorder %s275, %s277
      %p284 = scmp.eq.s32.totalorder %s36, 1
      %p285 = por %p283, %p284
      %p286 = scmp.ne.s32.totalorder %s277, %s278
      %p287 = scmp.eq.s32.totalorder %s36, 0
      %p288 = por %p286, %p287
      %p289 = scmp.ne.s32.totalorder %s277, %s278
      %p290 = scmp.eq.s32.totalorder %s37, 1
      %p291 = por %p289, %p290
      %p293 = scmp.ne.s32.totalorder %s278, %s292
      %p294 = scmp.eq.s32.totalorder %s37, 0
      %p295 = por %p293, %p294
      %s297 = sadd.s32 %s296, 1
      %p300 = scmp.eq.s32.totalorder %s31, 1
      %p301 = scmp.ne.s32.totalorder %s296, %s298
      %p302 = scmp.eq.s32.totalorder %s31, 0
      %p303 = por %p301, %p302
      %p304 = scmp.ne.s32.totalorder %s296, %s298
      %p305 = scmp.eq.s32.totalorder %s36, 1
      %p306 = por %p304, %p305
      %p307 = scmp.ne.s32.totalorder %s298, %s299
      %p308 = scmp.eq.s32.totalorder %s36, 0
      %p309 = por %p307, %p308
      %p310 = scmp.ne.s32.totalorder %s298, %s299
      %p311 = scmp.eq.s32.totalorder %s37, 1
      %p312 = por %p310, %p311
      %p314 = scmp.ne.s32.totalorder %s299, %s313
      %p315 = scmp.eq.s32.totalorder %s37, 0
      %p316 = por %p314, %p315
      %s317 = ssub.s32 %s31, %s38
      %p318 = scmp.eq.s32.totalorder %s317, 0
      %s320 = sadd.s32 %s319, 1
      %s321 = scalar_select %p318, %s319, %s320
      %p324 = pneg %p318
      %p325 = scmp.eq.s32.totalorder %s31, 1
      %p326 = por %p324, %p325
      %p327 = scmp.ne.s32.totalorder %s319, %s322
      %p328 = scmp.eq.s32.totalorder %s31, 0
      %p329 = por %p327, %p328
      %p330 = scmp.ne.s32.totalorder %s319, %s322
      %p331 = scmp.eq.s32.totalorder %s36, 1
      %p332 = por %p330, %p331
      %p333 = scmp.ne.s32.totalorder %s322, %s323
      %p334 = scmp.eq.s32.totalorder %s36, 0
      %p335 = por %p333, %p334
      %p336 = scmp.ne.s32.totalorder %s322, %s323
      %p337 = scmp.eq.s32.totalorder %s37, 1
      %p338 = por %p336, %p337
      %p340 = scmp.ne.s32.totalorder %s323, %s339
      %p341 = scmp.eq.s32.totalorder %s37, 0
      %p342 = por %p340, %p341
      %p343 = scmp.le.s32.totalorder 1, %s31
      %p344 = scmp.lt.s32.totalorder %s31, 3
      %p345 = pnand %p343, %p344
      %p346 = pneg %p345
      // Predicated region
      $region9: #{tpu_custom_call.1} parent=5 // pred_check
        _
      $region10: #{tpu_custom_call.1} parent=5 // pred_check_branch
        %348 = sbr.rel (%p345) target = $region12
      $region11: #{tpu_custom_call.1} parent=5 // pred_region
        %s349 = ssub.s32 %s31, 1
        // Predicated region
        $region13: #{tpu_custom_call.1} parent=11 // pred_check
          %p350 = pneg %p78
        $region14: #{tpu_custom_call.1} parent=11 // pred_check_branch
          %352 = sbr.rel (%p350) target = $region16
        $region15: #{tpu_custom_call.1} parent=11 // pred_region
          %s354 = ssub.s32 16, 16
          %355 = vsyncadd [#allocation6], %s354
          %s357 = sshll.u32 [#allocation5], 4
          %s358 = int_to_ptr.vmem [resolvable:$true] %s357
          %360 = dma.hbm_to_vmem [thread:$0]  %s1, 16, %s358, [#allocation6]
        $region16: #{tpu_custom_call.1} parent=11 // pred_fallthru
          _
        // Predicated region
        $region17: #{tpu_custom_call.1} parent=11 // pred_check
          %p361 = pneg %p99
        $region18: #{tpu_custom_call.1} parent=11 // pred_check_branch
          %363 = sbr.rel (%p361) target = $region20
        $region19: #{tpu_custom_call.1} parent=11 // pred_region
          %s365 = ssub.s32 16, 16
          %366 = vsyncadd [#allocation6], %s365
          %s368 = sshll.u32 [#allocation7], 4
          %s369 = int_to_ptr.vmem [resolvable:$true] %s368
          %371 = dma.hbm_to_vmem [thread:$0]  %s2, 16, %s369, [#allocation6]
        $region20: #{tpu_custom_call.1} parent=11 // pred_fallthru
          _
        // Predicated region
        $region21: #{tpu_custom_call.1} parent=11 // pred_check
          %p372 = pneg %p120
        $region22: #{tpu_custom_call.1} parent=11 // pred_check_branch
          %374 = sbr.rel (%p372) target = $region24
        $region23: #{tpu_custom_call.1} parent=11 // pred_region
          %s376 = ssub.s32 3072, 3072
          %377 = vsyncadd [#allocation9], %s376
          %s378 = sshll.u32 [#allocation8], 4
          %s379 = int_to_ptr.vmem [resolvable:$true] %s378
          %384 = dma.hbm_to_vmem [thread:$0]  %s3, 3072, %s379, [#allocation9], 192, 192, 12
        $region24: #{tpu_custom_call.1} parent=11 // pred_fallthru
          _
        // Predicated region
        $region25: #{tpu_custom_call.1} parent=11 // pred_check
          %p385 = pneg %p141
        $region26: #{tpu_custom_call.1} parent=11 // pred_check_branch
          %387 = sbr.rel (%p385) target = $region28
        $region27: #{tpu_custom_call.1} parent=11 // pred_region
          %s389 = ssub.s32 48, 48
          %390 = vsyncadd [#allocation9], %s389
          %s392 = sshll.u32 [#allocation10], 4
          %s393 = int_to_ptr.vmem [resolvable:$true] %s392
          %395 = dma.hbm_to_vmem [thread:$0]  %s4, 48, %s393, [#allocation9]
        $region28: #{tpu_custom_call.1} parent=11 // pred_fallthru
          _
        // Predicated region
        $region29: #{tpu_custom_call.1} parent=11 // pred_check
          %p396 = pneg %p162
        $region30: #{tpu_custom_call.1} parent=11 // pred_check_branch
          %398 = sbr.rel (%p396) target = $region32
        $region31: #{tpu_custom_call.1} parent=11 // pred_region
          %s400 = ssub.s32 1024, 1024
          %401 = vsyncadd [#allocation12], %s400
          %s402 = sshll.u32 [#allocation11], 4
          %s403 = int_to_ptr.vmem [resolvable:$true] %s402
          %408 = dma.hbm_to_vmem [thread:$0]  %s5, 1024, %s403, [#allocation12], 64, 64, 4
        $region32: #{tpu_custom_call.1} parent=11 // pred_fallthru
          _
        // Predicated region
        $region33: #{tpu_custom_call.1} parent=11 // pred_check
          %p409 = pneg %p183
        $region34: #{tpu_custom_call.1} parent=11 // pred_check_branch
          %411 = sbr.rel (%p409) target = $region36
        $region35: #{tpu_custom_call.1} parent=11 // pred_region
          %s413 = ssub.s32 16, 16
          %414 = vsyncadd [#allocation12], %s413
          %s416 = sshll.u32 [#allocation13], 4
          %s417 = int_to_ptr.vmem [resolvable:$true] %s416
          %419 = dma.hbm_to_vmem [thread:$0]  %s6, 16, %s417, [#allocation12]
        $region36: #{tpu_custom_call.1} parent=11 // pred_fallthru
          _
        // Predicated region
        $region37: #{tpu_custom_call.1} parent=11 // pred_check
          %p420 = pneg %p204
        $region38: #{tpu_custom_call.1} parent=11 // pred_check_branch
          %422 = sbr.rel (%p420) target = $region40
        $region39: #{tpu_custom_call.1} parent=11 // pred_region
          %s424 = ssub.s32 16, 16
          %425 = vsyncadd [#allocation15], %s424
          %s427 = sshll.u32 [#allocation14], 4
          %s428 = int_to_ptr.vmem [resolvable:$true] %s427
          %430 = dma.hbm_to_vmem [thread:$0]  %s7, 16, %s428, [#allocation15]
        $region40: #{tpu_custom_call.1} parent=11 // pred_fallthru
          _
        // Predicated region
        $region41: #{tpu_custom_call.1} parent=11 // pred_check
          %p431 = pneg %p225
        $region42: #{tpu_custom_call.1} parent=11 // pred_check_branch
          %433 = sbr.rel (%p431) target = $region44
        $region43: #{tpu_custom_call.1} parent=11 // pred_region
          %s435 = ssub.s32 16, 16
          %436 = vsyncadd [#allocation15], %s435
          %s438 = sshll.u32 [#allocation16], 4
          %s439 = int_to_ptr.vmem [resolvable:$true] %s438
          %441 = dma.hbm_to_vmem [thread:$0]  %s8, 16, %s439, [#allocation15]
        $region44: #{tpu_custom_call.1} parent=11 // pred_fallthru
          _
        // Predicated region
        $region45: #{tpu_custom_call.1} parent=11 // pred_check
          %p442 = pneg %p246
        $region46: #{tpu_custom_call.1} parent=11 // pred_check_branch
          %444 = sbr.rel (%p442) target = $region48
        $region47: #{tpu_custom_call.1} parent=11 // pred_region
          %s446 = ssub.s32 4096, 4096
          %447 = vsyncadd [#allocation18], %s446
          %s448 = sshll.u32 [#allocation17], 4
          %s449 = int_to_ptr.vmem [resolvable:$true] %s448
          %454 = dma.hbm_to_vmem [thread:$0]  %s9, 4096, %s449, [#allocation18], 256, 256, 16
        $region48: #{tpu_custom_call.1} parent=11 // pred_fallthru
          _
        // Predicated region
        $region49: #{tpu_custom_call.1} parent=11 // pred_check
          %p455 = pneg %p267
        $region50: #{tpu_custom_call.1} parent=11 // pred_check_branch
          %457 = sbr.rel (%p455) target = $region52
        $region51: #{tpu_custom_call.1} parent=11 // pred_region
          %s459 = ssub.s32 64, 64
          %460 = vsyncadd [#allocation18], %s459
          %s462 = sshll.u32 [#allocation19], 4
          %s463 = int_to_ptr.vmem [resolvable:$true] %s462
          %465 = dma.hbm_to_vmem [thread:$0]  %s10, 64, %s463, [#allocation18]
        $region52: #{tpu_custom_call.1} parent=11 // pred_fallthru
          _
        // Predicated region
        $region53: #{tpu_custom_call.1} parent=11 // pred_check
          %p466 = pneg %p288
        $region54: #{tpu_custom_call.1} parent=11 // pred_check_branch
          %468 = sbr.rel (%p466) target = $region56
        $region55: #{tpu_custom_call.1} parent=11 // pred_region
          %s470 = ssub.s32 4096, 4096
          %471 = vsyncadd [#allocation21], %s470
          %s472 = sshll.u32 [#allocation20], 4
          %s473 = int_to_ptr.vmem [resolvable:$true] %s472
          %478 = dma.hbm_to_vmem [thread:$0]  %s11, 4096, %s473, [#allocation21], 64, 64, 4
        $region56: #{tpu_custom_call.1} parent=11 // pred_fallthru
          _
        // Predicated region
        $region57: #{tpu_custom_call.1} parent=11 // pred_check
          %p479 = pneg %p309
        $region58: #{tpu_custom_call.1} parent=11 // pred_check_branch
          %481 = sbr.rel (%p479) target = $region60
        $region59: #{tpu_custom_call.1} parent=11 // pred_region
          %s483 = ssub.s32 16, 16
          %484 = vsyncadd [#allocation21], %s483
          %s486 = sshll.u32 [#allocation22], 4
          %s487 = int_to_ptr.vmem [resolvable:$true] %s486
          %489 = dma.hbm_to_vmem [thread:$0]  %s12, 16, %s487, [#allocation21]
        $region60: #{tpu_custom_call.1} parent=11 // pred_fallthru
          _
      $region12: #{tpu_custom_call.1} parent=5 // pred_fallthru
        _
      %p490 = scmp.lt.s32.totalorder %s31, 2
      // Predicated region
      $region61: #{tpu_custom_call.1} parent=5 // pred_check
        %p491 = pneg %p490
      $region62: #{tpu_custom_call.1} parent=5 // pred_check_branch
        %493 = sbr.rel (%p491) target = $region64
      $region63: #{tpu_custom_call.1} parent=5 // pred_region
        // Predicated region
        $region65: #{tpu_custom_call.1} parent=63 // pred_check
          %p494 = pneg %p51
        $region66: #{tpu_custom_call.1} parent=63 // pred_check_branch
          %496 = sbr.rel (%p494) target = $region68
        $region67: #{tpu_custom_call.1} parent=63 // pred_region
          %s497 = sand.u32 %s41, 1
          %s498 = scalar_lea.sflag [#allocation3], %s497
          %s499 = sand.u32 %s41, 1
          %s500 = smul.addr %s499, 16
          %s501 = scalar_lea.vmem [#allocation2], %s500
          %s503 = ssub.s32 256, 256
          %504 = vsyncadd %s498, %s503
          %s505 = smul.addr %s31, 2
          %s506 = smul.addr %s505, 128
          %s507 = scalar_lea.hbm %s0, %s506
          %s508 = sshll.u32 %s501, 4
          %s509 = int_to_ptr.vmem [resolvable:$true] %s508
          %514 = dma.hbm_to_vmem [thread:$0]  %s507, 256, %s509, %s498, 128, 128, 8
        $region68: #{tpu_custom_call.1} parent=63 // pred_fallthru
          _
      $region64: #{tpu_custom_call.1} parent=5 // pred_fallthru
        _
      %p515 = scmp.le.s32.totalorder 1, %s31
      %p516 = scmp.lt.s32.totalorder %s31, 3
      %p517 = pnand %p515, %p516
      %p518 = pneg %p517
      // Predicated region
      $region69: #{tpu_custom_call.1} parent=5 // pred_check
        _
      $region70: #{tpu_custom_call.1} parent=5 // pred_check_branch
        %520 = sbr.rel (%p517) target = $region72
      $region71: #{tpu_custom_call.1} parent=5 // pred_region
        %s521 = ssub.s32 %s31, 1
        %s522 = sand.u32 %s44, 1
        %s523 = scalar_lea.sflag [#allocation3], %s522
        %s524 = sand.u32 %s44, 1
        %s525 = smul.addr %s524, 16
        %s526 = scalar_lea.vmem [#allocation2], %s525
        // Predicated region
        $region73: #{tpu_custom_call.1} parent=71 // pred_check
          %p527 = pneg %p57
        $region74: #{tpu_custom_call.1} parent=71 // pred_check_branch
          %529 = sbr.rel (%p527) target = $region76
        $region75: #{tpu_custom_call.1} parent=71 // pred_region
          %530 = dma.done %s523, 256
        $region76: #{tpu_custom_call.1} parent=71 // pred_fallthru
          _
        // Predicated region
        $region77: #{tpu_custom_call.1} parent=71 // pred_check
          %p531 = pneg %p78
        $region78: #{tpu_custom_call.1} parent=71 // pred_check_branch
          %533 = sbr.rel (%p531) target = $region80
        $region79: #{tpu_custom_call.1} parent=71 // pred_region
          %534 = dma.done [#allocation6], 16
        $region80: #{tpu_custom_call.1} parent=71 // pred_fallthru
          _
        // Predicated region
        $region81: #{tpu_custom_call.1} parent=71 // pred_check
          %p535 = pneg %p99
        $region82: #{tpu_custom_call.1} parent=71 // pred_check_branch
          %537 = sbr.rel (%p535) target = $region84
        $region83: #{tpu_custom_call.1} parent=71 // pred_region
          %538 = dma.done [#allocation6], 16
        $region84: #{tpu_custom_call.1} parent=71 // pred_fallthru
          _
        // Predicated region
        $region85: #{tpu_custom_call.1} parent=71 // pred_check
          %p539 = pneg %p120
        $region86: #{tpu_custom_call.1} parent=71 // pred_check_branch
          %541 = sbr.rel (%p539) target = $region88
        $region87: #{tpu_custom_call.1} parent=71 // pred_region
          %542 = dma.done [#allocation9], 3072
        $region88: #{tpu_custom_call.1} parent=71 // pred_fallthru
          _
        // Predicated region
        $region89: #{tpu_custom_call.1} parent=71 // pred_check
          %p543 = pneg %p141
        $region90: #{tpu_custom_call.1} parent=71 // pred_check_branch
          %545 = sbr.rel (%p543) target = $region92
        $region91: #{tpu_custom_call.1} parent=71 // pred_region
          %546 = dma.done [#allocation9], 48
        $region92: #{tpu_custom_call.1} parent=71 // pred_fallthru
          _
        // Predicated region
        $region93: #{tpu_custom_call.1} parent=71 // pred_check
          %p547 = pneg %p162
        $region94: #{tpu_custom_call.1} parent=71 // pred_check_branch
          %549 = sbr.rel (%p547) target = $region96
        $region95: #{tpu_custom_call.1} parent=71 // pred_region
          %550 = dma.done [#allocation12], 1024
        $region96: #{tpu_custom_call.1} parent=71 // pred_fallthru
          _
        // Predicated region
        $region97: #{tpu_custom_call.1} parent=71 // pred_check
          %p551 = pneg %p183
        $region98: #{tpu_custom_call.1} parent=71 // pred_check_branch
          %553 = sbr.rel (%p551) target = $region100
        $region99: #{tpu_custom_call.1} parent=71 // pred_region
          %554 = dma.done [#allocation12], 16
        $region100: #{tpu_custom_call.1} parent=71 // pred_fallthru
          _
        // Predicated region
        $region101: #{tpu_custom_call.1} parent=71 // pred_check
          %p555 = pneg %p204
        $region102: #{tpu_custom_call.1} parent=71 // pred_check_branch
          %557 = sbr.rel (%p555) target = $region104
        $region103: #{tpu_custom_call.1} parent=71 // pred_region
          %558 = dma.done [#allocation15], 16
        $region104: #{tpu_custom_call.1} parent=71 // pred_fallthru
          _
        // Predicated region
        $region105: #{tpu_custom_call.1} parent=71 // pred_check
          %p559 = pneg %p225
        $region106: #{tpu_custom_call.1} parent=71 // pred_check_branch
          %561 = sbr.rel (%p559) target = $region108
        $region107: #{tpu_custom_call.1} parent=71 // pred_region
          %562 = dma.done [#allocation15], 16
        $region108: #{tpu_custom_call.1} parent=71 // pred_fallthru
          _
        // Predicated region
        $region109: #{tpu_custom_call.1} parent=71 // pred_check
          %p563 = pneg %p246
        $region110: #{tpu_custom_call.1} parent=71 // pred_check_branch
          %565 = sbr.rel (%p563) target = $region112
        $region111: #{tpu_custom_call.1} parent=71 // pred_region
          %566 = dma.done [#allocation18], 4096
        $region112: #{tpu_custom_call.1} parent=71 // pred_fallthru
          _
        // Predicated region
        $region113: #{tpu_custom_call.1} parent=71 // pred_check
          %p567 = pneg %p267
        $region114: #{tpu_custom_call.1} parent=71 // pred_check_branch
          %569 = sbr.rel (%p567) target = $region116
        $region115: #{tpu_custom_call.1} parent=71 // pred_region
          %570 = dma.done [#allocation18], 64
        $region116: #{tpu_custom_call.1} parent=71 // pred_fallthru
          _
        // Predicated region
        $region117: #{tpu_custom_call.1} parent=71 // pred_check
          %p571 = pneg %p288
        $region118: #{tpu_custom_call.1} parent=71 // pred_check_branch
          %573 = sbr.rel (%p571) target = $region120
        $region119: #{tpu_custom_call.1} parent=71 // pred_region
          %574 = dma.done [#allocation21], 4096
        $region120: #{tpu_custom_call.1} parent=71 // pred_fallthru
          _
        // Predicated region
        $region121: #{tpu_custom_call.1} parent=71 // pred_check
          %p575 = pneg %p309
        $region122: #{tpu_custom_call.1} parent=71 // pred_check_branch
          %577 = sbr.rel (%p575) target = $region124
        $region123: #{tpu_custom_call.1} parent=71 // pred_region
          %578 = dma.done [#allocation21], 16
        $region124: #{tpu_custom_call.1} parent=71 // pred_fallthru
          _
        %s579 = sand.u32 %s44, 1
        %s580 = scalar_lea.sflag [#allocation3], %s579
        %s581 = sand.u32 %s44, 1
        %s582 = smul.addr %s581, 16
        %s583 = scalar_lea.vmem [#allocation2], %s582
        %p584 = pneg %p57
        %p585 = pneg %p54
        %p586 = pneg %p78
        %p587 = pneg %p75
        %p588 = pneg %p99
        %p589 = pneg %p96
        %p590 = pneg %p120
        %p591 = pneg %p117
        %p592 = pneg %p141
        %p593 = pneg %p138
        %p594 = pneg %p162
        %p595 = pneg %p159
        %p596 = pneg %p183
        %p597 = pneg %p180
        %p598 = pneg %p204
        %p599 = pneg %p201
        %p600 = pneg %p225
        %p601 = pneg %p222
        %p602 = pneg %p246
        %p603 = pneg %p243
        %p604 = pneg %p267
        %p605 = pneg %p264
        %p606 = pneg %p288
        %p607 = pneg %p285
        %p608 = pneg %p309
        %p609 = pneg %p306
        %p610 = pneg %p335
        %p611 = pneg %p332
        %s612 = sand.u32 %s322, 1
        %s613 = scalar_lea.sflag [#allocation4], %s612
        %s614 = sand.u32 %s322, 1
        %s615 = smul.addr %s614, 16
        %s616 = scalar_lea.vmem [#allocation23], %s615
        %v618 = vld [vmem:[%s526] sm:$0xff]
        %v619 = vld [vmem:[%s526 + $0x8] sm:$0xff]
        %v620 = vld [vmem:[#allocation5] sm:$0x1]
        %v621 = vld [vmem:[#allocation7] sm:$0x1]
        %622 = vadd.xlane.f32.xlu0 %v618
        %v623 = vpop.xlane.xlu0 %622
        %624 = vadd.xlane.f32.xlu0 %v619
        %v625 = vpop.xlane.xlu0 %624
        %v626 = vrcp.pop 128.0
        %v627 = vmul.f32 %v623, %v626
        %v628 = vmul.f32 %v625, %v626
        %v629 = vsub.f32 %v618, %v627
        %v630 = vsub.f32 %v619, %v628
        %v631 = vmul.f32 %v629, %v629
        %v632 = vmul.f32 %v630, %v630
        %633 = vadd.xlane.f32.xlu0 %v631
        %v634 = vpop.xlane.xlu0 %633
        %635 = vadd.xlane.f32.xlu0 %v632
        %v636 = vpop.xlane.xlu0 %635
        %v637 = vmul.f32 %v634, %v626
        %v638 = vmul.f32 %v636, %v626
        %v639 = vadd.f32 %v637, 1e-05
        %v640 = vadd.f32 %v638, 1e-05
        %v641 = vrsqrt.pop %v639
        %v642 = vrsqrt.pop %v640
        %v643 = vmul.f32 %v629, %v641
        %v644 = vmul.f32 %v630, %v642
        %v646 = vlaneseq
        %v647 = vshrl.u32 %v646, 7
        %v648 = vsub.s32 0, %v647
        %v649 = vrot.slane %v620, %v648
        %v651 = vmul.f32 %v643, %v649
        %v652 = vmul.f32 %v644, %v649
        %v654 = vlaneseq
        %v655 = vshrl.u32 %v654, 7
        %v656 = vsub.s32 0, %v655
        %v657 = vrot.slane %v621, %v656
        %v659 = vadd.f32 %v651, %v657
        %v660 = vadd.f32 %v652, %v657
        %v661 = vpack.c.bf16 %v660, %v659
        %v662 = vld [vmem:[#allocation8] sm:$0xff]
        %v663 = vld [vmem:[#allocation8 + $0x8] sm:$0xf]
        %v664 = vld [vmem:[#allocation8 + $0xc] sm:$0xff]
        %v665 = vld [vmem:[#allocation8 + $0x14] sm:$0xf]
        %v666 = vld [vmem:[#allocation8 + $0x18] sm:$0xff]
        %v667 = vld [vmem:[#allocation8 + $0x20] sm:$0xf]
        %v668 = vld [vmem:[#allocation8 + $0x24] sm:$0xff]
        %v669 = vld [vmem:[#allocation8 + $0x2c] sm:$0xf]
        %v670 = vld [vmem:[#allocation8 + $0x30] sm:$0xff]
        %v671 = vld [vmem:[#allocation8 + $0x38] sm:$0xf]
        %v672 = vld [vmem:[#allocation8 + $0x3c] sm:$0xff]
        %v673 = vld [vmem:[#allocation8 + $0x44] sm:$0xf]
        %v674 = vld [vmem:[#allocation8 + $0x48] sm:$0xff]
        %v675 = vld [vmem:[#allocation8 + $0x50] sm:$0xf]
        %v676 = vld [vmem:[#allocation8 + $0x54] sm:$0xff]
        %v677 = vld [vmem:[#allocation8 + $0x5c] sm:$0xf]
        %v678 = vld [vmem:[#allocation8 + $0x60] sm:$0xff]
        %v679 = vld [vmem:[#allocation8 + $0x68] sm:$0xf]
        %v680 = vld [vmem:[#allocation8 + $0x6c] sm:$0xff]
        %v681 = vld [vmem:[#allocation8 + $0x74] sm:$0xf]
        %v682 = vld [vmem:[#allocation8 + $0x78] sm:$0xff]
        %v683 = vld [vmem:[#allocation8 + $0x80] sm:$0xf]
        %v684 = vld [vmem:[#allocation8 + $0x84] sm:$0xff]
        %v685 = vld [vmem:[#allocation8 + $0x8c] sm:$0xf]
        %v686 = vld [vmem:[#allocation8 + $0x90] sm:$0xff]
        %v687 = vld [vmem:[#allocation8 + $0x98] sm:$0xf]
        %v688 = vld [vmem:[#allocation8 + $0x9c] sm:$0xff]
        %v689 = vld [vmem:[#allocation8 + $0xa4] sm:$0xf]
        %v690 = vld [vmem:[#allocation8 + $0xa8] sm:$0xff]
        %v691 = vld [vmem:[#allocation8 + $0xb0] sm:$0xf]
        %v692 = vld [vmem:[#allocation8 + $0xb4] sm:$0xff]
        %v693 = vld [vmem:[#allocation8 + $0xbc] sm:$0xf]
        %v694 = vld [vmem:[#allocation10] sm:$0x7]
        %v696 = vlaneseq
        %v697 = vshrl.u32 %v696, 7
        %v698 = vsub.s32 0, %v697
        %v699 = vrot.slane %v694, %v698
        %v700 = vlaneseq
        %v701 = vshrl.u32 %v700, 7
        %v702 = vsub.s32 1, %v701
        %v703 = vrot.slane %v694, %v702
        %v704 = vlaneseq
        %v705 = vshrl.u32 %v704, 7
        %v706 = vsub.s32 2, %v705
        %v707 = vrot.slane %v694, %v706
        %v743 = vunpack.c.l.b16 %v662
        %v744 = vunpack.c.h.b16 %v662
        %v745 = vunpack.c.l.b16 %v663
        %v746 = vunpack.c.l.b16 %v664
        %v747 = vunpack.c.h.b16 %v664
        %v748 = vunpack.c.l.b16 %v665
        %v749 = vunpack.c.l.b16 %v666
        %v750 = vunpack.c.h.b16 %v666
        %v751 = vunpack.c.l.b16 %v667
        %v752 = vunpack.c.l.b16 %v668
        %v753 = vunpack.c.h.b16 %v668
        %v754 = vunpack.c.l.b16 %v669
        %v755 = vunpack.c.l.b16 %v670
        %v756 = vunpack.c.h.b16 %v670
        %v757 = vunpack.c.l.b16 %v671
        %v758 = vunpack.c.l.b16 %v672
        %v759 = vunpack.c.h.b16 %v672
        %v760 = vunpack.c.l.b16 %v673
        %v761 = vunpack.c.l.b16 %v674
        %v762 = vunpack.c.h.b16 %v674
        %v763 = vunpack.c.l.b16 %v675
        %v764 = vunpack.c.l.b16 %v676
        %v765 = vunpack.c.h.b16 %v676
        %v766 = vunpack.c.l.b16 %v677
        %v767 = vunpack.c.l.b16 %v678
        %v768 = vunpack.c.h.b16 %v678
        %v769 = vunpack.c.l.b16 %v679
        %v770 = vunpack.c.l.b16 %v680
        %v771 = vunpack.c.h.b16 %v680
        %v772 = vunpack.c.l.b16 %v681
        %v773 = vunpack.c.l.b16 %v682
        %v774 = vunpack.c.h.b16 %v682
        %v775 = vunpack.c.l.b16 %v683
        %v776 = vunpack.c.l.b16 %v684
        %v777 = vunpack.c.h.b16 %v684
        %v778 = vunpack.c.l.b16 %v685
        %v779 = vunpack.c.l.b16 %v686
        %v780 = vunpack.c.h.b16 %v686
        %v781 = vunpack.c.l.b16 %v687
        %v782 = vunpack.c.l.b16 %v688
        %v783 = vunpack.c.h.b16 %v688
        %v784 = vunpack.c.l.b16 %v689
        %v785 = vunpack.c.l.b16 %v690
        %v786 = vunpack.c.h.b16 %v690
        %v787 = vunpack.c.l.b16 %v691
        %v788 = vunpack.c.l.b16 %v692
        %v789 = vunpack.c.h.b16 %v692
        %v790 = vunpack.c.l.b16 %v693
        %v791 = vpack.c.b16 %v746, %v743
        %v792 = vpack.c.b16 %v747, %v744
        %v793 = vpack.c.b16 %v748, %v745
        %v794 = vpack.c.b16 %v752, %v749
        %v795 = vpack.c.b16 %v753, %v750
        %v796 = vpack.c.b16 %v754, %v751
        %v797 = vpack.c.b16 %v758, %v755
        %v798 = vpack.c.b16 %v759, %v756
        %v799 = vpack.c.b16 %v760, %v757
        %v800 = vpack.c.b16 %v764, %v761
        %v801 = vpack.c.b16 %v765, %v762
        %v802 = vpack.c.b16 %v766, %v763
        %v803 = vpack.c.b16 %v770, %v767
        %v804 = vpack.c.b16 %v771, %v768
        %v805 = vpack.c.b16 %v772, %v769
        %v806 = vpack.c.b16 %v776, %v773
        %v807 = vpack.c.b16 %v777, %v774
        %v808 = vpack.c.b16 %v778, %v775
        %v809 = vpack.c.b16 %v782, %v779
        %v810 = vpack.c.b16 %v783, %v780
        %v811 = vpack.c.b16 %v784, %v781
        %v812 = vpack.c.b16 %v788, %v785
        %v813 = vpack.c.b16 %v789, %v786
        %v814 = vpack.c.b16 %v790, %v787
        %839 = vmatprep.subr.bf16.mxu0 %v792
        %840 = vmatpush1.bf16.msra.mxu0 %v791
        %841 = vmatprep.subr.bf16.mxu0 %v795
        %842 = vmatpush1.bf16.msra.mxu0 %v794
        %843 = vmatprep.subr.bf16.mxu0 %v798
        %844 = vmatpush1.bf16.msra.mxu0 %v797
        %845 = vmatprep.subr.bf16.mxu0 %v801
        %846 = vmatpush1.bf16.msra.mxu0 %v800
        %847 = vmatprep.subr.bf16.mxu0 %v804
        %848 = vmatpush1.bf16.msra.mxu0 %v803
        %849 = vmatprep.subr.bf16.mxu0 %v807
        %850 = vmatpush1.bf16.msra.mxu0 %v806
        %851 = vmatprep.subr.bf16.mxu0 %v810
        %852 = vmatpush1.bf16.msra.mxu0 %v809
        %853 = vmatprep.subr.bf16.mxu0 %v813
        %854 = vmatpush1.bf16.msra.mxu0 %v812
        %855 = vmatprep.subr.bf16.mxu0 0
        %856 = vmatpush1.bf16.msra.mxu0 0
        %857 = vmatprep.subr.bf16.mxu0 0
        %858 = vmatpush1.bf16.msra.mxu0 0
        %859 = vmatprep.subr.bf16.mxu0 0
        %860 = vmatpush1.bf16.msra.mxu0 0
        %861 = vmatprep.subr.bf16.mxu0 0
        %862 = vmatpush1.bf16.msra.mxu0 0
        %863 = vmatprep.subr.bf16.mxu0 0
        %864 = vmatpush1.bf16.msra.mxu0 0
        %865 = vmatprep.subr.bf16.mxu0 0
        %866 = vmatpush1.bf16.msra.mxu0 0
        %867 = vmatprep.subr.bf16.mxu0 0
        %868 = vmatpush1.bf16.msra.mxu0 0
        %869 = vmatprep.subr.bf16.mxu0 0
        %870 = vmatpush1.bf16.msra.mxu0 0
        %871 = vmatprep.mubr.bf16.mxu0 0
        %872 = vmatmul.mubr.bf16.gmra.mrb[0].mxu0 %v661
        %v873 = vpop.f32.mrb[0].mxu0
        %v874 = vadd.f32 %v699, %v873
        %v875 = vpop.f32.mrb[0].mxu0
        %v876 = vadd.f32 %v703, %v875
        %v877 = vpop.f32.mrb[0].mxu0
        %v878 = vadd.f32 %v699, %v877
        %v879 = vpop.f32.mrb[0].mxu0
        %v880 = vadd.f32 %v703, %v879
        %881 = vdwg.mxu0
        %882 = vmatprep.subr.bf16.mxu0 0
        %883 = vmatpush1.bf16.msra.mxu0 %v793
        %884 = vmatprep.subr.bf16.mxu0 0
        %885 = vmatpush1.bf16.msra.mxu0 %v796
        %886 = vmatprep.subr.bf16.mxu0 0
        %887 = vmatpush1.bf16.msra.mxu0 %v799
        %888 = vmatprep.subr.bf16.mxu0 0
        %889 = vmatpush1.bf16.msra.mxu0 %v802
        %890 = vmatprep.subr.bf16.mxu0 0
        %891 = vmatpush1.bf16.msra.mxu0 %v805
        %892 = vmatprep.subr.bf16.mxu0 0
        %893 = vmatpush1.bf16.msra.mxu0 %v808
        %894 = vmatprep.subr.bf16.mxu0 0
        %895 = vmatpush1.bf16.msra.mxu0 %v811
        %896 = vmatprep.subr.bf16.mxu0 0
        %897 = vmatpush1.bf16.msra.mxu0 %v814
        %898 = vmatprep.subr.bf16.mxu0 0
        %899 = vmatpush1.bf16.msra.mxu0 0
        %900 = vmatprep.subr.bf16.mxu0 0
        %901 = vmatpush1.bf16.msra.mxu0 0
        %902 = vmatprep.subr.bf16.mxu0 0
        %903 = vmatpush1.bf16.msra.mxu0 0
        %904 = vmatprep.subr.bf16.mxu0 0
        %905 = vmatpush1.bf16.msra.mxu0 0
        %906 = vmatprep.subr.bf16.mxu0 0
        %907 = vmatpush1.bf16.msra.mxu0 0
        %908 = vmatprep.subr.bf16.mxu0 0
        %909 = vmatpush1.bf16.msra.mxu0 0
        %910 = vmatprep.subr.bf16.mxu0 0
        %911 = vmatpush1.bf16.msra.mxu0 0
        %912 = vmatprep.subr.bf16.mxu0 0
        %913 = vmatpush1.bf16.msra.mxu0 0
        %914 = vmatprep.mubr.bf16.mxu0 0
        %915 = vmatmul.mubr.bf16.gmra.mrb[0].mxu0 %v661
        %v916 = vpop.f32.mrb[0].mxu0
        %v917 = vadd.f32 %v707, %v916
        %v918 = vpop.f32.mrb[0].mxu0
        %v919 = vpop.f32.mrb[0].mxu0
        %v920 = vadd.f32 %v707, %v919
        %v921 = vpop.f32.mrb[0].mxu0
        %922 = vdwg.mxu0
        %v923 = vmul.f32 %v874, 0.17677669
        %v924 = vmul.f32 %v878, 0.17677669
        %v925 = vpack.c.bf16 %v924, %v923
        %v926 = vpack.c.bf16 %v880, %v876
        %v927 = vpack.c.bf16 %v920, %v917
        %v928 = vlaneseq
        %v929 = vshrl.u32 %v928, 7
        %v930 = vadd.s32 %v929, 8
        %v931 = vlaneseq
        %v932 = vand.u32 %v931, 127
        %vm933 = vcmp.gt.s32.totalorder %v932, %v929
        %vm934 = vcmp.gt.s32.totalorder %v932, %v930
        %vm935 = vcmask 261120
        %v937 = vsel %vm935, %v925, 0
        %v940 = vsel %vm935, %v926, 0
        %942 = vmatprep.subr.bf16.mxu0 0
        %943 = vmatpush1.bf16.xpose.msra.mxu0 %v940
        %944 = vmatprep.subr.bf16.mxu0 0
        %945 = vmatpush1.bf16.xpose.msra.mxu0 0
        %946 = vmatprep.subr.bf16.mxu0 0
        %947 = vmatpush1.bf16.xpose.msra.mxu0 0
        %948 = vmatprep.subr.bf16.mxu0 0
        %949 = vmatpush1.bf16.xpose.msra.mxu0 0
        %950 = vmatprep.subr.bf16.mxu0 0
        %951 = vmatpush1.bf16.xpose.msra.mxu0 0
        %952 = vmatprep.subr.bf16.mxu0 0
        %953 = vmatpush1.bf16.xpose.msra.mxu0 0
        %954 = vmatprep.subr.bf16.mxu0 0
        %955 = vmatpush1.bf16.xpose.msra.mxu0 0
        %956 = vmatprep.subr.bf16.mxu0 0
        %957 = vmatpush1.bf16.xpose.msra.mxu0 0
        %958 = vmatprep.subr.bf16.mxu0 0
        %959 = vmatpush1.bf16.xpose.msra.mxu0 0
        %960 = vmatprep.subr.bf16.mxu0 0
        %961 = vmatpush1.bf16.xpose.msra.mxu0 0
        %962 = vmatprep.subr.bf16.mxu0 0
        %963 = vmatpush1.bf16.xpose.msra.mxu0 0
        %964 = vmatprep.subr.bf16.mxu0 0
        %965 = vmatpush1.bf16.xpose.msra.mxu0 0
        %966 = vmatprep.subr.bf16.mxu0 0
        %967 = vmatpush1.bf16.xpose.msra.mxu0 0
        %968 = vmatprep.subr.bf16.mxu0 0
        %969 = vmatpush1.bf16.xpose.msra.mxu0 0
        %970 = vmatprep.subr.bf16.mxu0 0
        %971 = vmatpush1.bf16.xpose.msra.mxu0 0
        %972 = vmatprep.subr.bf16.mxu0 0
        %973 = vmatpush1.bf16.xpose.msra.mxu0 0
        %974 = vmatprep.mubr.bf16.mxu0 0
        %975 = vmatmul.mubr.bf16.gmra.mrb[0].mxu0 %v937
        %v976 = vpop.f32.mrb[0].mxu0
        %v977 = vadd.f32 0.0, %v976
        %v978 = vpop.f32.mrb[0].mxu0
        %v979 = vpop.f32.mrb[0].mxu0
        %v980 = vadd.f32 0.0, %v979
        %v981 = vpop.f32.mrb[0].mxu0
        %982 = vdwg.mxu0
        %v983 = vsel %vm933, -inf, %v977
        %v984 = vsel %vm934, -inf, %v980
        %vm985 = vcmask 130048
        %v986 = vsel %vm985, %v983, -inf
        %987 = vmax.xlane.f32.xlu0 %v986
        %v988 = vpop.xlane.xlu0 %987
        %v989 = vsel %vm985, %v984, -inf
        %990 = vmax.xlane.f32.xlu0 %v989
        %v991 = vpop.xlane.xlu0 %990
        %v992 = vsub.f32 %v983, %v988
        %v993 = vsub.f32 %v984, %v991
        %v994 = vmul.f32 %v992, 1.442695
        %v995 = vpow.pop %v994
        %v996 = vmul.f32 %v993, 1.442695
        %v997 = vpow.pop %v996
        %v998 = vsel %vm985, %v995, 0.0
        %999 = vadd.xlane.f32.xlu0 %v998
        %v1000 = vpop.xlane.xlu0 %999
        %v1001 = vsel %vm985, %v997, 0.0
        %1002 = vadd.xlane.f32.xlu0 %v1001
        %v1003 = vpop.xlane.xlu0 %1002
        %v1004 = vrcp.pop %v1000
        %v1005 = vrcp.pop %v1003
        %v1006 = vmul.f32 %v995, %v1004
        %v1007 = vmul.f32 %v997, %v1005
        %v1008 = vpack.c.bf16 %v1007, %v1006
        %v1010 = vsel %vm985, %v1008, 0
        %1012 = vmatprep.subr.bf16.mxu0 0
        %1013 = vmatpush1.bf16.msra.mxu0 %v927
        %1014 = vmatprep.subr.bf16.mxu0 0
        %1015 = vmatpush1.bf16.msra.mxu0 0
        %1016 = vmatprep.subr.bf16.mxu0 0
        %1017 = vmatpush1.bf16.msra.mxu0 0
        %1018 = vmatprep.subr.bf16.mxu0 0
        %1019 = vmatpush1.bf16.msra.mxu0 0
        %1020 = vmatprep.subr.bf16.mxu0 0
        %1021 = vmatpush1.bf16.msra.mxu0 0
        %1022 = vmatprep.subr.bf16.mxu0 0
        %1023 = vmatpush1.bf16.msra.mxu0 0
        %1024 = vmatprep.subr.bf16.mxu0 0
        %1025 = vmatpush1.bf16.msra.mxu0 0
        %1026 = vmatprep.subr.bf16.mxu0 0
        %1027 = vmatpush1.bf16.msra.mxu0 0
        %1028 = vmatprep.subr.bf16.mxu0 0
        %1029 = vmatpush1.bf16.msra.mxu0 0
        %1030 = vmatprep.subr.bf16.mxu0 0
        %1031 = vmatpush1.bf16.msra.mxu0 0
        %1032 = vmatprep.subr.bf16.mxu0 0
        %1033 = vmatpush1.bf16.msra.mxu0 0
        %1034 = vmatprep.subr.bf16.mxu0 0
        %1035 = vmatpush1.bf16.msra.mxu0 0
        %1036 = vmatprep.subr.bf16.mxu0 0
        %1037 = vmatpush1.bf16.msra.mxu0 0
        %1038 = vmatprep.subr.bf16.mxu0 0
        %1039 = vmatpush1.bf16.msra.mxu0 0
        %1040 = vmatprep.subr.bf16.mxu0 0
        %1041 = vmatpush1.bf16.msra.mxu0 0
        %1042 = vmatprep.subr.bf16.mxu0 0
        %1043 = vmatpush1.bf16.msra.mxu0 0
        %1044 = vmatprep.mubr.bf16.mxu0 0
        %1045 = vmatmul.mubr.bf16.gmra.mrb[0].mxu0 %v1010
        %v1046 = vpop.f32.mrb[0].mxu0
        %v1047 = vadd.f32 0.0, %v1046
        %v1048 = vpop.f32.mrb[0].mxu0
        %v1049 = vpop.f32.mrb[0].mxu0
        %v1050 = vadd.f32 0.0, %v1049
        %v1051 = vpop.f32.mrb[0].mxu0
        %1052 = vdwg.mxu0
        %1054 = vrot.lane.b32.xlu0 %v925, 96
        %v1055 = vpop.permute.xlu0 %1054
        %1057 = vrot.lane.b32.xlu0 %v926, 96
        %v1058 = vpop.permute.xlu0 %1057
        %v1060 = vsel %vm935, %v1055, 0
        %v1063 = vsel %vm935, %v1058, 0
        %1065 = vmatprep.subr.bf16.mxu0 0
        %1066 = vmatpush1.bf16.xpose.msra.mxu0 %v1063
        %1067 = vmatprep.subr.bf16.mxu0 0
        %1068 = vmatpush1.bf16.xpose.msra.mxu0 0
        %1069 = vmatprep.subr.bf16.mxu0 0
        %1070 = vmatpush1.bf16.xpose.msra.mxu0 0
        %1071 = vmatprep.subr.bf16.mxu0 0
        %1072 = vmatpush1.bf16.xpose.msra.mxu0 0
        %1073 = vmatprep.subr.bf16.mxu0 0
        %1074 = vmatpush1.bf16.xpose.msra.mxu0 0
        %1075 = vmatprep.subr.bf16.mxu0 0
        %1076 = vmatpush1.bf16.xpose.msra.mxu0 0
        %1077 = vmatprep.subr.bf16.mxu0 0
        %1078 = vmatpush1.bf16.xpose.msra.mxu0 0
        %1079 = vmatprep.subr.bf16.mxu0 0
        %1080 = vmatpush1.bf16.xpose.msra.mxu0 0
        %1081 = vmatprep.subr.bf16.mxu0 0
        %1082 = vmatpush1.bf16.xpose.msra.mxu0 0
        %1083 = vmatprep.subr.bf16.mxu0 0
        %1084 = vmatpush1.bf16.xpose.msra.mxu0 0
        %1085 = vmatprep.subr.bf16.mxu0 0
        %1086 = vmatpush1.bf16.xpose.msra.mxu0 0
        %1087 = vmatprep.subr.bf16.mxu0 0
        %1088 = vmatpush1.bf16.xpose.msra.mxu0 0
        %1089 = vmatprep.subr.bf16.mxu0 0
        %1090 = vmatpush1.bf16.xpose.msra.mxu0 0
        %1091 = vmatprep.subr.bf16.mxu0 0
        %1092 = vmatpush1.bf16.xpose.msra.mxu0 0
        %1093 = vmatprep.subr.bf16.mxu0 0
        %1094 = vmatpush1.bf16.xpose.msra.mxu0 0
        %1095 = vmatprep.subr.bf16.mxu0 0
        %1096 = vmatpush1.bf16.xpose.msra.mxu0 0
        %1097 = vmatprep.mubr.bf16.mxu0 0
        %1098 = vmatmul.mubr.bf16.gmra.mrb[0].mxu0 %v1060
        %v1099 = vpop.f32.mrb[0].mxu0
        %v1100 = vadd.f32 0.0, %v1099
        %v1101 = vpop.f32.mrb[0].mxu0
        %v1102 = vpop.f32.mrb[0].mxu0
        %v1103 = vadd.f32 0.0, %v1102
        %v1104 = vpop.f32.mrb[0].mxu0
        %1105 = vdwg.mxu0
        %v1106 = vsel %vm933, -inf, %v1100
        %v1107 = vsel %vm934, -inf, %v1103
        %v1108 = vsel %vm985, %v1106, -inf
        %1109 = vmax.xlane.f32.xlu0 %v1108
        %v1110 = vpop.xlane.xlu0 %1109
        %v1111 = vsel %vm985, %v1107, -inf
        %1112 = vmax.xlane.f32.xlu0 %v1111
        %v1113 = vpop.xlane.xlu0 %1112
        %v1114 = vsub.f32 %v1106, %v1110
        %v1115 = vsub.f32 %v1107, %v1113
        %v1116 = vmul.f32 %v1114, 1.442695
        %v1117 = vpow.pop %v1116
        %v1118 = vmul.f32 %v1115, 1.442695
        %v1119 = vpow.pop %v1118
        %v1120 = vsel %vm985, %v1117, 0.0
        %1121 = vadd.xlane.f32.xlu0 %v1120
        %v1122 = vpop.xlane.xlu0 %1121
        %v1123 = vsel %vm985, %v1119, 0.0
        %1124 = vadd.xlane.f32.xlu0 %v1123
        %v1125 = vpop.xlane.xlu0 %1124
        %v1126 = vrcp.pop %v1122
        %v1127 = vrcp.pop %v1125
        %v1128 = vmul.f32 %v1117, %v1126
        %v1129 = vmul.f32 %v1119, %v1127
        %v1130 = vpack.c.bf16 %v1129, %v1128
        %1132 = vrot.lane.b32.xlu0 %v927, 96
        %v1133 = vpop.permute.xlu0 %1132
        %v1136 = vsel %vm985, %v1130, 0
        %1138 = vmatprep.subr.bf16.mxu0 0
        %1139 = vmatpush1.bf16.msra.mxu0 %v1133
        %1140 = vmatprep.subr.bf16.mxu0 0
        %1141 = vmatpush1.bf16.msra.mxu0 0
        %1142 = vmatprep.subr.bf16.mxu0 0
        %1143 = vmatpush1.bf16.msra.mxu0 0
        %1144 = vmatprep.subr.bf16.mxu0 0
        %1145 = vmatpush1.bf16.msra.mxu0 0
        %1146 = vmatprep.subr.bf16.mxu0 0
        %1147 = vmatpush1.bf16.msra.mxu0 0
        %1148 = vmatprep.subr.bf16.mxu0 0
        %1149 = vmatpush1.bf16.msra.mxu0 0
        %1150 = vmatprep.subr.bf16.mxu0 0
        %1151 = vmatpush1.bf16.msra.mxu0 0
        %1152 = vmatprep.subr.bf16.mxu0 0
        %1153 = vmatpush1.bf16.msra.mxu0 0
        %1154 = vmatprep.subr.bf16.mxu0 0
        %1155 = vmatpush1.bf16.msra.mxu0 0
        %1156 = vmatprep.subr.bf16.mxu0 0
        %1157 = vmatpush1.bf16.msra.mxu0 0
        %1158 = vmatprep.subr.bf16.mxu0 0
        %1159 = vmatpush1.bf16.msra.mxu0 0
        %1160 = vmatprep.subr.bf16.mxu0 0
        %1161 = vmatpush1.bf16.msra.mxu0 0
        %1162 = vmatprep.subr.bf16.mxu0 0
        %1163 = vmatpush1.bf16.msra.mxu0 0
        %1164 = vmatprep.subr.bf16.mxu0 0
        %1165 = vmatpush1.bf16.msra.mxu0 0
        %1166 = vmatprep.subr.bf16.mxu0 0
        %1167 = vmatpush1.bf16.msra.mxu0 0
        %1168 = vmatprep.subr.bf16.mxu0 0
        %1169 = vmatpush1.bf16.msra.mxu0 0
        %1170 = vmatprep.mubr.bf16.mxu0 0
        %1171 = vmatmul.mubr.bf16.gmra.mrb[0].mxu0 %v1136
        %v1172 = vpop.f32.mrb[0].mxu0
        %v1173 = vadd.f32 0.0, %v1172
        %v1174 = vpop.f32.mrb[0].mxu0
        %v1175 = vpop.f32.mrb[0].mxu0
        %v1176 = vadd.f32 0.0, %v1175
        %v1177 = vpop.f32.mrb[0].mxu0
        %1178 = vdwg.mxu0
        %1179 = vrot.lane.b32.xlu0 %v925, 64
        %v1180 = vpop.permute.xlu0 %1179
        %1181 = vrot.lane.b32.xlu0 %v926, 64
        %v1182 = vpop.permute.xlu0 %1181
        %v1184 = vsel %vm935, %v1180, 0
        %v1187 = vsel %vm935, %v1182, 0
        %1189 = vmatprep.subr.bf16.mxu0 0
        %1190 = vmatpush1.bf16.xpose.msra.mxu0 %v1187
        %1191 = vmatprep.subr.bf16.mxu0 0
        %1192 = vmatpush1.bf16.xpose.msra.mxu0 0
        %1193 = vmatprep.subr.bf16.mxu0 0
        %1194 = vmatpush1.bf16.xpose.msra.mxu0 0
        %1195 = vmatprep.subr.bf16.mxu0 0
        %1196 = vmatpush1.bf16.xpose.msra.mxu0 0
        %1197 = vmatprep.subr.bf16.mxu0 0
        %1198 = vmatpush1.bf16.xpose.msra.mxu0 0
        %1199 = vmatprep.subr.bf16.mxu0 0
        %1200 = vmatpush1.bf16.xpose.msra.mxu0 0
        %1201 = vmatprep.subr.bf16.mxu0 0
        %1202 = vmatpush1.bf16.xpose.msra.mxu0 0
        %1203 = vmatprep.subr.bf16.mxu0 0
        %1204 = vmatpush1.bf16.xpose.msra.mxu0 0
        %1205 = vmatprep.subr.bf16.mxu0 0
        %1206 = vmatpush1.bf16.xpose.msra.mxu0 0
        %1207 = vmatprep.subr.bf16.mxu0 0
        %1208 = vmatpush1.bf16.xpose.msra.mxu0 0
        %1209 = vmatprep.subr.bf16.mxu0 0
        %1210 = vmatpush1.bf16.xpose.msra.mxu0 0
        %1211 = vmatprep.subr.bf16.mxu0 0
        %1212 = vmatpush1.bf16.xpose.msra.mxu0 0
        %1213 = vmatprep.subr.bf16.mxu0 0
        %1214 = vmatpush1.bf16.xpose.msra.mxu0 0
        %1215 = vmatprep.subr.bf16.mxu0 0
        %1216 = vmatpush1.bf16.xpose.msra.mxu0 0
        %1217 = vmatprep.subr.bf16.mxu0 0
        %1218 = vmatpush1.bf16.xpose.msra.mxu0 0
        %1219 = vmatprep.subr.bf16.mxu0 0
        %1220 = vmatpush1.bf16.xpose.msra.mxu0 0
        %1221 = vmatprep.mubr.bf16.mxu0 0
        %1222 = vmatmul.mubr.bf16.gmra.mrb[0].mxu0 %v1184
        %v1223 = vpop.f32.mrb[0].mxu0
        %v1224 = vadd.f32 0.0, %v1223
        %v1225 = vpop.f32.mrb[0].mxu0
        %v1226 = vpop.f32.mrb[0].mxu0
        %v1227 = vadd.f32 0.0, %v1226
        %v1228 = vpop.f32.mrb[0].mxu0
        %1229 = vdwg.mxu0
        %v1230 = vsel %vm933, -inf, %v1224
        %v1231 = vsel %vm934, -inf, %v1227
        %v1232 = vsel %vm985, %v1230, -inf
        %1233 = vmax.xlane.f32.xlu0 %v1232
        %v1234 = vpop.xlane.xlu0 %1233
        %v1235 = vsel %vm985, %v1231, -inf
        %1236 = vmax.xlane.f32.xlu0 %v1235
        %v1237 = vpop.xlane.xlu0 %1236
        %v1238 = vsub.f32 %v1230, %v1234
        %v1239 = vsub.f32 %v1231, %v1237
        %v1240 = vmul.f32 %v1238, 1.442695
        %v1241 = vpow.pop %v1240
        %v1242 = vmul.f32 %v1239, 1.442695
        %v1243 = vpow.pop %v1242
        %v1244 = vsel %vm985, %v1241, 0.0
        %1245 = vadd.xlane.f32.xlu0 %v1244
        %v1246 = vpop.xlane.xlu0 %1245
        %v1247 = vsel %vm985, %v1243, 0.0
        %1248 = vadd.xlane.f32.xlu0 %v1247
        %v1249 = vpop.xlane.xlu0 %1248
        %v1250 = vrcp.pop %v1246
        %v1251 = vrcp.pop %v1249
        %v1252 = vmul.f32 %v1241, %v1250
        %v1253 = vmul.f32 %v1243, %v1251
        %v1254 = vpack.c.bf16 %v1253, %v1252
        %1255 = vrot.lane.b32.xlu0 %v927, 64
        %v1256 = vpop.permute.xlu0 %1255
        %v1259 = vsel %vm985, %v1254, 0
        %1261 = vmatprep.subr.bf16.mxu0 0
        %1262 = vmatpush1.bf16.msra.mxu0 %v1256
        %1263 = vmatprep.subr.bf16.mxu0 0
        %1264 = vmatpush1.bf16.msra.mxu0 0
        %1265 = vmatprep.subr.bf16.mxu0 0
        %1266 = vmatpush1.bf16.msra.mxu0 0
        %1267 = vmatprep.subr.bf16.mxu0 0
        %1268 = vmatpush1.bf16.msra.mxu0 0
        %1269 = vmatprep.subr.bf16.mxu0 0
        %1270 = vmatpush1.bf16.msra.mxu0 0
        %1271 = vmatprep.subr.bf16.mxu0 0
        %1272 = vmatpush1.bf16.msra.mxu0 0
        %1273 = vmatprep.subr.bf16.mxu0 0
        %1274 = vmatpush1.bf16.msra.mxu0 0
        %1275 = vmatprep.subr.bf16.mxu0 0
        %1276 = vmatpush1.bf16.msra.mxu0 0
        %1277 = vmatprep.subr.bf16.mxu0 0
        %1278 = vmatpush1.bf16.msra.mxu0 0
        %1279 = vmatprep.subr.bf16.mxu0 0
        %1280 = vmatpush1.bf16.msra.mxu0 0
        %1281 = vmatprep.subr.bf16.mxu0 0
        %1282 = vmatpush1.bf16.msra.mxu0 0
        %1283 = vmatprep.subr.bf16.mxu0 0
        %1284 = vmatpush1.bf16.msra.mxu0 0
        %1285 = vmatprep.subr.bf16.mxu0 0
        %1286 = vmatpush1.bf16.msra.mxu0 0
        %1287 = vmatprep.subr.bf16.mxu0 0
        %1288 = vmatpush1.bf16.msra.mxu0 0
        %1289 = vmatprep.subr.bf16.mxu0 0
        %1290 = vmatpush1.bf16.msra.mxu0 0
        %1291 = vmatprep.subr.bf16.mxu0 0
        %1292 = vmatpush1.bf16.msra.mxu0 0
        %1293 = vmatprep.mubr.bf16.mxu0 0
        %1294 = vmatmul.mubr.bf16.gmra.mrb[0].mxu0 %v1259
        %v1295 = vpop.f32.mrb[0].mxu0
        %v1296 = vadd.f32 0.0, %v1295
        %v1297 = vpop.f32.mrb[0].mxu0
        %v1298 = vpop.f32.mrb[0].mxu0
        %v1299 = vadd.f32 0.0, %v1298
        %v1300 = vpop.f32.mrb[0].mxu0
        %1301 = vdwg.mxu0
        %1302 = vrot.lane.b32.xlu0 %v925, 32
        %v1303 = vpop.permute.xlu0 %1302
        %1304 = vrot.lane.b32.xlu0 %v926, 32
        %v1305 = vpop.permute.xlu0 %1304
        %v1307 = vsel %vm935, %v1303, 0
        %v1310 = vsel %vm935, %v1305, 0
        %1312 = vmatprep.subr.bf16.mxu0 0
        %1313 = vmatpush1.bf16.xpose.msra.mxu0 %v1310
        %1314 = vmatprep.subr.bf16.mxu0 0
        %1315 = vmatpush1.bf16.xpose.msra.mxu0 0
        %1316 = vmatprep.subr.bf16.mxu0 0
        %1317 = vmatpush1.bf16.xpose.msra.mxu0 0
        %1318 = vmatprep.subr.bf16.mxu0 0
        %1319 = vmatpush1.bf16.xpose.msra.mxu0 0
        %1320 = vmatprep.subr.bf16.mxu0 0
        %1321 = vmatpush1.bf16.xpose.msra.mxu0 0
        %1322 = vmatprep.subr.bf16.mxu0 0
        %1323 = vmatpush1.bf16.xpose.msra.mxu0 0
        %1324 = vmatprep.subr.bf16.mxu0 0
        %1325 = vmatpush1.bf16.xpose.msra.mxu0 0
        %1326 = vmatprep.subr.bf16.mxu0 0
        %1327 = vmatpush1.bf16.xpose.msra.mxu0 0
        %1328 = vmatprep.subr.bf16.mxu0 0
        %1329 = vmatpush1.bf16.xpose.msra.mxu0 0
        %1330 = vmatprep.subr.bf16.mxu0 0
        %1331 = vmatpush1.bf16.xpose.msra.mxu0 0
        %1332 = vmatprep.subr.bf16.mxu0 0
        %1333 = vmatpush1.bf16.xpose.msra.mxu0 0
        %1334 = vmatprep.subr.bf16.mxu0 0
        %1335 = vmatpush1.bf16.xpose.msra.mxu0 0
        %1336 = vmatprep.subr.bf16.mxu0 0
        %1337 = vmatpush1.bf16.xpose.msra.mxu0 0
        %1338 = vmatprep.subr.bf16.mxu0 0
        %1339 = vmatpush1.bf16.xpose.msra.mxu0 0
        %1340 = vmatprep.subr.bf16.mxu0 0
        %1341 = vmatpush1.bf16.xpose.msra.mxu0 0
        %1342 = vmatprep.subr.bf16.mxu0 0
        %1343 = vmatpush1.bf16.xpose.msra.mxu0 0
        %1344 = vmatprep.mubr.bf16.mxu0 0
        %1345 = vmatmul.mubr.bf16.gmra.mrb[0].mxu0 %v1307
        %v1346 = vpop.f32.mrb[0].mxu0
        %v1347 = vadd.f32 0.0, %v1346
        %v1348 = vpop.f32.mrb[0].mxu0
        %v1349 = vpop.f32.mrb[0].mxu0
        %v1350 = vadd.f32 0.0, %v1349
        %v1351 = vpop.f32.mrb[0].mxu0
        %1352 = vdwg.mxu0
        %v1353 = vsel %vm933, -inf, %v1347
        %v1354 = vsel %vm934, -inf, %v1350
        %v1355 = vsel %vm985, %v1353, -inf
        %1356 = vmax.xlane.f32.xlu0 %v1355
        %v1357 = vpop.xlane.xlu0 %1356
        %v1358 = vsel %vm985, %v1354, -inf
        %1359 = vmax.xlane.f32.xlu0 %v1358
        %v1360 = vpop.xlane.xlu0 %1359
        %v1361 = vsub.f32 %v1353, %v1357
        %v1362 = vsub.f32 %v1354, %v1360
        %v1363 = vmul.f32 %v1361, 1.442695
        %v1364 = vpow.pop %v1363
        %v1365 = vmul.f32 %v1362, 1.442695
        %v1366 = vpow.pop %v1365
        %v1367 = vsel %vm985, %v1364, 0.0
        %1368 = vadd.xlane.f32.xlu0 %v1367
        %v1369 = vpop.xlane.xlu0 %1368
        %v1370 = vsel %vm985, %v1366, 0.0
        %1371 = vadd.xlane.f32.xlu0 %v1370
        %v1372 = vpop.xlane.xlu0 %1371
        %v1373 = vrcp.pop %v1369
        %v1374 = vrcp.pop %v1372
        %v1375 = vmul.f32 %v1364, %v1373
        %v1376 = vmul.f32 %v1366, %v1374
        %v1377 = vpack.c.bf16 %v1376, %v1375
        %1378 = vrot.lane.b32.xlu0 %v927, 32
        %v1379 = vpop.permute.xlu0 %1378
        %v1382 = vsel %vm985, %v1377, 0
        %1384 = vmatprep.subr.bf16.mxu0 0
        %1385 = vmatpush1.bf16.msra.mxu0 %v1379
        %1386 = vmatprep.subr.bf16.mxu0 0
        %1387 = vmatpush1.bf16.msra.mxu0 0
        %1388 = vmatprep.subr.bf16.mxu0 0
        %1389 = vmatpush1.bf16.msra.mxu0 0
        %1390 = vmatprep.subr.bf16.mxu0 0
        %1391 = vmatpush1.bf16.msra.mxu0 0
        %1392 = vmatprep.subr.bf16.mxu0 0
        %1393 = vmatpush1.bf16.msra.mxu0 0
        %1394 = vmatprep.subr.bf16.mxu0 0
        %1395 = vmatpush1.bf16.msra.mxu0 0
        %1396 = vmatprep.subr.bf16.mxu0 0
        %1397 = vmatpush1.bf16.msra.mxu0 0
        %1398 = vmatprep.subr.bf16.mxu0 0
        %1399 = vmatpush1.bf16.msra.mxu0 0
        %1400 = vmatprep.subr.bf16.mxu0 0
        %1401 = vmatpush1.bf16.msra.mxu0 0
        %1402 = vmatprep.subr.bf16.mxu0 0
        %1403 = vmatpush1.bf16.msra.mxu0 0
        %1404 = vmatprep.subr.bf16.mxu0 0
        %1405 = vmatpush1.bf16.msra.mxu0 0
        %1406 = vmatprep.subr.bf16.mxu0 0
        %1407 = vmatpush1.bf16.msra.mxu0 0
        %1408 = vmatprep.subr.bf16.mxu0 0
        %1409 = vmatpush1.bf16.msra.mxu0 0
        %1410 = vmatprep.subr.bf16.mxu0 0
        %1411 = vmatpush1.bf16.msra.mxu0 0
        %1412 = vmatprep.subr.bf16.mxu0 0
        %1413 = vmatpush1.bf16.msra.mxu0 0
        %1414 = vmatprep.subr.bf16.mxu0 0
        %1415 = vmatpush1.bf16.msra.mxu0 0
        %1416 = vmatprep.mubr.bf16.mxu0 0
        %1417 = vmatmul.mubr.bf16.gmra.mrb[0].mxu0 %v1382
        %v1418 = vpop.f32.mrb[0].mxu0
        %v1419 = vadd.f32 0.0, %v1418
        %v1420 = vpop.f32.mrb[0].mxu0
        %v1421 = vpop.f32.mrb[0].mxu0
        %v1422 = vadd.f32 0.0, %v1421
        %v1423 = vpop.f32.mrb[0].mxu0
        %1424 = vdwg.mxu0
        %1427 = vrot.lane.b32.xlu0 %v1173, 32
        %v1428 = vpop.permute.xlu0 %1427
        %1429 = vrot.lane.b32.xlu0 %v1176, 32
        %v1430 = vpop.permute.xlu0 %1429
        %1435 = vrot.lane.b32.xlu0 %v1296, 64
        %v1436 = vpop.permute.xlu0 %1435
        %1437 = vrot.lane.b32.xlu0 %v1299, 64
        %v1438 = vpop.permute.xlu0 %1437
        %1443 = vrot.lane.b32.xlu0 %v1419, 96
        %v1444 = vpop.permute.xlu0 %1443
        %1445 = vrot.lane.b32.xlu0 %v1422, 96
        %v1446 = vpop.permute.xlu0 %1445
        %v1449 = vsel %vm935, %v1047, %v1428
        %v1450 = vsel %vm935, %v1050, %v1430
        %vm1451 = vcmask 523264
        %v1452 = vsel %vm1451, %v1449, %v1436
        %v1453 = vsel %vm1451, %v1450, %v1438
        %vm1454 = vcmask 785408
        %v1455 = vsel %vm1454, %v1452, %v1444
        %v1456 = vsel %vm1454, %v1453, %v1446
        %v1457 = vpack.c.bf16 %v1456, %v1455
        %v1458 = vld [vmem:[#allocation11] sm:$0xf]
        %v1459 = vld [vmem:[#allocation11 + $0x4] sm:$0xf]
        %v1460 = vld [vmem:[#allocation11 + $0x8] sm:$0xf]
        %v1461 = vld [vmem:[#allocation11 + $0xc] sm:$0xf]
        %v1462 = vld [vmem:[#allocation11 + $0x10] sm:$0xf]
        %v1463 = vld [vmem:[#allocation11 + $0x14] sm:$0xf]
        %v1464 = vld [vmem:[#allocation11 + $0x18] sm:$0xf]
        %v1465 = vld [vmem:[#allocation11 + $0x1c] sm:$0xf]
        %v1466 = vld [vmem:[#allocation11 + $0x20] sm:$0xf]
        %v1467 = vld [vmem:[#allocation11 + $0x24] sm:$0xf]
        %v1468 = vld [vmem:[#allocation11 + $0x28] sm:$0xf]
        %v1469 = vld [vmem:[#allocation11 + $0x2c] sm:$0xf]
        %v1470 = vld [vmem:[#allocation11 + $0x30] sm:$0xf]
        %v1471 = vld [vmem:[#allocation11 + $0x34] sm:$0xf]
        %v1472 = vld [vmem:[#allocation11 + $0x38] sm:$0xf]
        %v1473 = vld [vmem:[#allocation11 + $0x3c] sm:$0xf]
        %v1474 = vld [vmem:[#allocation13] sm:$0x1]
        %v1476 = vlaneseq
        %v1477 = vshrl.u32 %v1476, 7
        %v1478 = vsub.s32 0, %v1477
        %v1479 = vrot.slane %v1474, %v1478
        %v1497 = vunpack.c.l.b16 %v1458
        %v1498 = vunpack.c.l.b16 %v1459
        %v1499 = vunpack.c.l.b16 %v1460
        %v1500 = vunpack.c.l.b16 %v1461
        %v1501 = vunpack.c.l.b16 %v1462
        %v1502 = vunpack.c.l.b16 %v1463
        %v1503 = vunpack.c.l.b16 %v1464
        %v1504 = vunpack.c.l.b16 %v1465
        %v1505 = vunpack.c.l.b16 %v1466
        %v1506 = vunpack.c.l.b16 %v1467
        %v1507 = vunpack.c.l.b16 %v1468
        %v1508 = vunpack.c.l.b16 %v1469
        %v1509 = vunpack.c.l.b16 %v1470
        %v1510 = vunpack.c.l.b16 %v1471
        %v1511 = vunpack.c.l.b16 %v1472
        %v1512 = vunpack.c.l.b16 %v1473
        %v1513 = vpack.c.b16 %v1498, %v1497
        %v1514 = vpack.c.b16 %v1500, %v1499
        %v1515 = vpack.c.b16 %v1502, %v1501
        %v1516 = vpack.c.b16 %v1504, %v1503
        %v1517 = vpack.c.b16 %v1506, %v1505
        %v1518 = vpack.c.b16 %v1508, %v1507
        %v1519 = vpack.c.b16 %v1510, %v1509
        %v1520 = vpack.c.b16 %v1512, %v1511
        %1529 = vmatprep.subr.bf16.mxu0 0
        %1530 = vmatpush1.bf16.msra.mxu0 %v1513
        %1531 = vmatprep.subr.bf16.mxu0 0
        %1532 = vmatpush1.bf16.msra.mxu0 %v1514
        %1533 = vmatprep.subr.bf16.mxu0 0
        %1534 = vmatpush1.bf16.msra.mxu0 %v1515
        %1535 = vmatprep.subr.bf16.mxu0 0
        %1536 = vmatpush1.bf16.msra.mxu0 %v1516
        %1537 = vmatprep.subr.bf16.mxu0 0
        %1538 = vmatpush1.bf16.msra.mxu0 %v1517
        %1539 = vmatprep.subr.bf16.mxu0 0
        %1540 = vmatpush1.bf16.msra.mxu0 %v1518
        %1541 = vmatprep.subr.bf16.mxu0 0
        %1542 = vmatpush1.bf16.msra.mxu0 %v1519
        %1543 = vmatprep.subr.bf16.mxu0 0
        %1544 = vmatpush1.bf16.msra.mxu0 %v1520
        %1545 = vmatprep.subr.bf16.mxu0 0
        %1546 = vmatpush1.bf16.msra.mxu0 0
        %1547 = vmatprep.subr.bf16.mxu0 0
        %1548 = vmatpush1.bf16.msra.mxu0 0
        %1549 = vmatprep.subr.bf16.mxu0 0
        %1550 = vmatpush1.bf16.msra.mxu0 0
        %1551 = vmatprep.subr.bf16.mxu0 0
        %1552 = vmatpush1.bf16.msra.mxu0 0
        %1553 = vmatprep.subr.bf16.mxu0 0
        %1554 = vmatpush1.bf16.msra.mxu0 0
        %1555 = vmatprep.subr.bf16.mxu0 0
        %1556 = vmatpush1.bf16.msra.mxu0 0
        %1557 = vmatprep.subr.bf16.mxu0 0
        %1558 = vmatpush1.bf16.msra.mxu0 0
        %1559 = vmatprep.subr.bf16.mxu0 0
        %1560 = vmatpush1.bf16.msra.mxu0 0
        %1561 = vmatprep.mubr.bf16.mxu0 0
        %1562 = vmatmul.mubr.bf16.gmra.mrb[0].mxu0 %v1457
        %v1563 = vpop.f32.mrb[0].mxu0
        %v1564 = vadd.f32 %v1479, %v1563
        %v1565 = vpop.f32.mrb[0].mxu0
        %v1566 = vpop.f32.mrb[0].mxu0
        %v1567 = vadd.f32 %v1479, %v1566
        %v1568 = vpop.f32.mrb[0].mxu0
        %1569 = vdwg.mxu0
        %v1570 = vadd.f32 %v1564, %v618
        %v1571 = vadd.f32 %v1567, %v619
        %v1572 = vld [vmem:[#allocation14] sm:$0x1]
        %v1573 = vld [vmem:[#allocation16] sm:$0x1]
        %1574 = vadd.xlane.f32.xlu0 %v1570
        %v1575 = vpop.xlane.xlu0 %1574
        %1576 = vadd.xlane.f32.xlu0 %v1571
        %v1577 = vpop.xlane.xlu0 %1576
        %v1578 = vmul.f32 %v1575, %v626
        %v1579 = vmul.f32 %v1577, %v626
        %v1580 = vsub.f32 %v1570, %v1578
        %v1581 = vsub.f32 %v1571, %v1579
        %v1582 = vmul.f32 %v1580, %v1580
        %v1583 = vmul.f32 %v1581, %v1581
        %1584 = vadd.xlane.f32.xlu0 %v1582
        %v1585 = vpop.xlane.xlu0 %1584
        %1586 = vadd.xlane.f32.xlu0 %v1583
        %v1587 = vpop.xlane.xlu0 %1586
        %v1588 = vmul.f32 %v1585, %v626
        %v1589 = vmul.f32 %v1587, %v626
        %v1590 = vadd.f32 %v1588, 1e-05
        %v1591 = vadd.f32 %v1589, 1e-05
        %v1592 = vrsqrt.pop %v1590
        %v1593 = vrsqrt.pop %v1591
        %v1594 = vmul.f32 %v1580, %v1592
        %v1595 = vmul.f32 %v1581, %v1593
        %v1597 = vlaneseq
        %v1598 = vshrl.u32 %v1597, 7
        %v1599 = vsub.s32 0, %v1598
        %v1600 = vrot.slane %v1572, %v1599
        %v1602 = vmul.f32 %v1594, %v1600
        %v1603 = vmul.f32 %v1595, %v1600
        %v1605 = vlaneseq
        %v1606 = vshrl.u32 %v1605, 7
        %v1607 = vsub.s32 0, %v1606
        %v1608 = vrot.slane %v1573, %v1607
        %v1610 = vadd.f32 %v1602, %v1608
        %v1611 = vadd.f32 %v1603, %v1608
        %v1612 = vpack.c.bf16 %v1611, %v1610
        %v1613 = vld [vmem:[#allocation17] sm:$0xff]
        %v1614 = vld [vmem:[#allocation17 + $0x8] sm:$0xff]
        %v1615 = vld [vmem:[#allocation17 + $0x10] sm:$0xff]
        %v1616 = vld [vmem:[#allocation17 + $0x18] sm:$0xff]
        %v1617 = vld [vmem:[#allocation17 + $0x20] sm:$0xff]
        %v1618 = vld [vmem:[#allocation17 + $0x28] sm:$0xff]
        %v1619 = vld [vmem:[#allocation17 + $0x30] sm:$0xff]
        %v1620 = vld [vmem:[#allocation17 + $0x38] sm:$0xff]
        %v1621 = vld [vmem:[#allocation17 + $0x40] sm:$0xff]
        %v1622 = vld [vmem:[#allocation17 + $0x48] sm:$0xff]
        %v1623 = vld [vmem:[#allocation17 + $0x50] sm:$0xff]
        %v1624 = vld [vmem:[#allocation17 + $0x58] sm:$0xff]
        %v1625 = vld [vmem:[#allocation17 + $0x60] sm:$0xff]
        %v1626 = vld [vmem:[#allocation17 + $0x68] sm:$0xff]
        %v1627 = vld [vmem:[#allocation17 + $0x70] sm:$0xff]
        %v1628 = vld [vmem:[#allocation17 + $0x78] sm:$0xff]
        %v1629 = vld [vmem:[#allocation17 + $0x80] sm:$0xff]
        %v1630 = vld [vmem:[#allocation17 + $0x88] sm:$0xff]
        %v1631 = vld [vmem:[#allocation17 + $0x90] sm:$0xff]
        %v1632 = vld [vmem:[#allocation17 + $0x98] sm:$0xff]
        %v1633 = vld [vmem:[#allocation17 + $0xa0] sm:$0xff]
        %v1634 = vld [vmem:[#allocation17 + $0xa8] sm:$0xff]
        %v1635 = vld [vmem:[#allocation17 + $0xb0] sm:$0xff]
        %v1636 = vld [vmem:[#allocation17 + $0xb8] sm:$0xff]
        %v1637 = vld [vmem:[#allocation17 + $0xc0] sm:$0xff]
        %v1638 = vld [vmem:[#allocation17 + $0xc8] sm:$0xff]
        %v1639 = vld [vmem:[#allocation17 + $0xd0] sm:$0xff]
        %v1640 = vld [vmem:[#allocation17 + $0xd8] sm:$0xff]
        %v1641 = vld [vmem:[#allocation17 + $0xe0] sm:$0xff]
        %v1642 = vld [vmem:[#allocation17 + $0xe8] sm:$0xff]
        %v1643 = vld [vmem:[#allocation17 + $0xf0] sm:$0xff]
        %v1644 = vld [vmem:[#allocation17 + $0xf8] sm:$0xff]
        %v1645 = vld [vmem:[#allocation19] sm:$0xf]
        %v1647 = vlaneseq
        %v1648 = vshrl.u32 %v1647, 7
        %v1649 = vsub.s32 0, %v1648
        %v1650 = vrot.slane %v1645, %v1649
        %v1651 = vlaneseq
        %v1652 = vshrl.u32 %v1651, 7
        %v1653 = vsub.s32 1, %v1652
        %v1654 = vrot.slane %v1645, %v1653
        %v1655 = vlaneseq
        %v1656 = vshrl.u32 %v1655, 7
        %v1657 = vsub.s32 2, %v1656
        %v1658 = vrot.slane %v1645, %v1657
        %v1659 = vlaneseq
        %v1660 = vshrl.u32 %v1659, 7
        %v1661 = vsub.s32 3, %v1660
        %v1662 = vrot.slane %v1645, %v1661
        %v1699 = vunpack.c.l.b16 %v1613
        %v1700 = vunpack.c.h.b16 %v1613
        %v1701 = vunpack.c.l.b16 %v1614
        %v1702 = vunpack.c.h.b16 %v1614
        %v1703 = vunpack.c.l.b16 %v1615
        %v1704 = vunpack.c.h.b16 %v1615
        %v1705 = vunpack.c.l.b16 %v1616
        %v1706 = vunpack.c.h.b16 %v1616
        %v1707 = vunpack.c.l.b16 %v1617
        %v1708 = vunpack.c.h.b16 %v1617
        %v1709 = vunpack.c.l.b16 %v1618
        %v1710 = vunpack.c.h.b16 %v1618
        %v1711 = vunpack.c.l.b16 %v1619
        %v1712 = vunpack.c.h.b16 %v1619
        %v1713 = vunpack.c.l.b16 %v1620
        %v1714 = vunpack.c.h.b16 %v1620
        %v1715 = vunpack.c.l.b16 %v1621
        %v1716 = vunpack.c.h.b16 %v1621
        %v1717 = vunpack.c.l.b16 %v1622
        %v1718 = vunpack.c.h.b16 %v1622
        %v1719 = vunpack.c.l.b16 %v1623
        %v1720 = vunpack.c.h.b16 %v1623
        %v1721 = vunpack.c.l.b16 %v1624
        %v1722 = vunpack.c.h.b16 %v1624
        %v1723 = vunpack.c.l.b16 %v1625
        %v1724 = vunpack.c.h.b16 %v1625
        %v1725 = vunpack.c.l.b16 %v1626
        %v1726 = vunpack.c.h.b16 %v1626
        %v1727 = vunpack.c.l.b16 %v1627
        %v1728 = vunpack.c.h.b16 %v1627
        %v1729 = vunpack.c.l.b16 %v1628
        %v1730 = vunpack.c.h.b16 %v1628
        %v1731 = vunpack.c.l.b16 %v1629
        %v1732 = vunpack.c.h.b16 %v1629
        %v1733 = vunpack.c.l.b16 %v1630
        %v1734 = vunpack.c.h.b16 %v1630
        %v1735 = vunpack.c.l.b16 %v1631
        %v1736 = vunpack.c.h.b16 %v1631
        %v1737 = vunpack.c.l.b16 %v1632
        %v1738 = vunpack.c.h.b16 %v1632
        %v1739 = vunpack.c.l.b16 %v1633
        %v1740 = vunpack.c.h.b16 %v1633
        %v1741 = vunpack.c.l.b16 %v1634
        %v1742 = vunpack.c.h.b16 %v1634
        %v1743 = vunpack.c.l.b16 %v1635
        %v1744 = vunpack.c.h.b16 %v1635
        %v1745 = vunpack.c.l.b16 %v1636
        %v1746 = vunpack.c.h.b16 %v1636
        %v1747 = vunpack.c.l.b16 %v1637
        %v1748 = vunpack.c.h.b16 %v1637
        %v1749 = vunpack.c.l.b16 %v1638
        %v1750 = vunpack.c.h.b16 %v1638
        %v1751 = vunpack.c.l.b16 %v1639
        %v1752 = vunpack.c.h.b16 %v1639
        %v1753 = vunpack.c.l.b16 %v1640
        %v1754 = vunpack.c.h.b16 %v1640
        %v1755 = vunpack.c.l.b16 %v1641
        %v1756 = vunpack.c.h.b16 %v1641
        %v1757 = vunpack.c.l.b16 %v1642
        %v1758 = vunpack.c.h.b16 %v1642
        %v1759 = vunpack.c.l.b16 %v1643
        %v1760 = vunpack.c.h.b16 %v1643
        %v1761 = vunpack.c.l.b16 %v1644
        %v1762 = vunpack.c.h.b16 %v1644
        %v1763 = vpack.c.b16 %v1703, %v1699
        %v1764 = vpack.c.b16 %v1704, %v1700
        %v1765 = vpack.c.b16 %v1705, %v1701
        %v1766 = vpack.c.b16 %v1706, %v1702
        %v1767 = vpack.c.b16 %v1711, %v1707
        %v1768 = vpack.c.b16 %v1712, %v1708
        %v1769 = vpack.c.b16 %v1713, %v1709
        %v1770 = vpack.c.b16 %v1714, %v1710
        %v1771 = vpack.c.b16 %v1719, %v1715
        %v1772 = vpack.c.b16 %v1720, %v1716
        %v1773 = vpack.c.b16 %v1721, %v1717
        %v1774 = vpack.c.b16 %v1722, %v1718
        %v1775 = vpack.c.b16 %v1727, %v1723
        %v1776 = vpack.c.b16 %v1728, %v1724
        %v1777 = vpack.c.b16 %v1729, %v1725
        %v1778 = vpack.c.b16 %v1730, %v1726
        %v1779 = vpack.c.b16 %v1735, %v1731
        %v1780 = vpack.c.b16 %v1736, %v1732
        %v1781 = vpack.c.b16 %v1737, %v1733
        %v1782 = vpack.c.b16 %v1738, %v1734
        %v1783 = vpack.c.b16 %v1743, %v1739
        %v1784 = vpack.c.b16 %v1744, %v1740
        %v1785 = vpack.c.b16 %v1745, %v1741
        %v1786 = vpack.c.b16 %v1746, %v1742
        %v1787 = vpack.c.b16 %v1751, %v1747
        %v1788 = vpack.c.b16 %v1752, %v1748
        %v1789 = vpack.c.b16 %v1753, %v1749
        %v1790 = vpack.c.b16 %v1754, %v1750
        %v1791 = vpack.c.b16 %v1759, %v1755
        %v1792 = vpack.c.b16 %v1760, %v1756
        %v1793 = vpack.c.b16 %v1761, %v1757
        %v1794 = vpack.c.b16 %v1762, %v1758
        %1827 = vmatprep.subr.bf16.mxu0 %v1764
        %1828 = vmatpush1.bf16.msra.mxu0 %v1763
        %1829 = vmatprep.subr.bf16.mxu0 %v1768
        %1830 = vmatpush1.bf16.msra.mxu0 %v1767
        %1831 = vmatprep.subr.bf16.mxu0 %v1772
        %1832 = vmatpush1.bf16.msra.mxu0 %v1771
        %1833 = vmatprep.subr.bf16.mxu0 %v1776
        %1834 = vmatpush1.bf16.msra.mxu0 %v1775
        %1835 = vmatprep.subr.bf16.mxu0 %v1780
        %1836 = vmatpush1.bf16.msra.mxu0 %v1779
        %1837 = vmatprep.subr.bf16.mxu0 %v1784
        %1838 = vmatpush1.bf16.msra.mxu0 %v1783
        %1839 = vmatprep.subr.bf16.mxu0 %v1788
        %1840 = vmatpush1.bf16.msra.mxu0 %v1787
        %1841 = vmatprep.subr.bf16.mxu0 %v1792
        %1842 = vmatpush1.bf16.msra.mxu0 %v1791
        %1843 = vmatprep.subr.bf16.mxu0 0
        %1844 = vmatpush1.bf16.msra.mxu0 0
        %1845 = vmatprep.subr.bf16.mxu0 0
        %1846 = vmatpush1.bf16.msra.mxu0 0
        %1847 = vmatprep.subr.bf16.mxu0 0
        %1848 = vmatpush1.bf16.msra.mxu0 0
        %1849 = vmatprep.subr.bf16.mxu0 0
        %1850 = vmatpush1.bf16.msra.mxu0 0
        %1851 = vmatprep.subr.bf16.mxu0 0
        %1852 = vmatpush1.bf16.msra.mxu0 0
        %1853 = vmatprep.subr.bf16.mxu0 0
        %1854 = vmatpush1.bf16.msra.mxu0 0
        %1855 = vmatprep.subr.bf16.mxu0 0
        %1856 = vmatpush1.bf16.msra.mxu0 0
        %1857 = vmatprep.subr.bf16.mxu0 0
        %1858 = vmatpush1.bf16.msra.mxu0 0
        %1859 = vmatprep.mubr.bf16.mxu0 0
        %1860 = vmatmul.mubr.bf16.gmra.mrb[0].mxu0 %v1612
        %v1861 = vpop.f32.mrb[0].mxu0
        %v1862 = vadd.f32 %v1650, %v1861
        %v1863 = vpop.f32.mrb[0].mxu0
        %v1864 = vadd.f32 %v1654, %v1863
        %v1865 = vpop.f32.mrb[0].mxu0
        %v1866 = vadd.f32 %v1650, %v1865
        %v1867 = vpop.f32.mrb[0].mxu0
        %v1868 = vadd.f32 %v1654, %v1867
        %1869 = vdwg.mxu0
        %1870 = vmatprep.subr.bf16.mxu0 %v1766
        %1871 = vmatpush1.bf16.msra.mxu0 %v1765
        %1872 = vmatprep.subr.bf16.mxu0 %v1770
        %1873 = vmatpush1.bf16.msra.mxu0 %v1769
        %1874 = vmatprep.subr.bf16.mxu0 %v1774
        %1875 = vmatpush1.bf16.msra.mxu0 %v1773
        %1876 = vmatprep.subr.bf16.mxu0 %v1778
        %1877 = vmatpush1.bf16.msra.mxu0 %v1777
        %1878 = vmatprep.subr.bf16.mxu0 %v1782
        %1879 = vmatpush1.bf16.msra.mxu0 %v1781
        %1880 = vmatprep.subr.bf16.mxu0 %v1786
        %1881 = vmatpush1.bf16.msra.mxu0 %v1785
        %1882 = vmatprep.subr.bf16.mxu0 %v1790
        %1883 = vmatpush1.bf16.msra.mxu0 %v1789
        %1884 = vmatprep.subr.bf16.mxu0 %v1794
        %1885 = vmatpush1.bf16.msra.mxu0 %v1793
        %1886 = vmatprep.subr.bf16.mxu0 0
        %1887 = vmatpush1.bf16.msra.mxu0 0
        %1888 = vmatprep.subr.bf16.mxu0 0
        %1889 = vmatpush1.bf16.msra.mxu0 0
        %1890 = vmatprep.subr.bf16.mxu0 0
        %1891 = vmatpush1.bf16.msra.mxu0 0
        %1892 = vmatprep.subr.bf16.mxu0 0
        %1893 = vmatpush1.bf16.msra.mxu0 0
        %1894 = vmatprep.subr.bf16.mxu0 0
        %1895 = vmatpush1.bf16.msra.mxu0 0
        %1896 = vmatprep.subr.bf16.mxu0 0
        %1897 = vmatpush1.bf16.msra.mxu0 0
        %1898 = vmatprep.subr.bf16.mxu0 0
        %1899 = vmatpush1.bf16.msra.mxu0 0
        %1900 = vmatprep.subr.bf16.mxu0 0
        %1901 = vmatpush1.bf16.msra.mxu0 0
        %1902 = vmatprep.mubr.bf16.mxu0 0
        %1903 = vmatmul.mubr.bf16.gmra.mrb[0].mxu0 %v1612
        %v1904 = vpop.f32.mrb[0].mxu0
        %v1905 = vadd.f32 %v1658, %v1904
        %v1906 = vpop.f32.mrb[0].mxu0
        %v1907 = vadd.f32 %v1662, %v1906
        %v1908 = vpop.f32.mrb[0].mxu0
        %v1909 = vadd.f32 %v1658, %v1908
        %v1910 = vpop.f32.mrb[0].mxu0
        %v1911 = vadd.f32 %v1662, %v1910
        %1912 = vdwg.mxu0
        %v1913 = vmul.f32 %v1862, 1.702
        %v1914 = vmul.f32 %v1864, 1.702
        %v1915 = vmul.f32 %v1905, 1.702
        %v1916 = vmul.f32 %v1907, 1.702
        %v1917 = vmul.f32 %v1866, 1.702
        %v1918 = vmul.f32 %v1868, 1.702
        %v1919 = vmul.f32 %v1909, 1.702
        %v1920 = vmul.f32 %v1911, 1.702
        %v1921 = vxor.u32 %v1913, 2147483648
        %v1922 = vxor.u32 %v1914, 2147483648
        %v1923 = vxor.u32 %v1915, 2147483648
        %v1924 = vxor.u32 %v1916, 2147483648
        %v1925 = vxor.u32 %v1917, 2147483648
        %v1926 = vxor.u32 %v1918, 2147483648
        %v1927 = vxor.u32 %v1919, 2147483648
        %v1928 = vxor.u32 %v1920, 2147483648
        %v1929 = vmul.f32 %v1921, 1.442695
        %v1930 = vpow.pop %v1929
        %v1931 = vmul.f32 %v1922, 1.442695
        %v1932 = vpow.pop %v1931
        %v1933 = vmul.f32 %v1923, 1.442695
        %v1934 = vpow.pop %v1933
        %v1935 = vmul.f32 %v1924, 1.442695
        %v1936 = vpow.pop %v1935
        %v1937 = vmul.f32 %v1925, 1.442695
        %v1938 = vpow.pop %v1937
        %v1939 = vmul.f32 %v1926, 1.442695
        %v1940 = vpow.pop %v1939
        %v1941 = vmul.f32 %v1927, 1.442695
        %v1942 = vpow.pop %v1941
        %v1943 = vmul.f32 %v1928, 1.442695
        %v1944 = vpow.pop %v1943
        %v1945 = vadd.f32 %v1930, 1.0
        %v1946 = vadd.f32 %v1932, 1.0
        %v1947 = vadd.f32 %v1934, 1.0
        %v1948 = vadd.f32 %v1936, 1.0
        %v1949 = vadd.f32 %v1938, 1.0
        %v1950 = vadd.f32 %v1940, 1.0
        %v1951 = vadd.f32 %v1942, 1.0
        %v1952 = vadd.f32 %v1944, 1.0
        %v1953 = vrcp.pop %v1945
        %v1954 = vmul.f32 1.0, %v1953
        %v1955 = vrcp.pop %v1946
        %v1956 = vmul.f32 1.0, %v1955
        %v1957 = vrcp.pop %v1947
        %v1958 = vmul.f32 1.0, %v1957
        %v1959 = vrcp.pop %v1948
        %v1960 = vmul.f32 1.0, %v1959
        %v1961 = vrcp.pop %v1949
        %v1962 = vmul.f32 1.0, %v1961
        %v1963 = vrcp.pop %v1950
        %v1964 = vmul.f32 1.0, %v1963
        %v1965 = vrcp.pop %v1951
        %v1966 = vmul.f32 1.0, %v1965
        %v1967 = vrcp.pop %v1952
        %v1968 = vmul.f32 1.0, %v1967
        %v1969 = vmul.f32 %v1862, %v1954
        %v1970 = vmul.f32 %v1864, %v1956
        %v1971 = vmul.f32 %v1905, %v1958
        %v1972 = vmul.f32 %v1907, %v1960
        %v1973 = vmul.f32 %v1866, %v1962
        %v1974 = vmul.f32 %v1868, %v1964
        %v1975 = vmul.f32 %v1909, %v1966
        %v1976 = vmul.f32 %v1911, %v1968
        %v1977 = vpack.c.bf16 %v1973, %v1969
        %v1978 = vpack.c.bf16 %v1974, %v1970
        %v1979 = vpack.c.bf16 %v1975, %v1971
        %v1980 = vpack.c.bf16 %v1976, %v1972
        %v1981 = vld [vmem:[#allocation20] sm:$0xf]
        %v1982 = vld [vmem:[#allocation20 + $0x4] sm:$0xf]
        %v1983 = vld [vmem:[#allocation20 + $0x8] sm:$0xf]
        %v1984 = vld [vmem:[#allocation20 + $0xc] sm:$0xf]
        %v1985 = vld [vmem:[#allocation20 + $0x10] sm:$0xf]
        %v1986 = vld [vmem:[#allocation20 + $0x14] sm:$0xf]
        %v1987 = vld [vmem:[#allocation20 + $0x18] sm:$0xf]
        %v1988 = vld [vmem:[#allocation20 + $0x1c] sm:$0xf]
        %v1989 = vld [vmem:[#allocation20 + $0x20] sm:$0xf]
        %v1990 = vld [vmem:[#allocation20 + $0x24] sm:$0xf]
        %v1991 = vld [vmem:[#allocation20 + $0x28] sm:$0xf]
        %v1992 = vld [vmem:[#allocation20 + $0x2c] sm:$0xf]
        %v1993 = vld [vmem:[#allocation20 + $0x30] sm:$0xf]
        %v1994 = vld [vmem:[#allocation20 + $0x34] sm:$0xf]
        %v1995 = vld [vmem:[#allocation20 + $0x38] sm:$0xf]
        %v1996 = vld [vmem:[#allocation20 + $0x3c] sm:$0xf]
        %v1997 = vld [vmem:[#allocation20 + $0x40] sm:$0xf]
        %v1998 = vld [vmem:[#allocation20 + $0x44] sm:$0xf]
        %v1999 = vld [vmem:[#allocation20 + $0x48] sm:$0xf]
        %v2000 = vld [vmem:[#allocation20 + $0x4c] sm:$0xf]
        %v2001 = vld [vmem:[#allocation20 + $0x50] sm:$0xf]
        %v2002 = vld [vmem:[#allocation20 + $0x54] sm:$0xf]
        %v2003 = vld [vmem:[#allocation20 + $0x58] sm:$0xf]
        %v2004 = vld [vmem:[#allocation20 + $0x5c] sm:$0xf]
        %v2005 = vld [vmem:[#allocation20 + $0x60] sm:$0xf]
        %v2006 = vld [vmem:[#allocation20 + $0x64] sm:$0xf]
        %v2007 = vld [vmem:[#allocation20 + $0x68] sm:$0xf]
        %v2008 = vld [vmem:[#allocation20 + $0x6c] sm:$0xf]
        %v2009 = vld [vmem:[#allocation20 + $0x70] sm:$0xf]
        %v2010 = vld [vmem:[#allocation20 + $0x74] sm:$0xf]
        %v2011 = vld [vmem:[#allocation20 + $0x78] sm:$0xf]
        %v2012 = vld [vmem:[#allocation20 + $0x7c] sm:$0xf]
        %v2013 = vld [vmem:[#allocation20 + $0x80] sm:$0xf]
        %v2014 = vld [vmem:[#allocation20 + $0x84] sm:$0xf]
        %v2015 = vld [vmem:[#allocation20 + $0x88] sm:$0xf]
        %v2016 = vld [vmem:[#allocation20 + $0x8c] sm:$0xf]
        %v2017 = vld [vmem:[#allocation20 + $0x90] sm:$0xf]
        %v2018 = vld [vmem:[#allocation20 + $0x94] sm:$0xf]
        %v2019 = vld [vmem:[#allocation20 + $0x98] sm:$0xf]
        %v2020 = vld [vmem:[#allocation20 + $0x9c] sm:$0xf]
        %v2021 = vld [vmem:[#allocation20 + $0xa0] sm:$0xf]
        %v2022 = vld [vmem:[#allocation20 + $0xa4] sm:$0xf]
        %v2023 = vld [vmem:[#allocation20 + $0xa8] sm:$0xf]
        %v2024 = vld [vmem:[#allocation20 + $0xac] sm:$0xf]
        %v2025 = vld [vmem:[#allocation20 + $0xb0] sm:$0xf]
        %v2026 = vld [vmem:[#allocation20 + $0xb4] sm:$0xf]
        %v2027 = vld [vmem:[#allocation20 + $0xb8] sm:$0xf]
        %v2028 = vld [vmem:[#allocation20 + $0xbc] sm:$0xf]
        %v2029 = vld [vmem:[#allocation20 + $0xc0] sm:$0xf]
        %v2030 = vld [vmem:[#allocation20 + $0xc4] sm:$0xf]
        %v2031 = vld [vmem:[#allocation20 + $0xc8] sm:$0xf]
        %v2032 = vld [vmem:[#allocation20 + $0xcc] sm:$0xf]
        %v2033 = vld [vmem:[#allocation20 + $0xd0] sm:$0xf]
        %v2034 = vld [vmem:[#allocation20 + $0xd4] sm:$0xf]
        %v2035 = vld [vmem:[#allocation20 + $0xd8] sm:$0xf]
        %v2036 = vld [vmem:[#allocation20 + $0xdc] sm:$0xf]
        %v2037 = vld [vmem:[#allocation20 + $0xe0] sm:$0xf]
        %v2038 = vld [vmem:[#allocation20 + $0xe4] sm:$0xf]
        %v2039 = vld [vmem:[#allocation20 + $0xe8] sm:$0xf]
        %v2040 = vld [vmem:[#allocation20 + $0xec] sm:$0xf]
        %v2041 = vld [vmem:[#allocation20 + $0xf0] sm:$0xf]
        %v2042 = vld [vmem:[#allocation20 + $0xf4] sm:$0xf]
        %v2043 = vld [vmem:[#allocation20 + $0xf8] sm:$0xf]
        %v2044 = vld [vmem:[#allocation20 + $0xfc] sm:$0xf]
        %v2045 = vld [vmem:[#allocation22] sm:$0x1]
        %v2047 = vlaneseq
        %v2048 = vshrl.u32 %v2047, 7
        %v2049 = vsub.s32 0, %v2048
        %v2050 = vrot.slane %v2045, %v2049
        %v2116 = vunpack.c.l.b16 %v1981
        %v2117 = vunpack.c.l.b16 %v1982
        %v2118 = vunpack.c.l.b16 %v1983
        %v2119 = vunpack.c.l.b16 %v1984
        %v2120 = vunpack.c.l.b16 %v1985
        %v2121 = vunpack.c.l.b16 %v1986
        %v2122 = vunpack.c.l.b16 %v1987
        %v2123 = vunpack.c.l.b16 %v1988
        %v2124 = vunpack.c.l.b16 %v1989
        %v2125 = vunpack.c.l.b16 %v1990
        %v2126 = vunpack.c.l.b16 %v1991
        %v2127 = vunpack.c.l.b16 %v1992
        %v2128 = vunpack.c.l.b16 %v1993
        %v2129 = vunpack.c.l.b16 %v1994
        %v2130 = vunpack.c.l.b16 %v1995
        %v2131 = vunpack.c.l.b16 %v1996
        %v2132 = vunpack.c.l.b16 %v1997
        %v2133 = vunpack.c.l.b16 %v1998
        %v2134 = vunpack.c.l.b16 %v1999
        %v2135 = vunpack.c.l.b16 %v2000
        %v2136 = vunpack.c.l.b16 %v2001
        %v2137 = vunpack.c.l.b16 %v2002
        %v2138 = vunpack.c.l.b16 %v2003
        %v2139 = vunpack.c.l.b16 %v2004
        %v2140 = vunpack.c.l.b16 %v2005
        %v2141 = vunpack.c.l.b16 %v2006
        %v2142 = vunpack.c.l.b16 %v2007
        %v2143 = vunpack.c.l.b16 %v2008
        %v2144 = vunpack.c.l.b16 %v2009
        %v2145 = vunpack.c.l.b16 %v2010
        %v2146 = vunpack.c.l.b16 %v2011
        %v2147 = vunpack.c.l.b16 %v2012
        %v2148 = vunpack.c.l.b16 %v2013
        %v2149 = vunpack.c.l.b16 %v2014
        %v2150 = vunpack.c.l.b16 %v2015
        %v2151 = vunpack.c.l.b16 %v2016
        %v2152 = vunpack.c.l.b16 %v2017
        %v2153 = vunpack.c.l.b16 %v2018
        %v2154 = vunpack.c.l.b16 %v2019
        %v2155 = vunpack.c.l.b16 %v2020
        %v2156 = vunpack.c.l.b16 %v2021
        %v2157 = vunpack.c.l.b16 %v2022
        %v2158 = vunpack.c.l.b16 %v2023
        %v2159 = vunpack.c.l.b16 %v2024
        %v2160 = vunpack.c.l.b16 %v2025
        %v2161 = vunpack.c.l.b16 %v2026
        %v2162 = vunpack.c.l.b16 %v2027
        %v2163 = vunpack.c.l.b16 %v2028
        %v2164 = vunpack.c.l.b16 %v2029
        %v2165 = vunpack.c.l.b16 %v2030
        %v2166 = vunpack.c.l.b16 %v2031
        %v2167 = vunpack.c.l.b16 %v2032
        %v2168 = vunpack.c.l.b16 %v2033
        %v2169 = vunpack.c.l.b16 %v2034
        %v2170 = vunpack.c.l.b16 %v2035
        %v2171 = vunpack.c.l.b16 %v2036
        %v2172 = vunpack.c.l.b16 %v2037
        %v2173 = vunpack.c.l.b16 %v2038
        %v2174 = vunpack.c.l.b16 %v2039
        %v2175 = vunpack.c.l.b16 %v2040
        %v2176 = vunpack.c.l.b16 %v2041
        %v2177 = vunpack.c.l.b16 %v2042
        %v2178 = vunpack.c.l.b16 %v2043
        %v2179 = vunpack.c.l.b16 %v2044
        %v2180 = vpack.c.b16 %v2117, %v2116
        %v2181 = vpack.c.b16 %v2119, %v2118
        %v2182 = vpack.c.b16 %v2121, %v2120
        %v2183 = vpack.c.b16 %v2123, %v2122
        %v2184 = vpack.c.b16 %v2125, %v2124
        %v2185 = vpack.c.b16 %v2127, %v2126
        %v2186 = vpack.c.b16 %v2129, %v2128
        %v2187 = vpack.c.b16 %v2131, %v2130
        %v2188 = vpack.c.b16 %v2133, %v2132
        %v2189 = vpack.c.b16 %v2135, %v2134
        %v2190 = vpack.c.b16 %v2137, %v2136
        %v2191 = vpack.c.b16 %v2139, %v2138
        %v2192 = vpack.c.b16 %v2141, %v2140
        %v2193 = vpack.c.b16 %v2143, %v2142
        %v2194 = vpack.c.b16 %v2145, %v2144
        %v2195 = vpack.c.b16 %v2147, %v2146
        %v2196 = vpack.c.b16 %v2149, %v2148
        %v2197 = vpack.c.b16 %v2151, %v2150
        %v2198 = vpack.c.b16 %v2153, %v2152
        %v2199 = vpack.c.b16 %v2155, %v2154
        %v2200 = vpack.c.b16 %v2157, %v2156
        %v2201 = vpack.c.b16 %v2159, %v2158
        %v2202 = vpack.c.b16 %v2161, %v2160
        %v2203 = vpack.c.b16 %v2163, %v2162
        %v2204 = vpack.c.b16 %v2165, %v2164
        %v2205 = vpack.c.b16 %v2167, %v2166
        %v2206 = vpack.c.b16 %v2169, %v2168
        %v2207 = vpack.c.b16 %v2171, %v2170
        %v2208 = vpack.c.b16 %v2173, %v2172
        %v2209 = vpack.c.b16 %v2175, %v2174
        %v2210 = vpack.c.b16 %v2177, %v2176
        %v2211 = vpack.c.b16 %v2179, %v2178
        %2244 = vmatprep.subr.bf16.mxu0 0
        %2245 = vmatpush1.bf16.msra.mxu0 %v2180
        %2246 = vmatprep.subr.bf16.mxu0 0
        %2247 = vmatpush1.bf16.msra.mxu0 %v2181
        %2248 = vmatprep.subr.bf16.mxu0 0
        %2249 = vmatpush1.bf16.msra.mxu0 %v2182
        %2250 = vmatprep.subr.bf16.mxu0 0
        %2251 = vmatpush1.bf16.msra.mxu0 %v2183
        %2252 = vmatprep.subr.bf16.mxu0 0
        %2253 = vmatpush1.bf16.msra.mxu0 %v2184
        %2254 = vmatprep.subr.bf16.mxu0 0
        %2255 = vmatpush1.bf16.msra.mxu0 %v2185
        %2256 = vmatprep.subr.bf16.mxu0 0
        %2257 = vmatpush1.bf16.msra.mxu0 %v2186
        %2258 = vmatprep.subr.bf16.mxu0 0
        %2259 = vmatpush1.bf16.msra.mxu0 %v2187
        %2260 = vmatprep.subr.bf16.mxu0 0
        %2261 = vmatpush1.bf16.msra.mxu0 %v2188
        %2262 = vmatprep.subr.bf16.mxu0 0
        %2263 = vmatpush1.bf16.msra.mxu0 %v2189
        %2264 = vmatprep.subr.bf16.mxu0 0
        %2265 = vmatpush1.bf16.msra.mxu0 %v2190
        %2266 = vmatprep.subr.bf16.mxu0 0
        %2267 = vmatpush1.bf16.msra.mxu0 %v2191
        %2268 = vmatprep.subr.bf16.mxu0 0
        %2269 = vmatpush1.bf16.msra.mxu0 %v2192
        %2270 = vmatprep.subr.bf16.mxu0 0
        %2271 = vmatpush1.bf16.msra.mxu0 %v2193
        %2272 = vmatprep.subr.bf16.mxu0 0
        %2273 = vmatpush1.bf16.msra.mxu0 %v2194
        %2274 = vmatprep.subr.bf16.mxu0 0
        %2275 = vmatpush1.bf16.msra.mxu0 %v2195
        %2276 = vmatprep.mubr.bf16.mxu0 %v1978
        %2277 = vmatmul.mubr.bf16.gmra.mrb[0].mxu0 %v1977
        %v2278 = vpop.f32.mrb[0].mxu0
        %v2279 = vadd.f32 %v2050, %v2278
        %v2280 = vpop.f32.mrb[0].mxu0
        %v2281 = vpop.f32.mrb[0].mxu0
        %v2282 = vadd.f32 %v2050, %v2281
        %v2283 = vpop.f32.mrb[0].mxu0
        %2284 = vdwg.mxu0
        %2285 = vmatprep.subr.bf16.mxu0 0
        %2286 = vmatpush1.bf16.msra.mxu0 %v2196
        %2287 = vmatprep.subr.bf16.mxu0 0
        %2288 = vmatpush1.bf16.msra.mxu0 %v2197
        %2289 = vmatprep.subr.bf16.mxu0 0
        %2290 = vmatpush1.bf16.msra.mxu0 %v2198
        %2291 = vmatprep.subr.bf16.mxu0 0
        %2292 = vmatpush1.bf16.msra.mxu0 %v2199
        %2293 = vmatprep.subr.bf16.mxu0 0
        %2294 = vmatpush1.bf16.msra.mxu0 %v2200
        %2295 = vmatprep.subr.bf16.mxu0 0
        %2296 = vmatpush1.bf16.msra.mxu0 %v2201
        %2297 = vmatprep.subr.bf16.mxu0 0
        %2298 = vmatpush1.bf16.msra.mxu0 %v2202
        %2299 = vmatprep.subr.bf16.mxu0 0
        %2300 = vmatpush1.bf16.msra.mxu0 %v2203
        %2301 = vmatprep.subr.bf16.mxu0 0
        %2302 = vmatpush1.bf16.msra.mxu0 %v2204
        %2303 = vmatprep.subr.bf16.mxu0 0
        %2304 = vmatpush1.bf16.msra.mxu0 %v2205
        %2305 = vmatprep.subr.bf16.mxu0 0
        %2306 = vmatpush1.bf16.msra.mxu0 %v2206
        %2307 = vmatprep.subr.bf16.mxu0 0
        %2308 = vmatpush1.bf16.msra.mxu0 %v2207
        %2309 = vmatprep.subr.bf16.mxu0 0
        %2310 = vmatpush1.bf16.msra.mxu0 %v2208
        %2311 = vmatprep.subr.bf16.mxu0 0
        %2312 = vmatpush1.bf16.msra.mxu0 %v2209
        %2313 = vmatprep.subr.bf16.mxu0 0
        %2314 = vmatpush1.bf16.msra.mxu0 %v2210
        %2315 = vmatprep.subr.bf16.mxu0 0
        %2316 = vmatpush1.bf16.msra.mxu0 %v2211
        %2317 = vmatprep.mubr.bf16.mxu0 %v1980
        %2318 = vmatmul.mubr.bf16.gmra.mrb[0].mxu0 %v1979
        %v2319 = vpop.f32.mrb[0].mxu0
        %v2320 = vadd.f32 %v2279, %v2319
        %v2321 = vpop.f32.mrb[0].mxu0
        %v2322 = vpop.f32.mrb[0].mxu0
        %v2323 = vadd.f32 %v2282, %v2322
        %v2324 = vpop.f32.mrb[0].mxu0
        %2325 = vdwg.mxu0
        %v2326 = vadd.f32 %v2320, %v1570
        %v2327 = vadd.f32 %v2323, %v1571
        %2328 = vst [vmem:[%s616] sm:$0xff] %v2326
        %2329 = vst [vmem:[%s616 + $0x8] sm:$0xff] %v2327
        %s2330 = sand.u32 %s322, 1
        %s2331 = scalar_lea.sflag [#allocation4], %s2330
        %s2332 = sand.u32 %s322, 1
        %s2333 = smul.addr %s2332, 16
        %s2334 = scalar_lea.vmem [#allocation23], %s2333
        // Predicated region
        $region125: #{tpu_custom_call.1} parent=71 // pred_check
          %p2335 = pneg %p332
        $region126: #{tpu_custom_call.1} parent=71 // pred_check_branch
          %2337 = sbr.rel (%p2335) target = $region128
        $region127: #{tpu_custom_call.1} parent=71 // pred_region
          %s2339 = ssub.s32 256, 256
          %2340 = vsyncadd %s2331, %s2339
          %s2341 = smul.addr %s36, 2
          %s2342 = smul.addr %s2341, 128
          %s2343 = scalar_lea.hbm %s13, %s2342
          %s2344 = sshll.u32 %s2334, 4
          %s2345 = int_to_ptr.vmem [resolvable:$true] %s2344
          %2350 = dma.vmem_to_hbm [thread:$0]  %s2345, 256, %s2343, %s2331, 128, 128, 8
        $region128: #{tpu_custom_call.1} parent=71 // pred_fallthru
          _
      $region72: #{tpu_custom_call.1} parent=5 // pred_fallthru
        _
      %p2351 = scmp.le.s32.totalorder 2, %s31
      // Predicated region
      $region129: #{tpu_custom_call.1} parent=5 // pred_check
        %p2352 = pneg %p2351
      $region130: #{tpu_custom_call.1} parent=5 // pred_check_branch
        %2354 = sbr.rel (%p2352) target = $region132
      $region131: #{tpu_custom_call.1} parent=5 // pred_region
        %s2355 = ssub.s32 %s31, 2
        // Predicated region
        $region133: #{tpu_custom_call.1} parent=131 // pred_check
          %p2356 = pneg %p338
        $region134: #{tpu_custom_call.1} parent=131 // pred_check_branch
          %2358 = sbr.rel (%p2356) target = $region136
        $region135: #{tpu_custom_call.1} parent=131 // pred_region
          %s2359 = sand.u32 %s323, 1
          %s2360 = scalar_lea.sflag [#allocation4], %s2359
          %s2361 = sand.u32 %s323, 1
          %s2362 = smul.addr %s2361, 16
          %s2363 = scalar_lea.vmem [#allocation23], %s2362
          %2364 = dma.done %s2360, 256
        $region136: #{tpu_custom_call.1} parent=131 // pred_fallthru
          _
      $region132: #{tpu_custom_call.1} parent=5 // pred_fallthru
        _
    $region6: #{tpu_custom_call.1} parent=1 // loop_footer
      %s35 = sadd.s32 1, %s31
    $region7: #{tpu_custom_call.1} parent=1 // loop_footer_branch
      %30 = sbr.rel target = $region3
    $region8: #{tpu_custom_call.1} parent=1 // loop_exit
      _
    %2365 = vsyncpa [#allocation3], 1
    %s2366 = scalar_lea.sflag [#allocation3], 1
    %2367 = vsyncpa %s2366, 1
    %2368 = vsyncpa [#allocation6], 1
    %2369 = vsyncpa [#allocation9], 1
    %2370 = vsyncpa [#allocation12], 1
    %2371 = vsyncpa [#allocation15], 1
    %2372 = vsyncpa [#allocation18], 1
    %2373 = vsyncpa [#allocation21], 1
    %2374 = vsyncpa [#allocation4], 1
    %s2375 = scalar_lea.sflag [#allocation4], 1
    %2376 = vsyncpa %s2375, 1

// kernel: tpu_custom_call.1
$region0: #{tpu_custom_call.1}
  #allocation0 [shape = 'u32[]', space=smem, size = 0x4, offset = 0x4, fixed_abs, tag = 'smem constant byte address 0x4 - core index']
  #allocation1 [shape = 'u32[144,128]{1,0:T(1,128)}', space=vmem, size = 0x12000, scoped, tag = 'internal scratch']
  %s0 = inlined_call_operand.hbm [shape: f32[2,16,128], index: 0, kind: input, shape index: {}]
  %s1 = inlined_call_operand.hbm [shape: f32[1,128], index: 1, kind: input, shape index: {}]
  %s2 = inlined_call_operand.hbm [shape: f32[1,128], index: 2, kind: input, shape index: {}]
  %s3 = inlined_call_operand.hbm [shape: bf16[128,384], index: 3, kind: input, shape index: {}]
  %s4 = inlined_call_operand.hbm [shape: f32[1,384], index: 4, kind: input, shape index: {}]
  %s5 = inlined_call_operand.hbm [shape: bf16[128,128], index: 5, kind: input, shape index: {}]
  %s6 = inlined_call_operand.hbm [shape: f32[1,128], index: 6, kind: input, shape index: {}]
  %s7 = inlined_call_operand.hbm [shape: f32[1,128], index: 7, kind: input, shape index: {}]
  %s8 = inlined_call_operand.hbm [shape: f32[1,128], index: 8, kind: input, shape index: {}]
  %s9 = inlined_call_operand.hbm [shape: bf16[128,512], index: 9, kind: input, shape index: {}]
  %s10 = inlined_call_operand.hbm [shape: f32[1,512], index: 10, kind: input, shape index: {}]
  %s11 = inlined_call_operand.hbm [shape: bf16[512,128], index: 11, kind: input, shape index: {}]
  %s12 = inlined_call_operand.hbm [shape: f32[1,128], index: 12, kind: input, shape index: {}]
  %s13 = inlined_call_operand.hbm [shape: f32[2,16,128], index: 13, kind: output, shape index: {}]
  %s14 = sld [smem:[#allocation0]]
  $region137: #{tpu_custom_call.1} parent=0
    _
  %s16 = ssub.s32 1, %s14
  %s17 = scalar_select 0, %s16, %s14
  $region1: #{tpu_custom_call.1} parent=0
    #allocation2 [shape = 'u8[16384]{0}', space=vmem, size = 0x4000, scoped, tag = 'input window, operand 0']
    #allocation3 [shape = 's32[2]{0}', space=sflag, size = 0x8, scoped, tag = 'scoped memory for tpu_custom_call.1']
    #allocation4 [shape = 's32[2]{0}', space=sflag, size = 0x8, scoped, tag = 'scoped memory for tpu_custom_call.1']
    #allocation5 [shape = 'u8[512]{0}', space=vmem, size = 0x400, scoped, tag = 'input window, operand 1, single buffered']
    #allocation6 [shape = 's32[1]{0}', space=sflag, size = 0x4, scoped, tag = 'scoped memory for tpu_custom_call.1']
    #allocation7 [shape = 'u8[512]{0}', space=vmem, size = 0x400, scoped, tag = 'input window, operand 2, single buffered']
    #allocation8 [shape = 'u8[98304]{0}', space=vmem, size = 0x18000, scoped, tag = 'input window, operand 3, single buffered']
    #allocation9 [shape = 's32[1]{0}', space=sflag, size = 0x4, scoped, tag = 'scoped memory for tpu_custom_call.1']
    #allocation10 [shape = 'u8[1536]{0}', space=vmem, size = 0x800, scoped, tag = 'input window, operand 4, single buffered']
    #allocation11 [shape = 'u8[32768]{0}', space=vmem, size = 0x8000, scoped, tag = 'input window, operand 5, single buffered']
    #allocation12 [shape = 's32[1]{0}', space=sflag, size = 0x4, scoped, tag = 'scoped memory for tpu_custom_call.1']
    #allocation13 [shape = 'u8[512]{0}', space=vmem, size = 0x400, scoped, tag = 'input window, operand 6, single buffered']
    #allocation14 [shape = 'u8[512]{0}', space=vmem, size = 0x400, scoped, tag = 'input window, operand 7, single buffered']
    #allocation15 [shape = 's32[1]{0}', space=sflag, size = 0x4, scoped, tag = 'scoped memory for tpu_custom_call.1']
    #allocation16 [shape = 'u8[512]{0}', space=vmem, size = 0x400, scoped, tag = 'input window, operand 8, single buffered']
    #allocation17 [shape = 'u8[131072]{0}', space=vmem, size = 0x20000, scoped, tag = 'input window, operand 9, single buffered']
    #allocation18 [shape = 's32[1]{0}', space=sflag, size = 0x4, scoped, tag = 'scoped memory for tpu_custom_call.1']
    #allocation19 [shape = 'u8[2048]{0}', space=vmem, size = 0x800, scoped, tag = 'input window, operand 10, single buffered']
    #allocation20 [shape = 'u8[131072]{0}', space=vmem, size = 0x20000, scoped, tag = 'input window, operand 11, single buffered']
    #allocation21 [shape = 's32[1]{0}', space=sflag, size = 0x4, scoped, tag = 'scoped memory for tpu_custom_call.1']
    #allocation22 [shape = 'u8[512]{0}', space=vmem, size = 0x400, scoped, tag = 'input window, operand 12, single buffered']
    #allocation23 [shape = 'u8[16384]{0}', space=vmem, size = 0x4000, scoped, tag = 'output window, operand 0']
    %18 = vsyncpa [#allocation3], 0
    %s19 = scalar_lea.sflag [#allocation3], 1
    %20 = vsyncpa %s19, 0
    %21 = vsyncpa [#allocation6], 0
    %22 = vsyncpa [#allocation9], 0
    %23 = vsyncpa [#allocation12], 0
    %24 = vsyncpa [#allocation15], 0
    %25 = vsyncpa [#allocation18], 0
    %26 = vsyncpa [#allocation21], 0
    %27 = vsyncpa [#allocation4], 0
    %s28 = scalar_lea.sflag [#allocation4], 1
    %29 = vsyncpa %s28, 0
    loop: start=0, step=1, limit=4
    $region2: #{tpu_custom_call.1} parent=1 // loop_pre_header
      _
    $region3: #{tpu_custom_call.1} parent=1 // loop_header
      %s31 = sphi 0, %s35
      %p32 = scmp.ge.s32.totalorder %s31, 4
      %s41 = sphi 0, %s43
      %s44 = sphi 0, %s41
      %s45 = sphi 0, %s44
      %s61 = sphi 0, %s45
      %s65 = sphi 0, %s65
      %s67 = sphi 0, %s65
      %s68 = sphi 0, %s67
      %s82 = sphi 0, %s68
      %s86 = sphi 0, %s86
      %s88 = sphi 0, %s86
      %s89 = sphi 0, %s88
      %s103 = sphi 0, %s89
      %s107 = sphi 0, %s107
      %s109 = sphi 0, %s107
      %s110 = sphi 0, %s109
      %s124 = sphi 0, %s110
      %s128 = sphi 0, %s128
      %s130 = sphi 0, %s128
      %s131 = sphi 0, %s130
      %s145 = sphi 0, %s131
      %s149 = sphi 0, %s149
      %s151 = sphi 0, %s149
      %s152 = sphi 0, %s151
      %s166 = sphi 0, %s152
      %s170 = sphi 0, %s170
      %s172 = sphi 0, %s170
      %s173 = sphi 0, %s172
      %s187 = sphi 0, %s173
      %s191 = sphi 0, %s191
      %s193 = sphi 0, %s191
      %s194 = sphi 0, %s193
      %s208 = sphi 0, %s194
      %s212 = sphi 0, %s212
      %s214 = sphi 0, %s212
      %s215 = sphi 0, %s214
      %s229 = sphi 0, %s215
      %s233 = sphi 0, %s233
      %s235 = sphi 0, %s233
      %s236 = sphi 0, %s235
      %s250 = sphi 0, %s236
      %s254 = sphi 0, %s254
      %s256 = sphi 0, %s254
      %s257 = sphi 0, %s256
      %s271 = sphi 0, %s257
      %s275 = sphi 0, %s275
      %s277 = sphi 0, %s275
      %s278 = sphi 0, %s277
      %s292 = sphi 0, %s278
      %s296 = sphi 0, %s296
      %s298 = sphi 0, %s296
      %s299 = sphi 0, %s298
      %s313 = sphi 0, %s299
      %s319 = sphi 0, %s321
      %s322 = sphi 0, %s319
      %s323 = sphi 0, %s322
      %s339 = sphi 0, %s323
    $region4: #{tpu_custom_call.1} parent=1 // loop_header_branch
      %34 = sbr.rel (%p32) target = $region8
    $region5: #{tpu_custom_call.1} parent=1 // loop_body
      %s36 = ssub.s32 %s31, 1
      %s37 = ssub.s32 %s31, 2
      %s38 = sadd.s32 %s31, 1
      %s39 = ssub.s32 %s31, %s38
      %p40 = scmp.eq.s32.totalorder %s39, 0
      %s42 = sadd.s32 %s41, 1
      %s43 = scalar_select %p40, %s41, %s42
      %p46 = pneg %p40
      %p47 = scmp.eq.s32.totalorder %s31, 1
      %p48 = por %p46, %p47
      %p49 = scmp.ne.s32.totalorder %s41, %s44
      %p50 = scmp.eq.s32.totalorder %s31, 0
      %p51 = por %p49, %p50
      %p52 = scmp.ne.s32.totalorder %s41, %s44
      %p53 = scmp.eq.s32.totalorder %s36, 1
      %p54 = por %p52, %p53
      %p55 = scmp.ne.s32.totalorder %s44, %s45
      %p56 = scmp.eq.s32.totalorder %s36, 0
      %p57 = por %p55, %p56
      %p58 = scmp.ne.s32.totalorder %s44, %s45
      %p59 = scmp.eq.s32.totalorder %s37, 1
      %p60 = por %p58, %p59
      %p62 = scmp.ne.s32.totalorder %s45, %s61
      %p63 = scmp.eq.s32.totalorder %s37, 0
      %p64 = por %p62, %p63
      %s66 = sadd.s32 %s65, 1
      %p69 = scmp.eq.s32.totalorder %s31, 1
      %p70 = scmp.ne.s32.totalorder %s65, %s67
      %p71 = scmp.eq.s32.totalorder %s31, 0
      %p72 = por %p70, %p71
      %p73 = scmp.ne.s32.totalorder %s65, %s67
      %p74 = scmp.eq.s32.totalorder %s36, 1
      %p75 = por %p73, %p74
      %p76 = scmp.ne.s32.totalorder %s67, %s68
      %p77 = scmp.eq.s32.totalorder %s36, 0
      %p78 = por %p76, %p77
      %p79 = scmp.ne.s32.totalorder %s67, %s68
      %p80 = scmp.eq.s32.totalorder %s37, 1
      %p81 = por %p79, %p80
      %p83 = scmp.ne.s32.totalorder %s68, %s82
      %p84 = scmp.eq.s32.totalorder %s37, 0
      %p85 = por %p83, %p84
      %s87 = sadd.s32 %s86, 1
      %p90 = scmp.eq.s32.totalorder %s31, 1
      %p91 = scmp.ne.s32.totalorder %s86, %s88
      %p92 = scmp.eq.s32.totalorder %s31, 0
      %p93 = por %p91, %p92
      %p94 = scmp.ne.s32.totalorder %s86, %s88
      %p95 = scmp.eq.s32.totalorder %s36, 1
      %p96 = por %p94, %p95
      %p97 = scmp.ne.s32.totalorder %s88, %s89
      %p98 = scmp.eq.s32.totalorder %s36, 0
      %p99 = por %p97, %p98
      %p100 = scmp.ne.s32.totalorder %s88, %s89
      %p101 = scmp.eq.s32.totalorder %s37, 1
      %p102 = por %p100, %p101
      %p104 = scmp.ne.s32.totalorder %s89, %s103
      %p105 = scmp.eq.s32.totalorder %s37, 0
      %p106 = por %p104, %p105
      %s108 = sadd.s32 %s107, 1
      %p111 = scmp.eq.s32.totalorder %s31, 1
      %p112 = scmp.ne.s32.totalorder %s107, %s109
      %p113 = scmp.eq.s32.totalorder %s31, 0
      %p114 = por %p112, %p113
      %p115 = scmp.ne.s32.totalorder %s107, %s109
      %p116 = scmp.eq.s32.totalorder %s36, 1
      %p117 = por %p115, %p116
      %p118 = scmp.ne.s32.totalorder %s109, %s110
      %p119 = scmp.eq.s32.totalorder %s36, 0
      %p120 = por %p118, %p119
      %p121 = scmp.ne.s32.totalorder %s109, %s110
      %p122 = scmp.eq.s32.totalorder %s37, 1
      %p123 = por %p121, %p122
      %p125 = scmp.ne.s32.totalorder %s110, %s124
      %p126 = scmp.eq.s32.totalorder %s37, 0
      %p127 = por %p125, %p126
      %s129 = sadd.s32 %s128, 1
      %p132 = scmp.eq.s32.totalorder %s31, 1
      %p133 = scmp.ne.s32.totalorder %s128, %s130
      %p134 = scmp.eq.s32.totalorder %s31, 0
      %p135 = por %p133, %p134
      %p136 = scmp.ne.s32.totalorder %s128, %s130
      %p137 = scmp.eq.s32.totalorder %s36, 1
      %p138 = por %p136, %p137
      %p139 = scmp.ne.s32.totalorder %s130, %s131
      %p140 = scmp.eq.s32.totalorder %s36, 0
      %p141 = por %p139, %p140
      %p142 = scmp.ne.s32.totalorder %s130, %s131
      %p143 = scmp.eq.s32.totalorder %s37, 1
      %p144 = por %p142, %p143
      %p146 = scmp.ne.s32.totalorder %s131, %s145
      %p147 = scmp.eq.s32.totalorder %s37, 0
      %p148 = por %p146, %p147
      %s150 = sadd.s32 %s149, 1
      %p153 = scmp.eq.s32.totalorder %s31, 1
      %p154 = scmp.ne.s32.totalorder %s149, %s151
      %p155 = scmp.eq.s32.totalorder %s31, 0
      %p156 = por %p154, %p155
      %p157 = scmp.ne.s32.totalorder %s149, %s151
      %p158 = scmp.eq.s32.totalorder %s36, 1
      %p159 = por %p157, %p158
      %p160 = scmp.ne.s32.totalorder %s151, %s152
      %p161 = scmp.eq.s32.totalorder %s36, 0
      %p162 = por %p160, %p161
      %p163 = scmp.ne.s32.totalorder %s151, %s152
      %p164 = scmp.eq.s32.totalorder %s37, 1
      %p165 = por %p163, %p164
      %p167 = scmp.ne.s32.totalorder %s152, %s166
      %p168 = scmp.eq.s32.totalorder %s37, 0
      %p169 = por %p167, %p168
      %s171 = sadd.s32 %s170, 1
      %p174 = scmp.eq.s32.totalorder %s31, 1
      %p175 = scmp.ne.s32.totalorder %s170, %s172
      %p176 = scmp.eq.s32.totalorder %s31, 0
      %p177 = por %p175, %p176
      %p178 = scmp.ne.s32.totalorder %s170, %s172
      %p179 = scmp.eq.s32.totalorder %s36, 1
      %p180 = por %p178, %p179
      %p181 = scmp.ne.s32.totalorder %s172, %s173
      %p182 = scmp.eq.s32.totalorder %s36, 0
      %p183 = por %p181, %p182
      %p184 = scmp.ne.s32.totalorder %s172, %s173
      %p185 = scmp.eq.s32.totalorder %s37, 1
      %p186 = por %p184, %p185
      %p188 = scmp.ne.s32.totalorder %s173, %s187
      %p189 = scmp.eq.s32.totalorder %s37, 0
      %p190 = por %p188, %p189
      %s192 = sadd.s32 %s191, 1
      %p195 = scmp.eq.s32.totalorder %s31, 1
      %p196 = scmp.ne.s32.totalorder %s191, %s193
      %p197 = scmp.eq.s32.totalorder %s31, 0
      %p198 = por %p196, %p197
      %p199 = scmp.ne.s32.totalorder %s191, %s193
      %p200 = scmp.eq.s32.totalorder %s36, 1
      %p201 = por %p199, %p200
      %p202 = scmp.ne.s32.totalorder %s193, %s194
      %p203 = scmp.eq.s32.totalorder %s36, 0
      %p204 = por %p202, %p203
      %p205 = scmp.ne.s32.totalorder %s193, %s194
      %p206 = scmp.eq.s32.totalorder %s37, 1
      %p207 = por %p205, %p206
      %p209 = scmp.ne.s32.totalorder %s194, %s208
      %p210 = scmp.eq.s32.totalorder %s37, 0
      %p211 = por %p209, %p210
      %s213 = sadd.s32 %s212, 1
      %p216 = scmp.eq.s32.totalorder %s31, 1
      %p217 = scmp.ne.s32.totalorder %s212, %s214
      %p218 = scmp.eq.s32.totalorder %s31, 0
      %p219 = por %p217, %p218
      %p220 = scmp.ne.s32.totalorder %s212, %s214
      %p221 = scmp.eq.s32.totalorder %s36, 1
      %p222 = por %p220, %p221
      %p223 = scmp.ne.s32.totalorder %s214, %s215
      %p224 = scmp.eq.s32.totalorder %s36, 0
      %p225 = por %p223, %p224
      %p226 = scmp.ne.s32.totalorder %s214, %s215
      %p227 = scmp.eq.s32.totalorder %s37, 1
      %p228 = por %p226, %p227
      %p230 = scmp.ne.s32.totalorder %s215, %s229
      %p231 = scmp.eq.s32.totalorder %s37, 0
      %p232 = por %p230, %p231
      %s234 = sadd.s32 %s233, 1
      %p237 = scmp.eq.s32.totalorder %s31, 1
      %p238 = scmp.ne.s32.totalorder %s233, %s235
      %p239 = scmp.eq.s32.totalorder %s31, 0
      %p240 = por %p238, %p239
      %p241 = scmp.ne.s32.totalorder %s233, %s235
      %p242 = scmp.eq.s32.totalorder %s36, 1
      %p243 = por %p241, %p242
      %p244 = scmp.ne.s32.totalorder %s235, %s236
      %p245 = scmp.eq.s32.totalorder %s36, 0
      %p246 = por %p244, %p245
      %p247 = scmp.ne.s32.totalorder %s235, %s236
      %p248 = scmp.eq.s32.totalorder %s37, 1
      %p249 = por %p247, %p248
      %p251 = scmp.ne.s32.totalorder %s236, %s250
      %p252 = scmp.eq.s32.totalorder %s37, 0
      %p253 = por %p251, %p252
      %s255 = sadd.s32 %s254, 1
      %p258 = scmp.eq.s32.totalorder %s31, 1
      %p259 = scmp.ne.s32.totalorder %s254, %s256
      %p260 = scmp.eq.s32.totalorder %s31, 0
      %p261 = por %p259, %p260
      %p262 = scmp.ne.s32.totalorder %s254, %s256
      %p263 = scmp.eq.s32.totalorder %s36, 1
      %p264 = por %p262, %p263
      %p265 = scmp.ne.s32.totalorder %s256, %s257
      %p266 = scmp.eq.s32.totalorder %s36, 0
      %p267 = por %p265, %p266
      %p268 = scmp.ne.s32.totalorder %s256, %s257
      %p269 = scmp.eq.s32.totalorder %s37, 1
      %p270 = por %p268, %p269
      %p272 = scmp.ne.s32.totalorder %s257, %s271
      %p273 = scmp.eq.s32.totalorder %s37, 0
      %p274 = por %p272, %p273
      %s276 = sadd.s32 %s275, 1
      %p279 = scmp.eq.s32.totalorder %s31, 1
      %p280 = scmp.ne.s32.totalorder %s275, %s277
      %p281 = scmp.eq.s32.totalorder %s31, 0
      %p282 = por %p280, %p281
      %p283 = scmp.ne.s32.totalorder %s275, %s277
      %p284 = scmp.eq.s32.totalorder %s36, 1
      %p285 = por %p283, %p284
      %p286 = scmp.ne.s32.totalorder %s277, %s278
      %p287 = scmp.eq.s32.totalorder %s36, 0
      %p288 = por %p286, %p287
      %p289 = scmp.ne.s32.totalorder %s277, %s278
      %p290 = scmp.eq.s32.totalorder %s37, 1
      %p291 = por %p289, %p290
      %p293 = scmp.ne.s32.totalorder %s278, %s292
      %p294 = scmp.eq.s32.totalorder %s37, 0
      %p295 = por %p293, %p294
      %s297 = sadd.s32 %s296, 1
      %p300 = scmp.eq.s32.totalorder %s31, 1
      %p301 = scmp.ne.s32.totalorder %s296, %s298
      %p302 = scmp.eq.s32.totalorder %s31, 0
      %p303 = por %p301, %p302
      %p304 = scmp.ne.s32.totalorder %s296, %s298
      %p305 = scmp.eq.s32.totalorder %s36, 1
      %p306 = por %p304, %p305
      %p307 = scmp.ne.s32.totalorder %s298, %s299
      %p308 = scmp.eq.s32.totalorder %s36, 0
      %p309 = por %p307, %p308
      %p310 = scmp.ne.s32.totalorder %s298, %s299
      %p311 = scmp.eq.s32.totalorder %s37, 1
      %p312 = por %p310, %p311
      %p314 = scmp.ne.s32.totalorder %s299, %s313
      %p315 = scmp.eq.s32.totalorder %s37, 0
      %p316 = por %p314, %p315
      %s317 = ssub.s32 %s31, %s38
      %p318 = scmp.eq.s32.totalorder %s317, 0
      %s320 = sadd.s32 %s319, 1
      %s321 = scalar_select %p318, %s319, %s320
      %p324 = pneg %p318
      %p325 = scmp.eq.s32.totalorder %s31, 1
      %p326 = por %p324, %p325
      %p327 = scmp.ne.s32.totalorder %s319, %s322
      %p328 = scmp.eq.s32.totalorder %s31, 0
      %p329 = por %p327, %p328
      %p330 = scmp.ne.s32.totalorder %s319, %s322
      %p331 = scmp.eq.s32.totalorder %s36, 1
      %p332 = por %p330, %p331
      %p333 = scmp.ne.s32.totalorder %s322, %s323
      %p334 = scmp.eq.s32.totalorder %s36, 0
      %p335 = por %p333, %p334
      %p336 = scmp.ne.s32.totalorder %s322, %s323
      %p337 = scmp.eq.s32.totalorder %s37, 1
      %p338 = por %p336, %p337
      %p340 = scmp.ne.s32.totalorder %s323, %s339
      %p341 = scmp.eq.s32.totalorder %s37, 0
      %p342 = por %p340, %p341
      %p343 = scmp.le.s32.totalorder 1, %s31
      %p344 = scmp.lt.s32.totalorder %s31, 3
      %p345 = pnand %p343, %p344
      %p346 = pneg %p345
      // Predicated region
      $region9: #{tpu_custom_call.1} parent=5 // pred_check
        _
      $region10: #{tpu_custom_call.1} parent=5 // pred_check_branch
        %348 = sbr.rel (%p345) target = $region12
      $region11: #{tpu_custom_call.1} parent=5 // pred_region
        %s349 = ssub.s32 %s31, 1
        // Predicated region
        $region13: #{tpu_custom_call.1} parent=11 // pred_check
          %p350 = pneg %p78
        $region14: #{tpu_custom_call.1} parent=11 // pred_check_branch
          %352 = sbr.rel (%p350) target = $region16
        $region15: #{tpu_custom_call.1} parent=11 // pred_region
          %s354 = ssub.s32 16, 16
          %355 = vsyncadd [#allocation6], %s354
          %s357 = sshll.u32 [#allocation5], 4
          %s358 = int_to_ptr.vmem [resolvable:$true] %s357
          %360 = dma.hbm_to_vmem [thread:$0]  %s1, 16, %s358, [#allocation6]
        $region16: #{tpu_custom_call.1} parent=11 // pred_fallthru
          _
        // Predicated region
        $region17: #{tpu_custom_call.1} parent=11 // pred_check
          %p361 = pneg %p99
        $region18: #{tpu_custom_call.1} parent=11 // pred_check_branch
          %363 = sbr.rel (%p361) target = $region20
        $region19: #{tpu_custom_call.1} parent=11 // pred_region
          %s365 = ssub.s32 16, 16
          %366 = vsyncadd [#allocation6], %s365
          %s368 = sshll.u32 [#allocation7], 4
          %s369 = int_to_ptr.vmem [resolvable:$true] %s368
          %371 = dma.hbm_to_vmem [thread:$0]  %s2, 16, %s369, [#allocation6]
        $region20: #{tpu_custom_call.1} parent=11 // pred_fallthru
          _
        // Predicated region
        $region21: #{tpu_custom_call.1} parent=11 // pred_check
          %p372 = pneg %p120
        $region22: #{tpu_custom_call.1} parent=11 // pred_check_branch
          %374 = sbr.rel (%p372) target = $region24
        $region23: #{tpu_custom_call.1} parent=11 // pred_region
          %s376 = ssub.s32 3072, 3072
          %377 = vsyncadd [#allocation9], %s376
          %s378 = sshll.u32 [#allocation8], 4
          %s379 = int_to_ptr.vmem [resolvable:$true] %s378
          %384 = dma.hbm_to_vmem [thread:$0]  %s3, 3072, %s379, [#allocation9], 192, 192, 12
        $region24: #{tpu_custom_call.1} parent=11 // pred_fallthru
          _
        // Predicated region
        $region25: #{tpu_custom_call.1} parent=11 // pred_check
          %p385 = pneg %p141
        $region26: #{tpu_custom_call.1} parent=11 // pred_check_branch
          %387 = sbr.rel (%p385) target = $region28
        $region27: #{tpu_custom_call.1} parent=11 // pred_region
          %s389 = ssub.s32 48, 48
          %390 = vsyncadd [#allocation9], %s389
          %s392 = sshll.u32 [#allocation10], 4
          %s393 = int_to_ptr.vmem [resolvable:$true] %s392
          %395 = dma.hbm_to_vmem [thread:$0]  %s4, 48, %s393, [#allocation9]
        $region28: #{tpu_custom_call.1} parent=11 // pred_fallthru
          _
        // Predicated region
        $region29: #{tpu_custom_call.1} parent=11 // pred_check
          %p396 = pneg %p162
        $region30: #{tpu_custom_call.1} parent=11 // pred_check_branch
          %398 = sbr.rel (%p396) target = $region32
        $region31: #{tpu_custom_call.1} parent=11 // pred_region
          %s400 = ssub.s32 1024, 1024
          %401 = vsyncadd [#allocation12], %s400
          %s402 = sshll.u32 [#allocation11], 4
          %s403 = int_to_ptr.vmem [resolvable:$true] %s402
          %408 = dma.hbm_to_vmem [thread:$0]  %s5, 1024, %s403, [#allocation12], 64, 64, 4
        $region32: #{tpu_custom_call.1} parent=11 // pred_fallthru
          _
        // Predicated region
        $region33: #{tpu_custom_call.1} parent=11 // pred_check
          %p409 = pneg %p183
        $region34: #{tpu_custom_call.1} parent=11 // pred_check_branch
          %411 = sbr.rel (%p409) target = $region36
        $region35: #{tpu_custom_call.1} parent=11 // pred_region
          %s413 = ssub.s32 16, 16
          %414 = vsyncadd [#allocation12], %s413
          %s416 = sshll.u32 [#allocation13], 4
          %s417 = int_to_ptr.vmem [resolvable:$true] %s416
          %419 = dma.hbm_to_vmem [thread:$0]  %s6, 16, %s417, [#allocation12]
        $region36: #{tpu_custom_call.1} parent=11 // pred_fallthru
          _
        // Predicated region
        $region37: #{tpu_custom_call.1} parent=11 // pred_check
          %p420 = pneg %p204
        $region38: #{tpu_custom_call.1} parent=11 // pred_check_branch
          %422 = sbr.rel (%p420) target = $region40
        $region39: #{tpu_custom_call.1} parent=11 // pred_region
          %s424 = ssub.s32 16, 16
          %425 = vsyncadd [#allocation15], %s424
          %s427 = sshll.u32 [#allocation14], 4
          %s428 = int_to_ptr.vmem [resolvable:$true] %s427
          %430 = dma.hbm_to_vmem [thread:$0]  %s7, 16, %s428, [#allocation15]
        $region40: #{tpu_custom_call.1} parent=11 // pred_fallthru
          _
        // Predicated region
        $region41: #{tpu_custom_call.1} parent=11 // pred_check
          %p431 = pneg %p225
        $region42: #{tpu_custom_call.1} parent=11 // pred_check_branch
          %433 = sbr.rel (%p431) target = $region44
        $region43: #{tpu_custom_call.1} parent=11 // pred_region
          %s435 = ssub.s32 16, 16
          %436 = vsyncadd [#allocation15], %s435
          %s438 = sshll.u32 [#allocation16], 4
          %s439 = int_to_ptr.vmem [resolvable:$true] %s438
          %441 = dma.hbm_to_vmem [thread:$0]  %s8, 16, %s439, [#allocation15]
        $region44: #{tpu_custom_call.1} parent=11 // pred_fallthru
          _
        // Predicated region
        $region45: #{tpu_custom_call.1} parent=11 // pred_check
          %p442 = pneg %p246
        $region46: #{tpu_custom_call.1} parent=11 // pred_check_branch
          %444 = sbr.rel (%p442) target = $region48
        $region47: #{tpu_custom_call.1} parent=11 // pred_region
          %s446 = ssub.s32 4096, 4096
          %447 = vsyncadd [#allocation18], %s446
          %s448 = sshll.u32 [#allocation17], 4
          %s449 = int_to_ptr.vmem [resolvable:$true] %s448
          %454 = dma.hbm_to_vmem [thread:$0]  %s9, 4096, %s449, [#allocation18], 256, 256, 16
        $region48: #{tpu_custom_call.1} parent=11 // pred_fallthru
          _
        // Predicated region
        $region49: #{tpu_custom_call.1} parent=11 // pred_check
          %p455 = pneg %p267
        $region50: #{tpu_custom_call.1} parent=11 // pred_check_branch
          %457 = sbr.rel (%p455) target = $region52
        $region51: #{tpu_custom_call.1} parent=11 // pred_region
          %s459 = ssub.s32 64, 64
          %460 = vsyncadd [#allocation18], %s459
          %s462 = sshll.u32 [#allocation19], 4
          %s463 = int_to_ptr.vmem [resolvable:$true] %s462
          %465 = dma.hbm_to_vmem [thread:$0]  %s10, 64, %s463, [#allocation18]
        $region52: #{tpu_custom_call.1} parent=11 // pred_fallthru
          _
        // Predicated region
        $region53: #{tpu_custom_call.1} parent=11 // pred_check
          %p466 = pneg %p288
        $region54: #{tpu_custom_call.1} parent=11 // pred_check_branch
          %468 = sbr.rel (%p466) target = $region56
        $region55: #{tpu_custom_call.1} parent=11 // pred_region
          %s470 = ssub.s32 4096, 4096
          %471 = vsyncadd [#allocation21], %s470
          %s472 = sshll.u32 [#allocation20], 4
          %s473 = int_to_ptr.vmem [resolvable:$true] %s472
          %478 = dma.hbm_to_vmem [thread:$0]  %s11, 4096, %s473, [#allocation21], 64, 64, 4
        $region56: #{tpu_custom_call.1} parent=11 // pred_fallthru
          _
        // Predicated region
        $region57: #{tpu_custom_call.1} parent=11 // pred_check
          %p479 = pneg %p309
        $region58: #{tpu_custom_call.1} parent=11 // pred_check_branch
          %481 = sbr.rel (%p479) target = $region60
        $region59: #{tpu_custom_call.1} parent=11 // pred_region
          %s483 = ssub.s32 16, 16
          %484 = vsyncadd [#allocation21], %s483
          %s486 = sshll.u32 [#allocation22], 4
          %s487 = int_to_ptr.vmem [resolvable:$true] %s486
          %489 = dma.hbm_to_vmem [thread:$0]  %s12, 16, %s487, [#allocation21]
        $region60: #{tpu_custom_call.1} parent=11 // pred_fallthru
          _
      $region12: #{tpu_custom_call.1} parent=5 // pred_fallthru
        _
      %p490 = scmp.lt.s32.totalorder %s31, 2
      // Predicated region
      $region61: #{tpu_custom_call.1} parent=5 // pred_check
        %p491 = pneg %p490
      $region62: #{tpu_custom_call.1} parent=5 // pred_check_branch
        %493 = sbr.rel (%p491) target = $region64
      $region63: #{tpu_custom_call.1} parent=5 // pred_region
        // Predicated region
        $region65: #{tpu_custom_call.1} parent=63 // pred_check
          %p494 = pneg %p51
        $region66: #{tpu_custom_call.1} parent=63 // pred_check_branch
          %496 = sbr.rel (%p494) target = $region68
        $region67: #{tpu_custom_call.1} parent=63 // pred_region
          %s497 = sand.u32 %s41, 1
          %s498 = scalar_lea.sflag [#allocation3], %s497
          %s499 = sand.u32 %s41, 1
          %s500 = smul.addr %s499, 16
          %s501 = scalar_lea.vmem [#allocation2], %s500
          %s503 = ssub.s32 256, 256
          %504 = vsyncadd %s498, %s503
          %s505 = smul.addr %s31, 2
          %s506 = smul.addr %s505, 128
          %s507 = scalar_lea.hbm %s0, %s506
          %s508 = sshll.u32 %s501, 4
          %s509 = int_to_ptr.vmem [resolvable:$true] %s508
          %514 = dma.hbm_to_vmem [thread:$0]  %s507, 256, %s509, %s498, 128, 128, 8
        $region68: #{tpu_custom_call.1} parent=63 // pred_fallthru
          _
      $region64: #{tpu_custom_call.1} parent=5 // pred_fallthru
        _
      %p515 = scmp.le.s32.totalorder 1, %s31
      %p516 = scmp.lt.s32.totalorder %s31, 3
      %p517 = pnand %p515, %p516
      %p518 = pneg %p517
      // Predicated region
      $region69: #{tpu_custom_call.1} parent=5 // pred_check
        _
      $region70: #{tpu_custom_call.1} parent=5 // pred_check_branch
        %520 = sbr.rel (%p517) target = $region72
      $region71: #{tpu_custom_call.1} parent=5 // pred_region
        %s521 = ssub.s32 %s31, 1
        %s522 = sand.u32 %s44, 1
        %s523 = scalar_lea.sflag [#allocation3], %s522
        %s524 = sand.u32 %s44, 1
        %s525 = smul.addr %s524, 16
        %s526 = scalar_lea.vmem [#allocation2], %s525
        // Predicated region
        $region73: #{tpu_custom_call.1} parent=71 // pred_check
          %p527 = pneg %p57
        $region74: #{tpu_custom_call.1} parent=71 // pred_check_branch
          %529 = sbr.rel (%p527) target = $region76
        $region75: #{tpu_custom_call.1} parent=71 // pred_region
          %530 = dma.done %s523, 256
        $region76: #{tpu_custom_call.1} parent=71 // pred_fallthru
          _
        // Predicated region
        $region77: #{tpu_custom_call.1} parent=71 // pred_check
          %p531 = pneg %p78
        $region78: #{tpu_custom_call.1} parent=71 // pred_check_branch
          %533 = sbr.rel (%p531) target = $region80
        $region79: #{tpu_custom_call.1} parent=71 // pred_region
          %534 = dma.done [#allocation6], 16
        $region80: #{tpu_custom_call.1} parent=71 // pred_fallthru
          _
        // Predicated region
        $region81: #{tpu_custom_call.1} parent=71 // pred_check
          %p535 = pneg %p99
        $region82: #{tpu_custom_call.1} parent=71 // pred_check_branch
          %537 = sbr.rel (%p535) target = $region84
        $region83: #{tpu_custom_call.1} parent=71 // pred_region
          %538 = dma.done [#allocation6], 16
        $region84: #{tpu_custom_call.1} parent=71 // pred_fallthru
          _
        // Predicated region
        $region85: #{tpu_custom_call.1} parent=71 // pred_check
          %p539 = pneg %p120
        $region86: #{tpu_custom_call.1} parent=71 // pred_check_branch
          %541 = sbr.rel (%p539) target = $region88
        $region87: #{tpu_custom_call.1} parent=71 // pred_region
          %542 = dma.done [#allocation9], 3072
        $region88: #{tpu_custom_call.1} parent=71 // pred_fallthru
          _
        // Predicated region
        $region89: #{tpu_custom_call.1} parent=71 // pred_check
          %p543 = pneg %p141
        $region90: #{tpu_custom_call.1} parent=71 // pred_check_branch
          %545 = sbr.rel (%p543) target = $region92
        $region91: #{tpu_custom_call.1} parent=71 // pred_region
          %546 = dma.done [#allocation9], 48
        $region92: #{tpu_custom_call.1} parent=71 // pred_fallthru
          _
        // Predicated region
        $region93: #{tpu_custom_call.1} parent=71 // pred_check
          %p547 = pneg %p162
        $region94: #{tpu_custom_call.1} parent=71 // pred_check_branch
          %549 = sbr.rel (%p547) target = $region96
        $region95: #{tpu_custom_call.1} parent=71 // pred_region
          %550 = dma.done [#allocation12], 1024
        $region96: #{tpu_custom_call.1} parent=71 // pred_fallthru
          _
        // Predicated region
        $region97: #{tpu_custom_call.1} parent=71 // pred_check
          %p551 = pneg %p183
        $region98: #{tpu_custom_call.1} parent=71 // pred_check_branch
          %553 = sbr.rel (%p551) target = $region100
        $region99: #{tpu_custom_call.1} parent=71 // pred_region
          %554 = dma.done [#allocation12], 16
        $region100: #{tpu_custom_call.1} parent=71 // pred_fallthru
          _
        // Predicated region
        $region101: #{tpu_custom_call.1} parent=71 // pred_check
          %p555 = pneg %p204
        $region102: #{tpu_custom_call.1} parent=71 // pred_check_branch
          %557 = sbr.rel (%p555) target = $region104
        $region103: #{tpu_custom_call.1} parent=71 // pred_region
          %558 = dma.done [#allocation15], 16
        $region104: #{tpu_custom_call.1} parent=71 // pred_fallthru
          _
        // Predicated region
        $region105: #{tpu_custom_call.1} parent=71 // pred_check
          %p559 = pneg %p225
        $region106: #{tpu_custom_call.1} parent=71 // pred_check_branch
          %561 = sbr.rel (%p559) target = $region108
        $region107: #{tpu_custom_call.1} parent=71 // pred_region
          %562 = dma.done [#allocation15], 16
        $region108: #{tpu_custom_call.1} parent=71 // pred_fallthru
          _
        // Predicated region
        $region109: #{tpu_custom_call.1} parent=71 // pred_check
          %p563 = pneg %p246
        $region110: #{tpu_custom_call.1} parent=71 // pred_check_branch
          %565 = sbr.rel (%p563) target = $region112
        $region111: #{tpu_custom_call.1} parent=71 // pred_region
          %566 = dma.done [#allocation18], 4096
        $region112: #{tpu_custom_call.1} parent=71 // pred_fallthru
          _
        // Predicated region
        $region113: #{tpu_custom_call.1} parent=71 // pred_check
          %p567 = pneg %p267
        $region114: #{tpu_custom_call.1} parent=71 // pred_check_branch
          %569 = sbr.rel (%p567) target = $region116
        $region115: #{tpu_custom_call.1} parent=71 // pred_region
          %570 = dma.done [#allocation18], 64
        $region116: #{tpu_custom_call.1} parent=71 // pred_fallthru
          _
        // Predicated region
        $region117: #{tpu_custom_call.1} parent=71 // pred_check
          %p571 = pneg %p288
        $region118: #{tpu_custom_call.1} parent=71 // pred_check_branch
          %573 = sbr.rel (%p571) target = $region120
        $region119: #{tpu_custom_call.1} parent=71 // pred_region
          %574 = dma.done [#allocation21], 4096
        $region120: #{tpu_custom_call.1} parent=71 // pred_fallthru
          _
        // Predicated region
        $region121: #{tpu_custom_call.1} parent=71 // pred_check
          %p575 = pneg %p309
        $region122: #{tpu_custom_call.1} parent=71 // pred_check_branch
          %577 = sbr.rel (%p575) target = $region124
        $region123: #{tpu_custom_call.1} parent=71 // pred_region
          %578 = dma.done [#allocation21], 16
        $region124: #{tpu_custom_call.1} parent=71 // pred_fallthru
          _
        %s579 = sand.u32 %s44, 1
        %s580 = scalar_lea.sflag [#allocation3], %s579
        %s581 = sand.u32 %s44, 1
        %s582 = smul.addr %s581, 16
        %s583 = scalar_lea.vmem [#allocation2], %s582
        %p584 = pneg %p57
        %p585 = pneg %p54
        %p586 = pneg %p78
        %p587 = pneg %p75
        %p588 = pneg %p99
        %p589 = pneg %p96
        %p590 = pneg %p120
        %p591 = pneg %p117
        %p592 = pneg %p141
        %p593 = pneg %p138
        %p594 = pneg %p162
        %p595 = pneg %p159
        %p596 = pneg %p183
        %p597 = pneg %p180
        %p598 = pneg %p204
        %p599 = pneg %p201
        %p600 = pneg %p225
        %p601 = pneg %p222
        %p602 = pneg %p246
        %p603 = pneg %p243
        %p604 = pneg %p267
        %p605 = pneg %p264
        %p606 = pneg %p288
        %p607 = pneg %p285
        %p608 = pneg %p309
        %p609 = pneg %p306
        %p610 = pneg %p335
        %p611 = pneg %p332
        %s612 = sand.u32 %s322, 1
        %s613 = scalar_lea.sflag [#allocation4], %s612
        %s614 = sand.u32 %s322, 1
        %s615 = smul.addr %s614, 16
        %s616 = scalar_lea.vmem [#allocation23], %s615
        %v618 = vld [vmem:[%s526] sm:$0xff]
        %v619 = vld [vmem:[%s526 + $0x8] sm:$0xff]
        %v620 = vld [vmem:[#allocation5] sm:$0x1]
        %v621 = vld [vmem:[#allocation7] sm:$0x1]
        %622 = vadd.xlane.f32.xlu0 %v618
        %v623 = vpop.xlane.xlu0 %622
        %624 = vadd.xlane.f32.xlu0 %v619
        %v625 = vpop.xlane.xlu0 %624
        %v626 = vrcp.pop 128.0
        %v627 = vmul.f32 %v623, %v626
        %v628 = vmul.f32 %v625, %v626
        %v629 = vsub.f32 %v618, %v627
        %v630 = vsub.f32 %v619, %v628
        %v631 = vmul.f32 %v629, %v629
        %v632 = vmul.f32 %v630, %v630
        %633 = vadd.xlane.f32.xlu0 %v631
        %v634 = vpop.xlane.xlu0 %633
        %635 = vadd.xlane.f32.xlu0 %v632
        %v636 = vpop.xlane.xlu0 %635
        %v637 = vmul.f32 %v634, %v626
        %v638 = vmul.f32 %v636, %v626
        %v639 = vadd.f32 %v637, 1e-05
        %v640 = vadd.f32 %v638, 1e-05
        %v641 = vrsqrt.pop %v639
        %v642 = vrsqrt.pop %v640
        %v643 = vmul.f32 %v629, %v641
        %v644 = vmul.f32 %v630, %v642
        %v646 = vlaneseq
        %v647 = vshrl.u32 %v646, 7
        %v648 = vsub.s32 0, %v647
        %v649 = vrot.slane %v620, %v648
        %v651 = vmul.f32 %v643, %v649
        %v652 = vmul.f32 %v644, %v649
        %v654 = vlaneseq
        %v655 = vshrl.u32 %v654, 7
        %v656 = vsub.s32 0, %v655
        %v657 = vrot.slane %v621, %v656
        %v659 = vadd.f32 %v651, %v657
        %v660 = vadd.f32 %v652, %v657
        %v661 = vpack.c.bf16 %v660, %v659
        %v662 = vld [vmem:[#allocation8] sm:$0xff]
        %v663 = vld [vmem:[#allocation8 + $0x8] sm:$0xf]
        %v664 = vld [vmem:[#allocation8 + $0xc] sm:$0xff]
        %v665 = vld [vmem:[#allocation8 + $0x14] sm:$0xf]
        %v666 = vld [vmem:[#allocation8 + $0x18] sm:$0xff]
        %v667 = vld [vmem:[#allocation8 + $0x20] sm:$0xf]
        %v668 = vld [vmem:[#allocation8 + $0x24] sm:$0xff]
        %v669 = vld [vmem:[#allocation8 + $0x2c] sm:$0xf]
        %v670 = vld [vmem:[#allocation8 + $0x30] sm:$0xff]
        %v671 = vld [vmem:[#allocation8 + $0x38] sm:$0xf]
        %v672 = vld [vmem:[#allocation8 + $0x3c] sm:$0xff]
        %v673 = vld [vmem:[#allocation8 + $0x44] sm:$0xf]
        %v674 = vld [vmem:[#allocation8 + $0x48] sm:$0xff]
        %v675 = vld [vmem:[#allocation8 + $0x50] sm:$0xf]
        %v676 = vld [vmem:[#allocation8 + $0x54] sm:$0xff]
        %v677 = vld [vmem:[#allocation8 + $0x5c] sm:$0xf]
        %v678 = vld [vmem:[#allocation8 + $0x60] sm:$0xff]
        %v679 = vld [vmem:[#allocation8 + $0x68] sm:$0xf]
        %v680 = vld [vmem:[#allocation8 + $0x6c] sm:$0xff]
        %v681 = vld [vmem:[#allocation8 + $0x74] sm:$0xf]
        %v682 = vld [vmem:[#allocation8 + $0x78] sm:$0xff]
        %v683 = vld [vmem:[#allocation8 + $0x80] sm:$0xf]
        %v684 = vld [vmem:[#allocation8 + $0x84] sm:$0xff]
        %v685 = vld [vmem:[#allocation8 + $0x8c] sm:$0xf]
        %v686 = vld [vmem:[#allocation8 + $0x90] sm:$0xff]
        %v687 = vld [vmem:[#allocation8 + $0x98] sm:$0xf]
        %v688 = vld [vmem:[#allocation8 + $0x9c] sm:$0xff]
        %v689 = vld [vmem:[#allocation8 + $0xa4] sm:$0xf]
        %v690 = vld [vmem:[#allocation8 + $0xa8] sm:$0xff]
        %v691 = vld [vmem:[#allocation8 + $0xb0] sm:$0xf]
        %v692 = vld [vmem:[#allocation8 + $0xb4] sm:$0xff]
        %v693 = vld [vmem:[#allocation8 + $0xbc] sm:$0xf]
        %v694 = vld [vmem:[#allocation10] sm:$0x7]
        %v696 = vlaneseq
        %v697 = vshrl.u32 %v696, 7
        %v698 = vsub.s32 0, %v697
        %v699 = vrot.slane %v694, %v698
        %v700 = vlaneseq
        %v701 = vshrl.u32 %v700, 7
        %v702 = vsub.s32 1, %v701
        %v703 = vrot.slane %v694, %v702
        %v704 = vlaneseq
        %v705 = vshrl.u32 %v704, 7
        %v706 = vsub.s32 2, %v705
        %v707 = vrot.slane %v694, %v706
        %v743 = vunpack.c.l.b16 %v662
        %v744 = vunpack.c.h.b16 %v662
        %v745 = vunpack.c.l.b16 %v663
        %v746 = vunpack.c.l.b16 %v664
        %v747 = vunpack.c.h.b16 %v664
        %v748 = vunpack.c.l.b16 %v665
        %v749 = vunpack.c.l.b16 %v666
        %v750 = vunpack.c.h.b16 %v666
        %v751 = vunpack.c.l.b16 %v667
        %v752 = vunpack.c.l.b16 %v668
        %v753 = vunpack.c.h.b16 %v668
        %v754 = vunpack.c.l.b16 %v669
        %v755 = vunpack.c.l.b16 %v670
        %v756 = vunpack.c.h.b16 %v670
        %v757 = vunpack.c.l.b16 %v671
        %v758 = vunpack.c.l.b16 %v672
        %v759 = vunpack.c.h.b16 %v672
        %v760 = vunpack.c.l.b16 %v673
        %v761 = vunpack.c.l.b16 %v674
        %v762 = vunpack.c.h.b16 %v674
        %v763 = vunpack.c.l.b16 %v675
        %v764 = vunpack.c.l.b16 %v676
        %v765 = vunpack.c.h.b16 %v676
        %v766 = vunpack.c.l.b16 %v677
        %v767 = vunpack.c.l.b16 %v678
        %v768 = vunpack.c.h.b16 %v678
        %v769 = vunpack.c.l.b16 %v679
        %v770 = vunpack.c.l.b16 %v680
        %v771 = vunpack.c.h.b16 %v680
        %v772 = vunpack.c.l.b16 %v681
        %v773 = vunpack.c.l.b16 %v682
        %v774 = vunpack.c.h.b16 %v682
        %v775 = vunpack.c.l.b16 %v683
        %v776 = vunpack.c.l.b16 %v684
        %v777 = vunpack.c.h.b16 %v684
        %v778 = vunpack.c.l.b16 %v685
        %v779 = vunpack.c.l.b16 %v686
        %v780 = vunpack.c.h.b16 %v686
        %v781 = vunpack.c.l.b16 %v687
        %v782 = vunpack.c.l.b16 %v688
        %v783 = vunpack.c.h.b16 %v688
        %v784 = vunpack.c.l.b16 %v689
        %v785 = vunpack.c.l.b16 %v690
        %v786 = vunpack.c.h.b16 %v690
        %v787 = vunpack.c.l.b16 %v691
        %v788 = vunpack.c.l.b16 %v692
        %v789 = vunpack.c.h.b16 %v692
        %v790 = vunpack.c.l.b16 %v693
        %v791 = vpack.c.b16 %v746, %v743
        %v792 = vpack.c.b16 %v747, %v744
        %v793 = vpack.c.b16 %v748, %v745
        %v794 = vpack.c.b16 %v752, %v749
        %v795 = vpack.c.b16 %v753, %v750
        %v796 = vpack.c.b16 %v754, %v751
        %v797 = vpack.c.b16 %v758, %v755
        %v798 = vpack.c.b16 %v759, %v756
        %v799 = vpack.c.b16 %v760, %v757
        %v800 = vpack.c.b16 %v764, %v761
        %v801 = vpack.c.b16 %v765, %v762
        %v802 = vpack.c.b16 %v766, %v763
        %v803 = vpack.c.b16 %v770, %v767
        %v804 = vpack.c.b16 %v771, %v768
        %v805 = vpack.c.b16 %v772, %v769
        %v806 = vpack.c.b16 %v776, %v773
        %v807 = vpack.c.b16 %v777, %v774
        %v808 = vpack.c.b16 %v778, %v775
        %v809 = vpack.c.b16 %v782, %v779
        %v810 = vpack.c.b16 %v783, %v780
        %v811 = vpack.c.b16 %v784, %v781
        %v812 = vpack.c.b16 %v788, %v785
        %v813 = vpack.c.b16 %v789, %v786
        %v814 = vpack.c.b16 %v790, %v787
        %839 = vmatprep.subr.bf16.mxu0 %v792
        %840 = vmatpush1.bf16.msra.mxu0 %v791
        %841 = vmatprep.subr.bf16.mxu0 %v795
        %842 = vmatpush1.bf16.msra.mxu0 %v794
        %843 = vmatprep.subr.bf16.mxu0 %v798
        %844 = vmatpush1.bf16.msra.mxu0 %v797
        %845 = vmatprep.subr.bf16.mxu0 %v801
        %846 = vmatpush1.bf16.msra.mxu0 %v800
        %847 = vmatprep.subr.bf16.mxu0 %v804
        %848 = vmatpush1.bf16.msra.mxu0 %v803
        %849 = vmatprep.subr.bf16.mxu0 %v807
        %850 = vmatpush1.bf16.msra.mxu0 %v806
        %851 = vmatprep.subr.bf16.mxu0 %v810
        %852 = vmatpush1.bf16.msra.mxu0 %v809
        %853 = vmatprep.subr.bf16.mxu0 %v813
        %854 = vmatpush1.bf16.msra.mxu0 %v812
        %855 = vmatprep.subr.bf16.mxu0 0
        %856 = vmatpush1.bf16.msra.mxu0 0
        %857 = vmatprep.subr.bf16.mxu0 0
        %858 = vmatpush1.bf16.msra.mxu0 0
        %859 = vmatprep.subr.bf16.mxu0 0
        %860 = vmatpush1.bf16.msra.mxu0 0
        %861 = vmatprep.subr.bf16.mxu0 0
        %862 = vmatpush1.bf16.msra.mxu0 0
        %863 = vmatprep.subr.bf16.mxu0 0
        %864 = vmatpush1.bf16.msra.mxu0 0
        %865 = vmatprep.subr.bf16.mxu0 0
        %866 = vmatpush1.bf16.msra.mxu0 0
        %867 = vmatprep.subr.bf16.mxu0 0
        %868 = vmatpush1.bf16.msra.mxu0 0
        %869 = vmatprep.subr.bf16.mxu0 0
        %870 = vmatpush1.bf16.msra.mxu0 0
        %871 = vmatprep.mubr.bf16.mxu0 0
        %872 = vmatmul.mubr.bf16.gmra.mrb[0].mxu0 %v661
        %v873 = vpop.f32.mrb[0].mxu0
        %v874 = vadd.f32 %v699, %v873
        %v875 = vpop.f32.mrb[0].mxu0
        %v876 = vadd.f32 %v703, %v875
        %v877 = vpop.f32.mrb[0].mxu0
        %v878 = vadd.f32 %v699, %v877
        %v879 = vpop.f32.mrb[0].mxu0
        %v880 = vadd.f32 %v703, %v879
        %881 = vdwg.mxu0
        %882 = vmatprep.subr.bf16.mxu0 0
        %883 = vmatpush1.bf16.msra.mxu0 %v793
        %884 = vmatprep.subr.bf16.mxu0 0
        %885 = vmatpush1.bf16.msra.mxu0 %v796
        %886 = vmatprep.subr.bf16.mxu0 0
        %887 = vmatpush1.bf16.msra.mxu0 %v799
        %888 = vmatprep.subr.bf16.mxu0 0
        %889 = vmatpush1.bf16.msra.mxu0 %v802
        %890 = vmatprep.subr.bf16.mxu0 0
        %891 = vmatpush1.bf16.msra.mxu0 %v805
        %892 = vmatprep.subr.bf16.mxu0 0
        %893 = vmatpush1.bf16.msra.mxu0 %v808
        %894 = vmatprep.subr.bf16.mxu0 0
        %895 = vmatpush1.bf16.msra.mxu0 %v811
        %896 = vmatprep.subr.bf16.mxu0 0
        %897 = vmatpush1.bf16.msra.mxu0 %v814
        %898 = vmatprep.subr.bf16.mxu0 0
        %899 = vmatpush1.bf16.msra.mxu0 0
        %900 = vmatprep.subr.bf16.mxu0 0
        %901 = vmatpush1.bf16.msra.mxu0 0
        %902 = vmatprep.subr.bf16.mxu0 0
        %903 = vmatpush1.bf16.msra.mxu0 0
        %904 = vmatprep.subr.bf16.mxu0 0
        %905 = vmatpush1.bf16.msra.mxu0 0
        %906 = vmatprep.subr.bf16.mxu0 0
        %907 = vmatpush1.bf16.msra.mxu0 0
        %908 = vmatprep.subr.bf16.mxu0 0
        %909 = vmatpush1.bf16.msra.mxu0 0
        %910 = vmatprep.subr.bf16.mxu0 0
        %911 = vmatpush1.bf16.msra.mxu0 0
        %912 = vmatprep.subr.bf16.mxu0 0
        %913 = vmatpush1.bf16.msra.mxu0 0
        %914 = vmatprep.mubr.bf16.mxu0 0
        %915 = vmatmul.mubr.bf16.gmra.mrb[0].mxu0 %v661
        %v916 = vpop.f32.mrb[0].mxu0
        %v917 = vadd.f32 %v707, %v916
        %v918 = vpop.f32.mrb[0].mxu0
        %v919 = vpop.f32.mrb[0].mxu0
        %v920 = vadd.f32 %v707, %v919
        %v921 = vpop.f32.mrb[0].mxu0
        %922 = vdwg.mxu0
        %v923 = vmul.f32 %v874, 0.17677669
        %v924 = vmul.f32 %v878, 0.17677669
        %v925 = vpack.c.bf16 %v924, %v923
        %v926 = vpack.c.bf16 %v880, %v876
        %v927 = vpack.c.bf16 %v920, %v917
        %v928 = vlaneseq
        %v929 = vshrl.u32 %v928, 7
        %v930 = vadd.s32 %v929, 8
        %v931 = vlaneseq
        %v932 = vand.u32 %v931, 127
        %vm933 = vcmp.gt.s32.totalorder %v932, %v929
        %vm934 = vcmp.gt.s32.totalorder %v932, %v930
        %vm935 = vcmask 261120
        %v937 = vsel %vm935, %v925, 0
        %v940 = vsel %vm935, %v926, 0
        %942 = vmatprep.subr.bf16.mxu0 0
        %943 = vmatpush1.bf16.xpose.msra.mxu0 %v940
        %944 = vmatprep.subr.bf16.mxu0 0
        %945 = vmatpush1.bf16.xpose.msra.mxu0 0
        %946 = vmatprep.subr.bf16.mxu0 0
        %947 = vmatpush1.bf16.xpose.msra.mxu0 0
        %948 = vmatprep.subr.bf16.mxu0 0
        %949 = vmatpush1.bf16.xpose.msra.mxu0 0
        %950 = vmatprep.subr.bf16.mxu0 0
        %951 = vmatpush1.bf16.xpose.msra.mxu0 0
        %952 = vmatprep.subr.bf16.mxu0 0
        %953 = vmatpush1.bf16.xpose.msra.mxu0 0
        %954 = vmatprep.subr.bf16.mxu0 0
        %955 = vmatpush1.bf16.xpose.msra.mxu0 0
        %956 = vmatprep.subr.bf16.mxu0 0
        %957 = vmatpush1.bf16.xpose.msra.mxu0 0
        %958 = vmatprep.subr.bf16.mxu0 0
        %959 = vmatpush1.bf16.xpose.msra.mxu0 0
        %960 = vmatprep.subr.bf16.mxu0 0
        %961 = vmatpush1.bf16.xpose.msra.mxu0 0
        %962 = vmatprep.subr.bf16.mxu0 0
        %963 = vmatpush1.bf16.xpose.msra.mxu0 0
        %964 = vmatprep.subr.bf16.mxu0 0
        %965 = vmatpush1.bf16.xpose.msra.mxu0 0
        %966 = vmatprep.subr.bf16.mxu0 0
        %967 = vmatpush1.bf16.xpose.msra.mxu0 0
        %968 = vmatprep.subr.bf16.mxu0 0
        %969 = vmatpush1.bf16.xpose.msra.mxu0 0
        %970 = vmatprep.subr.bf16.mxu0 0
        %971 = vmatpush1.bf16.xpose.msra.mxu0 0
        %972 = vmatprep.subr.bf16.mxu0 0
        %973 = vmatpush1.bf16.xpose.msra.mxu0 0
        %974 = vmatprep.mubr.bf16.mxu0 0
        %975 = vmatmul.mubr.bf16.gmra.mrb[0].mxu0 %v937
        %v976 = vpop.f32.mrb[0].mxu0
        %v977 = vadd.f32 0.0, %v976
        %v978 = vpop.f32.mrb[0].mxu0
        %v979 = vpop.f32.mrb[0].mxu0
        %v980 = vadd.f32 0.0, %v979
        %v981 = vpop.f32.mrb[0].mxu0
        %982 = vdwg.mxu0
        %v983 = vsel %vm933, -inf, %v977
        %v984 = vsel %vm934, -inf, %v980
        %vm985 = vcmask 130048
        %v986 = vsel %vm985, %v983, -inf
        %987 = vmax.xlane.f32.xlu0 %v986
        %v988 = vpop.xlane.xlu0 %987
        %v989 = vsel %vm985, %v984, -inf
        %990 = vmax.xlane.f32.xlu0 %v989
        %v991 = vpop.xlane.xlu0 %990
        %v992 = vsub.f32 %v983, %v988
        %v993 = vsub.f32 %v984, %v991
        %v994 = vmul.f32 %v992, 1.442695
        %v995 = vpow.pop %v994
        %v996 = vmul.f32 %v993, 1.442695
        %v997 = vpow.pop %v996
        %v998 = vsel %vm985, %v995, 0.0
        %999 = vadd.xlane.f32.xlu0 %v998
        %v1000 = vpop.xlane.xlu0 %999
        %v1001 = vsel %vm985, %v997, 0.0
        %1002 = vadd.xlane.f32.xlu0 %v1001
        %v1003 = vpop.xlane.xlu0 %1002
        %v1004 = vrcp.pop %v1000
        %v1005 = vrcp.pop %v1003
        %v1006 = vmul.f32 %v995, %v1004
        %v1007 = vmul.f32 %v997, %v1005
        %v1008 = vpack.c.bf16 %v1007, %v1006
        %v1010 = vsel %vm985, %v1008, 0
        %1012 = vmatprep.subr.bf16.mxu0 0
        %1013 = vmatpush1.bf16.msra.mxu0 %v927
        %1014 = vmatprep.subr.bf16.mxu0 0
        %1015 = vmatpush1.bf16.msra.mxu0 0
        %1016 = vmatprep.subr.bf16.mxu0 0
        %1017 = vmatpush1.bf16.msra.mxu0 0
        %1018 = vmatprep.subr.bf16.mxu0 0
        %1019 = vmatpush1.bf16.msra.mxu0 0
        %1020 = vmatprep.subr.bf16.mxu0 0
        %1021 = vmatpush1.bf16.msra.mxu0 0
        %1022 = vmatprep.subr.bf16.mxu0 0
        %1023 = vmatpush1.bf16.msra.mxu0 0
        %1024 = vmatprep.subr.bf16.mxu0 0
        %1025 = vmatpush1.bf16.msra.mxu0 0
        %1026 = vmatprep.subr.bf16.mxu0 0
        %1027 = vmatpush1.bf16.msra.mxu0 0
        %1028 = vmatprep.subr.bf16.mxu0 0
        %1029 = vmatpush1.bf16.msra.mxu0 0
        %1030 = vmatprep.subr.bf16.mxu0 0
        %1031 = vmatpush1.bf16.msra.mxu0 0
        %1032 = vmatprep.subr.bf16.mxu0 0
        %1033 = vmatpush1.bf16.msra.mxu0 0
        %1034 = vmatprep.subr.bf16.mxu0 0
        %1035 = vmatpush1.bf16.msra.mxu0 0
        %1036 = vmatprep.subr.bf16.mxu0 0
        %1037 = vmatpush1.bf16.msra.mxu0 0
        %1038 = vmatprep.subr.bf16.mxu0 0
        %1039 = vmatpush1.bf16.msra.mxu0 0
        %1040 = vmatprep.subr.bf16.mxu0 0
        %1041 = vmatpush1.bf16.msra.mxu0 0
        %1042 = vmatprep.subr.bf16.mxu0 0
        %1043 = vmatpush1.bf16.msra.mxu0 0
        %1044 = vmatprep.mubr.bf16.mxu0 0
        %1045 = vmatmul.mubr.bf16.gmra.mrb[0].mxu0 %v1010
        %v1046 = vpop.f32.mrb[0].mxu0
        %v1047 = vadd.f32 0.0, %v1046
        %v1048 = vpop.f32.mrb[0].mxu0
        %v1049 = vpop.f32.mrb[0].mxu0
        %v1050 = vadd.f32 0.0, %v1049
        %v1051 = vpop.f32.mrb[0].mxu0
        %1052 = vdwg.mxu0
        %1054 = vrot.lane.b32.xlu0 %v925, 96
        %v1055 = vpop.permute.xlu0 %1054
        %1057 = vrot.lane.b32.xlu0 %v926, 96
        %v1058 = vpop.permute.xlu0 %1057
        %v1060 = vsel %vm935, %v1055, 0
        %v1063 = vsel %vm935, %v1058, 0
        %1065 = vmatprep.subr.bf16.mxu0 0
        %1066 = vmatpush1.bf16.xpose.msra.mxu0 %v1063
        %1067 = vmatprep.subr.bf16.mxu0 0
        %1068 = vmatpush1.bf16.xpose.msra.mxu0 0
        %1069 = vmatprep.subr.bf16.mxu0 0
        %1070 = vmatpush1.bf16.xpose.msra.mxu0 0
        %1071 = vmatprep.subr.bf16.mxu0 0
        %1072 = vmatpush1.bf16.xpose.msra.mxu0 0
        %1073 = vmatprep.subr.bf16.mxu0 0
        %1074 = vmatpush1.bf16.xpose.msra.mxu0 0
        %1075 = vmatprep.subr.bf16.mxu0 0
        %1076 = vmatpush1.bf16.xpose.msra.mxu0 0
        %1077 = vmatprep.subr.bf16.mxu0 0
        %1078 = vmatpush1.bf16.xpose.msra.mxu0 0
        %1079 = vmatprep.subr.bf16.mxu0 0
        %1080 = vmatpush1.bf16.xpose.msra.mxu0 0
        %1081 = vmatprep.subr.bf16.mxu0 0
        %1082 = vmatpush1.bf16.xpose.msra.mxu0 0
        %1083 = vmatprep.subr.bf16.mxu0 0
        %1084 = vmatpush1.bf16.xpose.msra.mxu0 0
        %1085 = vmatprep.subr.bf16.mxu0 0
        %1086 = vmatpush1.bf16.xpose.msra.mxu0 0
        %1087 = vmatprep.subr.bf16.mxu0 0
        %1088 = vmatpush1.bf16.xpose.msra.mxu0 0
        %1089 = vmatprep.subr.bf16.mxu0 0
        %1090 = vmatpush1.bf16.xpose.msra.mxu0 0
        %1091 = vmatprep.subr.bf16.mxu0 0
        %1092 = vmatpush1.bf16.xpose.msra.mxu0 0
        %1093 = vmatprep.subr.bf16.mxu0 0
        %1094 = vmatpush1.bf16.xpose.msra.mxu0 0
        %1095 = vmatprep.subr.bf16.mxu0 0
        %1096 = vmatpush1.bf16.xpose.msra.mxu0 0
        %1097 = vmatprep.mubr.bf16.mxu0 0
        %1098 = vmatmul.mubr.bf16.gmra.mrb[0].mxu0 %v1060
        %v1099 = vpop.f32.mrb[0].mxu0
        %v1100 = vadd.f32 0.0, %v1099
        %v1101 = vpop.f32.mrb[0].mxu0
        %v1102 = vpop.f32.mrb[0].mxu0
        %v1103 = vadd.f32 0.0, %v1102
        %v1104 = vpop.f32.mrb[0].mxu0
        %1105 = vdwg.mxu0
        %v1106 = vsel %vm933, -inf, %v1100
        %v1107 = vsel %vm934, -inf, %v1103
        %v1108 = vsel %vm985, %v1106, -inf
        %1109 = vmax.xlane.f32.xlu0 %v1108
        %v1110 = vpop.xlane.xlu0 %1109
        %v1111 = vsel %vm985, %v1107, -inf
        %1112 = vmax.xlane.f32.xlu0 %v1111
        %v1113 = vpop.xlane.xlu0 %1112
        %v1114 = vsub.f32 %v1106, %v1110
        %v1115 = vsub.f32 %v1107, %v1113
        %v1116 = vmul.f32 %v1114, 1.442695
        %v1117 = vpow.pop %v1116
        %v1118 = vmul.f32 %v1115, 1.442695
        %v1119 = vpow.pop %v1118
        %v1120 = vsel %vm985, %v1117, 0.0
        %1121 = vadd.xlane.f32.xlu0 %v1120
        %v1122 = vpop.xlane.xlu0 %1121
        %v1123 = vsel %vm985, %v1119, 0.0
        %1124 = vadd.xlane.f32.xlu0 %v1123
        %v1125 = vpop.xlane.xlu0 %1124
        %v1126 = vrcp.pop %v1122
        %v1127 = vrcp.pop %v1125
        %v1128 = vmul.f32 %v1117, %v1126
        %v1129 = vmul.f32 %v1119, %v1127
        %v1130 = vpack.c.bf16 %v1129, %v1128
        %1132 = vrot.lane.b32.xlu0 %v927, 96
        %v1133 = vpop.permute.xlu0 %1132
        %v1136 = vsel %vm985, %v1130, 0
        %1138 = vmatprep.subr.bf16.mxu0 0
        %1139 = vmatpush1.bf16.msra.mxu0 %v1133
        %1140 = vmatprep.subr.bf16.mxu0 0
        %1141 = vmatpush1.bf16.msra.mxu0 0
        %1142 = vmatprep.subr.bf16.mxu0 0
        %1143 = vmatpush1.bf16.msra.mxu0 0
        %1144 = vmatprep.subr.bf16.mxu0 0
        %1145 = vmatpush1.bf16.msra.mxu0 0
        %1146 = vmatprep.subr.bf16.mxu0 0
        %1147 = vmatpush1.bf16.msra.mxu0 0
        %1148 = vmatprep.subr.bf16.mxu0 0
        %1149 = vmatpush1.bf16.msra.mxu0 0
        %1150 = vmatprep.subr.bf16.mxu0 0
        %1151 = vmatpush1.bf16.msra.mxu0 0
        %1152 = vmatprep.subr.bf16.mxu0 0
        %1153 = vmatpush1.bf16.msra.mxu0 0
        %1154 = vmatprep.subr.bf16.mxu0 0
        %1155 = vmatpush1.bf16.msra.mxu0 0
        %1156 = vmatprep.subr.bf16.mxu0 0
        %1157 = vmatpush1.bf16.msra.mxu0 0
        %1158 = vmatprep.subr.bf16.mxu0 0
        %1159 = vmatpush1.bf16.msra.mxu0 0
        %1160 = vmatprep.subr.bf16.mxu0 0
        %1161 = vmatpush1.bf16.msra.mxu0 0
        %1162 = vmatprep.subr.bf16.mxu0 0
        %1163 = vmatpush1.bf16.msra.mxu0 0
        %1164 = vmatprep.subr.bf16.mxu0 0
        %1165 = vmatpush1.bf16.msra.mxu0 0
        %1166 = vmatprep.subr.bf16.mxu0 0
        %1167 = vmatpush1.bf16.msra.mxu0 0
        %1168 = vmatprep.subr.bf16.mxu0 0
        %1169 = vmatpush1.bf16.msra.mxu0 0
        %1170 = vmatprep.mubr.bf16.mxu0 0
        %1171 = vmatmul.mubr.bf16.gmra.mrb[0].mxu0 %v1136
        %v1172 = vpop.f32.mrb[0].mxu0
        %v1173 = vadd.f32 0.0, %v1172
        %v1174 = vpop.f32.mrb[0].mxu0
        %v1175 = vpop.f32.mrb[0].mxu0
        %v1176 = vadd.f32 0.0, %v1175
        %v1177 = vpop.f32.mrb[0].mxu0
        %1178 = vdwg.mxu0
        %1179 = vrot.lane.b32.xlu0 %v925, 64
        %v1180 = vpop.permute.xlu0 %1179
        %1181 = vrot.lane.b32.xlu0 %v926, 64
        %v1182 = vpop.permute.xlu0 %1181
        %v1184 = vsel %vm935, %v1180, 0
        %v1187 = vsel %vm935, %v1182, 0
        %1189 = vmatprep.subr.bf16.mxu0 0
        %1190 = vmatpush1.bf16.xpose.msra.mxu0 %v1187
        %1191 = vmatprep.subr.bf16.mxu0 0
        %1192 = vmatpush1.bf16.xpose.msra.mxu0 0
        %1193 = vmatprep.subr.bf16.mxu0 0
        %1194 = vmatpush1.bf16.xpose.msra.mxu0 0
        %1195 = vmatprep.subr.bf16.mxu0 0
        %1196 = vmatpush1.bf16.xpose.msra.mxu0 0
        %1197 = vmatprep.subr.bf16.mxu0 0
        %1198 = vmatpush1.bf16.xpose.msra.mxu0 0
        %1199 = vmatprep.subr.bf16.mxu0 0
        %1200 = vmatpush1.bf16.xpose.msra.mxu0 0
        %1201 = vmatprep.subr.bf16.mxu0 0
        %1202 = vmatpush1.bf16.xpose.msra.mxu0 0
        %1203 = vmatprep.subr.bf16.mxu0 0
        %1204 = vmatpush1.bf16.xpose.msra.mxu0 0
        %1205 = vmatprep.subr.bf16.mxu0 0
        %1206 = vmatpush1.bf16.xpose.msra.mxu0 0
        %1207 = vmatprep.subr.bf16.mxu0 0
        %1208 = vmatpush1.bf16.xpose.msra.mxu0 0
        %1209 = vmatprep.subr.bf16.mxu0 0
        %1210 = vmatpush1.bf16.xpose.msra.mxu0 0
        %1211 = vmatprep.subr.bf16.mxu0 0
        %1212 = vmatpush1.bf16.xpose.msra.mxu0 0
        %1213 = vmatprep.subr.bf16.mxu0 0
        %1214 = vmatpush1.bf16.xpose.msra.mxu0 0
        %1215 = vmatprep.subr.bf16.mxu0 0
        %1216 = vmatpush1.bf16.xpose.msra.mxu0 0
        %1217 = vmatprep.subr.bf16.mxu0 0
        %1218 = vmatpush1.bf16.xpose.msra.mxu0 0
        %1219 = vmatprep.subr.bf16.mxu0 0
        %1220 = vmatpush1.bf16.xpose.msra.mxu0 0
        %1221 = vmatprep.mubr.bf16.mxu0 0
        %1222 = vmatmul.mubr.bf16.gmra.mrb[0].mxu0 %v1184
        %v1223 = vpop.f32.mrb[0].mxu0
        %v1224 = vadd.f32 0.0, %v1223
        %v1225 = vpop.f32.mrb[0].mxu0
        %v1226 = vpop.f32.mrb[0].mxu0
        %v1227 = vadd.f32 0.0, %v1226
        %v1228 = vpop.f32.mrb[0].mxu0
        %1229 = vdwg.mxu0
        %v1230 = vsel %vm933, -inf, %v1224
        %v1231 = vsel %vm934, -inf, %v1227
        %v1232 = vsel %vm985, %v1230, -inf
        %1233 = vmax.xlane.f32.xlu0 %v1232
        %v1234 = vpop.xlane.xlu0 %1233
        %v1235 = vsel %vm985, %v1231, -inf
        %1236 = vmax.xlane.f32.xlu0 %v1235
        %v1237 = vpop.xlane.xlu0 %1236
        %v1238 = vsub.f32 %v1230, %v1234
        %v1239 = vsub.f32 %v1231, %v1237
        %v1240 = vmul.f32 %v1238, 1.442695
        %v1241 = vpow.pop %v1240
        %v1242 = vmul.f32 %v1239, 1.442695
        %v1243 = vpow.pop %v1242
        %v1244 = vsel %vm985, %v1241, 0.0
        %1245 = vadd.xlane.f32.xlu0 %v1244
        %v1246 = vpop.xlane.xlu0 %1245
        %v1247 = vsel %vm985, %v1243, 0.0
        %1248 = vadd.xlane.f32.xlu0 %v1247
        %v1249 = vpop.xlane.xlu0 %1248
        %v1250 = vrcp.pop %v1246
        %v1251 = vrcp.pop %v1249
        %v1252 = vmul.f32 %v1241, %v1250
        %v1253 = vmul.f32 %v1243, %v1251
        %v1254 = vpack.c.bf16 %v1253, %v1252
        %1255 = vrot.lane.b32.xlu0 %v927, 64
        %v1256 = vpop.permute.xlu0 %1255
        %v1259 = vsel %vm985, %v1254, 0
        %1261 = vmatprep.subr.bf16.mxu0 0
        %1262 = vmatpush1.bf16.msra.mxu0 %v1256
        %1263 = vmatprep.subr.bf16.mxu0 0
        %1264 = vmatpush1.bf16.msra.mxu0 0
        %1265 = vmatprep.subr.bf16.mxu0 0
        %1266 = vmatpush1.bf16.msra.mxu0 0
        %1267 = vmatprep.subr.bf16.mxu0 0
        %1268 = vmatpush1.bf16.msra.mxu0 0
        %1269 = vmatprep.subr.bf16.mxu0 0
        %1270 = vmatpush1.bf16.msra.mxu0 0
        %1271 = vmatprep.subr.bf16.mxu0 0
        %1272 = vmatpush1.bf16.msra.mxu0 0
        %1273 = vmatprep.subr.bf16.mxu0 0
        %1274 = vmatpush1.bf16.msra.mxu0 0
        %1275 = vmatprep.subr.bf16.mxu0 0
        %1276 = vmatpush1.bf16.msra.mxu0 0
        %1277 = vmatprep.subr.bf16.mxu0 0
        %1278 = vmatpush1.bf16.msra.mxu0 0
        %1279 = vmatprep.subr.bf16.mxu0 0
        %1280 = vmatpush1.bf16.msra.mxu0 0
        %1281 = vmatprep.subr.bf16.mxu0 0
        %1282 = vmatpush1.bf16.msra.mxu0 0
        %1283 = vmatprep.subr.bf16.mxu0 0
        %1284 = vmatpush1.bf16.msra.mxu0 0
        %1285 = vmatprep.subr.bf16.mxu0 0
        %1286 = vmatpush1.bf16.msra.mxu0 0
        %1287 = vmatprep.subr.bf16.mxu0 0
        %1288 = vmatpush1.bf16.msra.mxu0 0
        %1289 = vmatprep.subr.bf16.mxu0 0
        %1290 = vmatpush1.bf16.msra.mxu0 0
        %1291 = vmatprep.subr.bf16.mxu0 0
        %1292 = vmatpush1.bf16.msra.mxu0 0
        %1293 = vmatprep.mubr.bf16.mxu0 0
        %1294 = vmatmul.mubr.bf16.gmra.mrb[0].mxu0 %v1259
        %v1295 = vpop.f32.mrb[0].mxu0
        %v1296 = vadd.f32 0.0, %v1295
        %v1297 = vpop.f32.mrb[0].mxu0
        %v1298 = vpop.f32.mrb[0].mxu0
        %v1299 = vadd.f32 0.0, %v1298
        %v1300 = vpop.f32.mrb[0].mxu0
        %1301 = vdwg.mxu0
        %1302 = vrot.lane.b32.xlu0 %v925, 32
        %v1303 = vpop.permute.xlu0 %1302
        %1304 = vrot.lane.b32.xlu0 %v926, 32
        %v1305 = vpop.permute.xlu0 %1304
        %v1307 = vsel %vm935, %v1303, 0
        %v1310 = vsel %vm935, %v1305, 0
        %1312 = vmatprep.subr.bf16.mxu0 0
        %1313 = vmatpush1.bf16.xpose.msra.mxu0 %v1310
        %1314 = vmatprep.subr.bf16.mxu0 0
        %1315 = vmatpush1.bf16.xpose.msra.mxu0 0
        %1316 = vmatprep.subr.bf16.mxu0 0
        %1317 = vmatpush1.bf16.xpose.msra.mxu0 0
        %1318 = vmatprep.subr.bf16.mxu0 0
        %1319 = vmatpush1.bf16.xpose.msra.mxu0 0
        %1320 = vmatprep.subr.bf16.mxu0 0
        %1321 = vmatpush1.bf16.xpose.msra.mxu0 0
        %1322 = vmatprep.subr.bf16.mxu0 0
        %1323 = vmatpush1.bf16.xpose.msra.mxu0 0
        %1324 = vmatprep.subr.bf16.mxu0 0
        %1325 = vmatpush1.bf16.xpose.msra.mxu0 0
        %1326 = vmatprep.subr.bf16.mxu0 0
        %1327 = vmatpush1.bf16.xpose.msra.mxu0 0
        %1328 = vmatprep.subr.bf16.mxu0 0
        %1329 = vmatpush1.bf16.xpose.msra.mxu0 0
        %1330 = vmatprep.subr.bf16.mxu0 0
        %1331 = vmatpush1.bf16.xpose.msra.mxu0 0
        %1332 = vmatprep.subr.bf16.mxu0 0
        %1333 = vmatpush1.bf16.xpose.msra.mxu0 0
        %1334 = vmatprep.subr.bf16.mxu0 0
        %1335 = vmatpush1.bf16.xpose.msra.mxu0 0
        %1336 = vmatprep.subr.bf16.mxu0 0
        %1337 = vmatpush1.bf16.xpose.msra.mxu0 0
        %1338 = vmatprep.subr.bf16.mxu0 0
        %1339 = vmatpush1.bf16.xpose.msra.mxu0 0
        %1340 = vmatprep.subr.bf16.mxu0 0
        %1341 = vmatpush1.bf16.xpose.msra.mxu0 0
        %1342 = vmatprep.subr.bf16.mxu0 0
        %1343 = vmatpush1.bf16.xpose.msra.mxu0 0
        %1344 = vmatprep.mubr.bf16.mxu0 0
        %1345 = vmatmul.mubr.bf16.gmra.mrb[0].mxu0 %v1307
        %v1346 = vpop.f32.mrb[0].mxu0
        %v1347 = vadd.f32 0.0, %v1346
        %v1348 = vpop.f32.mrb[0].mxu0
        %v1349 = vpop.f32.mrb[0].mxu0
        %v1350 = vadd.f32 0.0, %v1349
        %v1351 = vpop.f32.mrb[0].mxu0
        %1352 = vdwg.mxu0
        %v1353 = vsel %vm933, -inf, %v1347
        %v1354 = vsel %vm934, -inf, %v1350
        %v1355 = vsel %vm985, %v1353, -inf
        %1356 = vmax.xlane.f32.xlu0 %v1355
        %v1357 = vpop.xlane.xlu0 %1356
        %v1358 = vsel %vm985, %v1354, -inf
        %1359 = vmax.xlane.f32.xlu0 %v1358
        %v1360 = vpop.xlane.xlu0 %1359
        %v1361 = vsub.f32 %v1353, %v1357
        %v1362 = vsub.f32 %v1354, %v1360
        %v1363 = vmul.f32 %v1361, 1.442695
        %v1364 = vpow.pop %v1363
        %v1365 = vmul.f32 %v1362, 1.442695
        %v1366 = vpow.pop %v1365
        %v1367 = vsel %vm985, %v1364, 0.0
        %1368 = vadd.xlane.f32.xlu0 %v1367
        %v1369 = vpop.xlane.xlu0 %1368
        %v1370 = vsel %vm985, %v1366, 0.0
        %1371 = vadd.xlane.f32.xlu0 %v1370
        %v1372 = vpop.xlane.xlu0 %1371
        %v1373 = vrcp.pop %v1369
        %v1374 = vrcp.pop %v1372
        %v1375 = vmul.f32 %v1364, %v1373
        %v1376 = vmul.f32 %v1366, %v1374
        %v1377 = vpack.c.bf16 %v1376, %v1375
        %1378 = vrot.lane.b32.xlu0 %v927, 32
        %v1379 = vpop.permute.xlu0 %1378
        %v1382 = vsel %vm985, %v1377, 0
        %1384 = vmatprep.subr.bf16.mxu0 0
        %1385 = vmatpush1.bf16.msra.mxu0 %v1379
        %1386 = vmatprep.subr.bf16.mxu0 0
        %1387 = vmatpush1.bf16.msra.mxu0 0
        %1388 = vmatprep.subr.bf16.mxu0 0
        %1389 = vmatpush1.bf16.msra.mxu0 0
        %1390 = vmatprep.subr.bf16.mxu0 0
        %1391 = vmatpush1.bf16.msra.mxu0 0
        %1392 = vmatprep.subr.bf16.mxu0 0
        %1393 = vmatpush1.bf16.msra.mxu0 0
        %1394 = vmatprep.subr.bf16.mxu0 0
        %1395 = vmatpush1.bf16.msra.mxu0 0
        %1396 = vmatprep.subr.bf16.mxu0 0
        %1397 = vmatpush1.bf16.msra.mxu0 0
        %1398 = vmatprep.subr.bf16.mxu0 0
        %1399 = vmatpush1.bf16.msra.mxu0 0
        %1400 = vmatprep.subr.bf16.mxu0 0
        %1401 = vmatpush1.bf16.msra.mxu0 0
        %1402 = vmatprep.subr.bf16.mxu0 0
        %1403 = vmatpush1.bf16.msra.mxu0 0
        %1404 = vmatprep.subr.bf16.mxu0 0
        %1405 = vmatpush1.bf16.msra.mxu0 0
        %1406 = vmatprep.subr.bf16.mxu0 0
        %1407 = vmatpush1.bf16.msra.mxu0 0
        %1408 = vmatprep.subr.bf16.mxu0 0
        %1409 = vmatpush1.bf16.msra.mxu0 0
        %1410 = vmatprep.subr.bf16.mxu0 0
        %1411 = vmatpush1.bf16.msra.mxu0 0
        %1412 = vmatprep.subr.bf16.mxu0 0
        %1413 = vmatpush1.bf16.msra.mxu0 0
        %1414 = vmatprep.subr.bf16.mxu0 0
        %1415 = vmatpush1.bf16.msra.mxu0 0
        %1416 = vmatprep.mubr.bf16.mxu0 0
        %1417 = vmatmul.mubr.bf16.gmra.mrb[0].mxu0 %v1382
        %v1418 = vpop.f32.mrb[0].mxu0
        %v1419 = vadd.f32 0.0, %v1418
        %v1420 = vpop.f32.mrb[0].mxu0
        %v1421 = vpop.f32.mrb[0].mxu0
        %v1422 = vadd.f32 0.0, %v1421
        %v1423 = vpop.f32.mrb[0].mxu0
        %1424 = vdwg.mxu0
        %1427 = vrot.lane.b32.xlu0 %v1173, 32
        %v1428 = vpop.permute.xlu0 %1427
        %1429 = vrot.lane.b32.xlu0 %v1176, 32
        %v1430 = vpop.permute.xlu0 %1429
        %1435 = vrot.lane.b32.xlu0 %v1296, 64
        %v1436 = vpop.permute.xlu0 %1435
        %1437 = vrot.lane.b32.xlu0 %v1299, 64
        %v1438 = vpop.permute.xlu0 %1437
        %1443 = vrot.lane.b32.xlu0 %v1419, 96
        %v1444 = vpop.permute.xlu0 %1443
        %1445 = vrot.lane.b32.xlu0 %v1422, 96
        %v1446 = vpop.permute.xlu0 %1445
        %v1449 = vsel %vm935, %v1047, %v1428
        %v1450 = vsel %vm935, %v1050, %v1430
        %vm1451 = vcmask 523264
        %v1452 = vsel %vm1451, %v1449, %v1436
        %v1453 = vsel %vm1451, %v1450, %v1438
        %vm1454 = vcmask 785408
        %v1455 = vsel %vm1454, %v1452, %v1444
        %v1456 = vsel %vm1454, %v1453, %v1446
        %v1457 = vpack.c.bf16 %v1456, %v1455
        %v1458 = vld [vmem:[#allocation11] sm:$0xf]
        %v1459 = vld [vmem:[#allocation11 + $0x4] sm:$0xf]
        %v1460 = vld [vmem:[#allocation11 + $0x8] sm:$0xf]
        %v1461 = vld [vmem:[#allocation11 + $0xc] sm:$0xf]
        %v1462 = vld [vmem:[#allocation11 + $0x10] sm:$0xf]
        %v1463 = vld [vmem:[#allocation11 + $0x14] sm:$0xf]
        %v1464 = vld [vmem:[#allocation11 + $0x18] sm:$0xf]
        %v1465 = vld [vmem:[#allocation11 + $0x1c] sm:$0xf]
        %v1466 = vld [vmem:[#allocation11 + $0x20] sm:$0xf]
        %v1467 = vld [vmem:[#allocation11 + $0x24] sm:$0xf]
        %v1468 = vld [vmem:[#allocation11 + $0x28] sm:$0xf]
        %v1469 = vld [vmem:[#allocation11 + $0x2c] sm:$0xf]
        %v1470 = vld [vmem:[#allocation11 + $0x30] sm:$0xf]
        %v1471 = vld [vmem:[#allocation11 + $0x34] sm:$0xf]
        %v1472 = vld [vmem:[#allocation11 + $0x38] sm:$0xf]
        %v1473 = vld [vmem:[#allocation11 + $0x3c] sm:$0xf]
        %v1474 = vld [vmem:[#allocation13] sm:$0x1]
        %v1476 = vlaneseq
        %v1477 = vshrl.u32 %v1476, 7
        %v1478 = vsub.s32 0, %v1477
        %v1479 = vrot.slane %v1474, %v1478
        %v1497 = vunpack.c.l.b16 %v1458
        %v1498 = vunpack.c.l.b16 %v1459
        %v1499 = vunpack.c.l.b16 %v1460
        %v1500 = vunpack.c.l.b16 %v1461
        %v1501 = vunpack.c.l.b16 %v1462
        %v1502 = vunpack.c.l.b16 %v1463
        %v1503 = vunpack.c.l.b16 %v1464
        %v1504 = vunpack.c.l.b16 %v1465
        %v1505 = vunpack.c.l.b16 %v1466
        %v1506 = vunpack.c.l.b16 %v1467
        %v1507 = vunpack.c.l.b16 %v1468
        %v1508 = vunpack.c.l.b16 %v1469
        %v1509 = vunpack.c.l.b16 %v1470
        %v1510 = vunpack.c.l.b16 %v1471
        %v1511 = vunpack.c.l.b16 %v1472
        %v1512 = vunpack.c.l.b16 %v1473
        %v1513 = vpack.c.b16 %v1498, %v1497
        %v1514 = vpack.c.b16 %v1500, %v1499
        %v1515 = vpack.c.b16 %v1502, %v1501
        %v1516 = vpack.c.b16 %v1504, %v1503
        %v1517 = vpack.c.b16 %v1506, %v1505
        %v1518 = vpack.c.b16 %v1508, %v1507
        %v1519 = vpack.c.b16 %v1510, %v1509
        %v1520 = vpack.c.b16 %v1512, %v1511
        %1529 = vmatprep.subr.bf16.mxu0 0
        %1530 = vmatpush1.bf16.msra.mxu0 %v1513
        %1531 = vmatprep.subr.bf16.mxu0 0
        %1532 = vmatpush1.bf16.msra.mxu0 %v1514
        %1533 = vmatprep.subr.bf16.mxu0 0
        %1534 = vmatpush1.bf16.msra.mxu0 %v1515
        %1535 = vmatprep.subr.bf16.mxu0 0
        %1536 = vmatpush1.bf16.msra.mxu0 %v1516
        %1537 = vmatprep.subr.bf16.mxu0 0
        %1538 = vmatpush1.bf16.msra.mxu0 %v1517
        %1539 = vmatprep.subr.bf16.mxu0 0
        %1540 = vmatpush1.bf16.msra.mxu0 %v1518
        %1541 = vmatprep.subr.bf16.mxu0 0
        %1542 = vmatpush1.bf16.msra.mxu0 %v1519
        %1543 = vmatprep.subr.bf16.mxu0 0
        %1544 = vmatpush1.bf16.msra.mxu0 %v1520
        %1545 = vmatprep.subr.bf16.mxu0 0
        %1546 = vmatpush1.bf16.msra.mxu0 0
        %1547 = vmatprep.subr.bf16.mxu0 0
        %1548 = vmatpush1.bf16.msra.mxu0 0
        %1549 = vmatprep.subr.bf16.mxu0 0
        %1550 = vmatpush1.bf16.msra.mxu0 0
        %1551 = vmatprep.subr.bf16.mxu0 0
        %1552 = vmatpush1.bf16.msra.mxu0 0
        %1553 = vmatprep.subr.bf16.mxu0 0
        %1554 = vmatpush1.bf16.msra.mxu0 0
        %1555 = vmatprep.subr.bf16.mxu0 0
        %1556 = vmatpush1.bf16.msra.mxu0 0
        %1557 = vmatprep.subr.bf16.mxu0 0
        %1558 = vmatpush1.bf16.msra.mxu0 0
        %1559 = vmatprep.subr.bf16.mxu0 0
        %1560 = vmatpush1.bf16.msra.mxu0 0
        %1561 = vmatprep.mubr.bf16.mxu0 0
        %1562 = vmatmul.mubr.bf16.gmra.mrb[0].mxu0 %v1457
        %v1563 = vpop.f32.mrb[0].mxu0
        %v1564 = vadd.f32 %v1479, %v1563
        %v1565 = vpop.f32.mrb[0].mxu0
        %v1566 = vpop.f32.mrb[0].mxu0
        %v1567 = vadd.f32 %v1479, %v1566
        %v1568 = vpop.f32.mrb[0].mxu0
        %1569 = vdwg.mxu0
        %v1570 = vadd.f32 %v1564, %v618
        %v1571 = vadd.f32 %v1567, %v619
        %v1572 = vld [vmem:[#allocation14] sm:$0x1]
        %v1573 = vld [vmem:[#allocation16] sm:$0x1]
        %1574 = vadd.xlane.f32.xlu0 %v1570
        %v1575 = vpop.xlane.xlu0 %1574
        %1576 = vadd.xlane.f32.xlu0 %v1571
        %v1577 = vpop.xlane.xlu0 %1576
        %v1578 = vmul.f32 %v1575, %v626
        %v1579 = vmul.f32 %v1577, %v626
        %v1580 = vsub.f32 %v1570, %v1578
        %v1581 = vsub.f32 %v1571, %v1579
        %v1582 = vmul.f32 %v1580, %v1580
        %v1583 = vmul.f32 %v1581, %v1581
        %1584 = vadd.xlane.f32.xlu0 %v1582
        %v1585 = vpop.xlane.xlu0 %1584
        %1586 = vadd.xlane.f32.xlu0 %v1583
        %v1587 = vpop.xlane.xlu0 %1586
        %v1588 = vmul.f32 %v1585, %v626
        %v1589 = vmul.f32 %v1587, %v626
        %v1590 = vadd.f32 %v1588, 1e-05
        %v1591 = vadd.f32 %v1589, 1e-05
        %v1592 = vrsqrt.pop %v1590
        %v1593 = vrsqrt.pop %v1591
        %v1594 = vmul.f32 %v1580, %v1592
        %v1595 = vmul.f32 %v1581, %v1593
        %v1597 = vlaneseq
        %v1598 = vshrl.u32 %v1597, 7
        %v1599 = vsub.s32 0, %v1598
        %v1600 = vrot.slane %v1572, %v1599
        %v1602 = vmul.f32 %v1594, %v1600
        %v1603 = vmul.f32 %v1595, %v1600
        %v1605 = vlaneseq
        %v1606 = vshrl.u32 %v1605, 7
        %v1607 = vsub.s32 0, %v1606
        %v1608 = vrot.slane %v1573, %v1607
        %v1610 = vadd.f32 %v1602, %v1608
        %v1611 = vadd.f32 %v1603, %v1608
        %v1612 = vpack.c.bf16 %v1611, %v1610
        %v1613 = vld [vmem:[#allocation17] sm:$0xff]
        %v1614 = vld [vmem:[#allocation17 + $0x8] sm:$0xff]
        %v1615 = vld [vmem:[#allocation17 + $0x10] sm:$0xff]
        %v1616 = vld [vmem:[#allocation17 + $0x18] sm:$0xff]
        %v1617 = vld [vmem:[#allocation17 + $0x20] sm:$0xff]
        %v1618 = vld [vmem:[#allocation17 + $0x28] sm:$0xff]
        %v1619 = vld [vmem:[#allocation17 + $0x30] sm:$0xff]
        %v1620 = vld [vmem:[#allocation17 + $0x38] sm:$0xff]
        %v1621 = vld [vmem:[#allocation17 + $0x40] sm:$0xff]
        %v1622 = vld [vmem:[#allocation17 + $0x48] sm:$0xff]
        %v1623 = vld [vmem:[#allocation17 + $0x50] sm:$0xff]
        %v1624 = vld [vmem:[#allocation17 + $0x58] sm:$0xff]
        %v1625 = vld [vmem:[#allocation17 + $0x60] sm:$0xff]
        %v1626 = vld [vmem:[#allocation17 + $0x68] sm:$0xff]
        %v1627 = vld [vmem:[#allocation17 + $0x70] sm:$0xff]
        %v1628 = vld [vmem:[#allocation17 + $0x78] sm:$0xff]
        %v1629 = vld [vmem:[#allocation17 + $0x80] sm:$0xff]
        %v1630 = vld [vmem:[#allocation17 + $0x88] sm:$0xff]
        %v1631 = vld [vmem:[#allocation17 + $0x90] sm:$0xff]
        %v1632 = vld [vmem:[#allocation17 + $0x98] sm:$0xff]
        %v1633 = vld [vmem:[#allocation17 + $0xa0] sm:$0xff]
        %v1634 = vld [vmem:[#allocation17 + $0xa8] sm:$0xff]
        %v1635 = vld [vmem:[#allocation17 + $0xb0] sm:$0xff]
        %v1636 = vld [vmem:[#allocation17 + $0xb8] sm:$0xff]
        %v1637 = vld [vmem:[#allocation17 + $0xc0] sm:$0xff]
        %v1638 = vld [vmem:[#allocation17 + $0xc8] sm:$0xff]
        %v1639 = vld [vmem:[#allocation17 + $0xd0] sm:$0xff]
        %v1640 = vld [vmem:[#allocation17 + $0xd8] sm:$0xff]
        %v1641 = vld [vmem:[#allocation17 + $0xe0] sm:$0xff]
        %v1642 = vld [vmem:[#allocation17 + $0xe8] sm:$0xff]
        %v1643 = vld [vmem:[#allocation17 + $0xf0] sm:$0xff]
        %v1644 = vld [vmem:[#allocation17 + $0xf8] sm:$0xff]
        %v1645 = vld [vmem:[#allocation19] sm:$0xf]
        %v1647 = vlaneseq
        %v1648 = vshrl.u32 %v1647, 7
        %v1649 = vsub.s32 0, %v1648
        %v1650 = vrot.slane %v1645, %v1649
        %v1651 = vlaneseq
        %v1652 = vshrl.u32 %v1651, 7
        %v1653 = vsub.s32 1, %v1652
        %v1654 = vrot.slane %v1645, %v1653
        %v1655 = vlaneseq
        %v1656 = vshrl.u32 %v1655, 7
        %v1657 = vsub.s32 2, %v1656
        %v1658 = vrot.slane %v1645, %v1657
        %v1659 = vlaneseq
        %v1660 = vshrl.u32 %v1659, 7
        %v1661 = vsub.s32 3, %v1660
        %v1662 = vrot.slane %v1645, %v1661
        %v1699 = vunpack.c.l.b16 %v1613
        %v1700 = vunpack.c.h.b16 %v1613
        %v1701 = vunpack.c.l.b16 %v1614
        %v1702 = vunpack.c.h.b16 %v1614
        %v1703 = vunpack.c.l.b16 %v1615
        %v1704 = vunpack.c.h.b16 %v1615
        %v1705 = vunpack.c.l.b16 %v1616
        %v1706 = vunpack.c.h.b16 %v1616
        %v1707 = vunpack.c.l.b16 %v1617
        %v1708 = vunpack.c.h.b16 %v1617
        %v1709 = vunpack.c.l.b16 %v1618
        %v1710 = vunpack.c.h.b16 %v1618
        %v1711 = vunpack.c.l.b16 %v1619
        %v1712 = vunpack.c.h.b16 %v1619
        %v1713 = vunpack.c.l.b16 %v1620
        %v1714 = vunpack.c.h.b16 %v1620
        %v1715 = vunpack.c.l.b16 %v1621
        %v1716 = vunpack.c.h.b16 %v1621
        %v1717 = vunpack.c.l.b16 %v1622
        %v1718 = vunpack.c.h.b16 %v1622
        %v1719 = vunpack.c.l.b16 %v1623
        %v1720 = vunpack.c.h.b16 %v1623
        %v1721 = vunpack.c.l.b16 %v1624
        %v1722 = vunpack.c.h.b16 %v1624
        %v1723 = vunpack.c.l.b16 %v1625
        %v1724 = vunpack.c.h.b16 %v1625
        %v1725 = vunpack.c.l.b16 %v1626
        %v1726 = vunpack.c.h.b16 %v1626
        %v1727 = vunpack.c.l.b16 %v1627
        %v1728 = vunpack.c.h.b16 %v1627
        %v1729 = vunpack.c.l.b16 %v1628
        %v1730 = vunpack.c.h.b16 %v1628
        %v1731 = vunpack.c.l.b16 %v1629
        %v1732 = vunpack.c.h.b16 %v1629
        %v1733 = vunpack.c.l.b16 %v1630
        %v1734 = vunpack.c.h.b16 %v1630
        %v1735 = vunpack.c.l.b16 %v1631
        %v1736 = vunpack.c.h.b16 %v1631
        %v1737 = vunpack.c.l.b16 %v1632
        %v1738 = vunpack.c.h.b16 %v1632
        %v1739 = vunpack.c.l.b16 %v1633
        %v1740 = vunpack.c.h.b16 %v1633
        %v1741 = vunpack.c.l.b16 %v1634
        %v1742 = vunpack.c.h.b16 %v1634
        %v1743 = vunpack.c.l.b16 %v1635
        %v1744 = vunpack.c.h.b16 %v1635
        %v1745 = vunpack.c.l.b16 %v1636
        %v1746 = vunpack.c.h.b16 %v1636
        %v1747 = vunpack.c.l.b16 %v1637
        %v1748 = vunpack.c.h.b16 %v1637
        %v1749 = vunpack.c.l.b16 %v1638
        %v1750 = vunpack.c.h.b16 %v1638
        %v1751 = vunpack.c.l.b16 %v1639
        %v1752 = vunpack.c.h.b16 %v1639
        %v1753 = vunpack.c.l.b16 %v1640
        %v1754 = vunpack.c.h.b16 %v1640
        %v1755 = vunpack.c.l.b16 %v1641
        %v1756 = vunpack.c.h.b16 %v1641
        %v1757 = vunpack.c.l.b16 %v1642
        %v1758 = vunpack.c.h.b16 %v1642
        %v1759 = vunpack.c.l.b16 %v1643
        %v1760 = vunpack.c.h.b16 %v1643
        %v1761 = vunpack.c.l.b16 %v1644
        %v1762 = vunpack.c.h.b16 %v1644
        %v1763 = vpack.c.b16 %v1703, %v1699
        %v1764 = vpack.c.b16 %v1704, %v1700
        %v1765 = vpack.c.b16 %v1705, %v1701
        %v1766 = vpack.c.b16 %v1706, %v1702
        %v1767 = vpack.c.b16 %v1711, %v1707
        %v1768 = vpack.c.b16 %v1712, %v1708
        %v1769 = vpack.c.b16 %v1713, %v1709
        %v1770 = vpack.c.b16 %v1714, %v1710
        %v1771 = vpack.c.b16 %v1719, %v1715
        %v1772 = vpack.c.b16 %v1720, %v1716
        %v1773 = vpack.c.b16 %v1721, %v1717
        %v1774 = vpack.c.b16 %v1722, %v1718
        %v1775 = vpack.c.b16 %v1727, %v1723
        %v1776 = vpack.c.b16 %v1728, %v1724
        %v1777 = vpack.c.b16 %v1729, %v1725
        %v1778 = vpack.c.b16 %v1730, %v1726
        %v1779 = vpack.c.b16 %v1735, %v1731
        %v1780 = vpack.c.b16 %v1736, %v1732
        %v1781 = vpack.c.b16 %v1737, %v1733
        %v1782 = vpack.c.b16 %v1738, %v1734
        %v1783 = vpack.c.b16 %v1743, %v1739
        %v1784 = vpack.c.b16 %v1744, %v1740
        %v1785 = vpack.c.b16 %v1745, %v1741
        %v1786 = vpack.c.b16 %v1746, %v1742
        %v1787 = vpack.c.b16 %v1751, %v1747
        %v1788 = vpack.c.b16 %v1752, %v1748
        %v1789 = vpack.c.b16 %v1753, %v1749
        %v1790 = vpack.c.b16 %v1754, %v1750
        %v1791 = vpack.c.b16 %v1759, %v1755
        %v1792 = vpack.c.b16 %v1760, %v1756
        %v1793 = vpack.c.b16 %v1761, %v1757
        %v1794 = vpack.c.b16 %v1762, %v1758
        %1827 = vmatprep.subr.bf16.mxu0 %v1764
        %1828 = vmatpush1.bf16.msra.mxu0 %v1763
        %1829 = vmatprep.subr.bf16.mxu0 %v1768
        %1830 = vmatpush1.bf16.msra.mxu0 %v1767
        %1831 = vmatprep.subr.bf16.mxu0 %v1772
        %1832 = vmatpush1.bf16.msra.mxu0 %v1771
        %1833 = vmatprep.subr.bf16.mxu0 %v1776
        %1834 = vmatpush1.bf16.msra.mxu0 %v1775
        %1835 = vmatprep.subr.bf16.mxu0 %v1780
        %1836 = vmatpush1.bf16.msra.mxu0 %v1779
        %1837 = vmatprep.subr.bf16.mxu0 %v1784
        %1838 = vmatpush1.bf16.msra.mxu0 %v1783
        %1839 = vmatprep.subr.bf16.mxu0 %v1788
        %1840 = vmatpush1.bf16.msra.mxu0 %v1787
        %1841 = vmatprep.subr.bf16.mxu0 %v1792
        %1842 = vmatpush1.bf16.msra.mxu0 %v1791
        %1843 = vmatprep.subr.bf16.mxu0 0
        %1844 = vmatpush1.bf16.msra.mxu0 0
        %1845 = vmatprep.subr.bf16.mxu0 0
        %1846 = vmatpush1.bf16.msra.mxu0 0
        %1847 = vmatprep.subr.bf16.mxu0 0
        %1848 = vmatpush1.bf16.msra.mxu0 0
        %1849 = vmatprep.subr.bf16.mxu0 0
        %1850 = vmatpush1.bf16.msra.mxu0 0
        %1851 = vmatprep.subr.bf16.mxu0 0
        %1852 = vmatpush1.bf16.msra.mxu0 0
        %1853 = vmatprep.subr.bf16.mxu0 0
        %1854 = vmatpush1.bf16.msra.mxu0 0
        %1855 = vmatprep.subr.bf16.mxu0 0
        %1856 = vmatpush1.bf16.msra.mxu0 0
        %1857 = vmatprep.subr.bf16.mxu0 0
        %1858 = vmatpush1.bf16.msra.mxu0 0
        %1859 = vmatprep.mubr.bf16.mxu0 0
        %1860 = vmatmul.mubr.bf16.gmra.mrb[0].mxu0 %v1612
        %v1861 = vpop.f32.mrb[0].mxu0
        %v1862 = vadd.f32 %v1650, %v1861
        %v1863 = vpop.f32.mrb[0].mxu0
        %v1864 = vadd.f32 %v1654, %v1863
        %v1865 = vpop.f32.mrb[0].mxu0
        %v1866 = vadd.f32 %v1650, %v1865
        %v1867 = vpop.f32.mrb[0].mxu0
        %v1868 = vadd.f32 %v1654, %v1867
        %1869 = vdwg.mxu0
        %1870 = vmatprep.subr.bf16.mxu0 %v1766
        %1871 = vmatpush1.bf16.msra.mxu0 %v1765
        %1872 = vmatprep.subr.bf16.mxu0 %v1770
        %1873 = vmatpush1.bf16.msra.mxu0 %v1769
        %1874 = vmatprep.subr.bf16.mxu0 %v1774
        %1875 = vmatpush1.bf16.msra.mxu0 %v1773
        %1876 = vmatprep.subr.bf16.mxu0 %v1778
        %1877 = vmatpush1.bf16.msra.mxu0 %v1777
        %1878 = vmatprep.subr.bf16.mxu0 %v1782
        %1879 = vmatpush1.bf16.msra.mxu0 %v1781
        %1880 = vmatprep.subr.bf16.mxu0 %v1786
        %1881 = vmatpush1.bf16.msra.mxu0 %v1785
        %1882 = vmatprep.subr.bf16.mxu0 %v1790
        %1883 = vmatpush1.bf16.msra.mxu0 %v1789
        %1884 = vmatprep.subr.bf16.mxu0 %v1794
        %1885 = vmatpush1.bf16.msra.mxu0 %v1793
        %1886 = vmatprep.subr.bf16.mxu0 0
        %1887 = vmatpush1.bf16.msra.mxu0 0
        %1888 = vmatprep.subr.bf16.mxu0 0
        %1889 = vmatpush1.bf16.msra.mxu0 0
        %1890 = vmatprep.subr.bf16.mxu0 0
        %1891 = vmatpush1.bf16.msra.mxu0 0
        %1892 = vmatprep.subr.bf16.mxu0 0
        %1893 = vmatpush1.bf16.msra.mxu0 0
        %1894 = vmatprep.subr.bf16.mxu0 0
        %1895 = vmatpush1.bf16.msra.mxu0 0
        %1896 = vmatprep.subr.bf16.mxu0 0
        %1897 = vmatpush1.bf16.msra.mxu0 0
        %1898 = vmatprep.subr.bf16.mxu0 0
        %1899 = vmatpush1.bf16.msra.mxu0 0
        %1900 = vmatprep.subr.bf16.mxu0 0
        %1901 = vmatpush1.bf16.msra.mxu0 0
        %1902 = vmatprep.mubr.bf16.mxu0 0
        %1903 = vmatmul.mubr.bf16.gmra.mrb[0].mxu0 %v1612
        %v1904 = vpop.f32.mrb[0].mxu0
        %v1905 = vadd.f32 %v1658, %v1904
        %v1906 = vpop.f32.mrb[0].mxu0
        %v1907 = vadd.f32 %v1662, %v1906
        %v1908 = vpop.f32.mrb[0].mxu0
        %v1909 = vadd.f32 %v1658, %v1908
        %v1910 = vpop.f32.mrb[0].mxu0
        %v1911 = vadd.f32 %v1662, %v1910
        %1912 = vdwg.mxu0
        %v1913 = vmul.f32 %v1862, 1.702
        %v1914 = vmul.f32 %v1864, 1.702
        %v1915 = vmul.f32 %v1905, 1.702
        %v1916 = vmul.f32 %v1907, 1.702
        %v1917 = vmul.f32 %v1866, 1.702
        %v1918 = vmul.f32 %v1868, 1.702
        %v1919 = vmul.f32 %v1909, 1.702
        %v1920 = vmul.f32 %v1911, 1.702
        %v1921 = vxor.u32 %v1913, 2147483648
        %v1922 = vxor.u32 %v1914, 2147483648
        %v1923 = vxor.u32 %v1915, 2147483648
        %v1924 = vxor.u32 %v1916, 2147483648
        %v1925 = vxor.u32 %v1917, 2147483648
        %v1926 = vxor.u32 %v1918, 2147483648
        %v1927 = vxor.u32 %v1919, 2147483648
        %v1928 = vxor.u32 %v1920, 2147483648
        %v1929 = vmul.f32 %v1921, 1.442695
        %v1930 = vpow.pop %v1929
        %v1931 = vmul.f32 %v1922, 1.442695
        %v1932 = vpow.pop %v1931
        %v1933 = vmul.f32 %v1923, 1.442695
        %v1934 = vpow.pop %v1933
        %v1935 = vmul.f32 %v1924, 1.442695
        %v1936 = vpow.pop %v1935
        %v1937 = vmul.f32 %v1925, 1.442695
        %v1938 = vpow.pop %v1937
        %v1939 = vmul.f32 %v1926, 1.442695
        %v1940 = vpow.pop %v1939
        %v1941 = vmul.f32 %v1927, 1.442695
        %v1942 = vpow.pop %v1941
        %v1943 = vmul.f32 %v1928, 1.442695
        %v1944 = vpow.pop %v1943
        %v1945 = vadd.f32 %v1930, 1.0
        %v1946 = vadd.f32 %v1932, 1.0
        %v1947 = vadd.f32 %v1934, 1.0
        %v1948 = vadd.f32 %v1936, 1.0
        %v1949 = vadd.f32 %v1938, 1.0
        %v1950 = vadd.f32 %v1940, 1.0
        %v1951 = vadd.f32 %v1942, 1.0
        %v1952 = vadd.f32 %v1944, 1.0
        %v1953 = vrcp.pop %v1945
        %v1954 = vmul.f32 1.0, %v1953
        %v1955 = vrcp.pop %v1946
        %v1956 = vmul.f32 1.0, %v1955
        %v1957 = vrcp.pop %v1947
        %v1958 = vmul.f32 1.0, %v1957
        %v1959 = vrcp.pop %v1948
        %v1960 = vmul.f32 1.0, %v1959
        %v1961 = vrcp.pop %v1949
        %v1962 = vmul.f32 1.0, %v1961
        %v1963 = vrcp.pop %v1950
        %v1964 = vmul.f32 1.0, %v1963
        %v1965 = vrcp.pop %v1951
        %v1966 = vmul.f32 1.0, %v1965
        %v1967 = vrcp.pop %v1952
        %v1968 = vmul.f32 1.0, %v1967
        %v1969 = vmul.f32 %v1862, %v1954
        %v1970 = vmul.f32 %v1864, %v1956
        %v1971 = vmul.f32 %v1905, %v1958
        %v1972 = vmul.f32 %v1907, %v1960
        %v1973 = vmul.f32 %v1866, %v1962
        %v1974 = vmul.f32 %v1868, %v1964
        %v1975 = vmul.f32 %v1909, %v1966
        %v1976 = vmul.f32 %v1911, %v1968
        %v1977 = vpack.c.bf16 %v1973, %v1969
        %v1978 = vpack.c.bf16 %v1974, %v1970
        %v1979 = vpack.c.bf16 %v1975, %v1971
        %v1980 = vpack.c.bf16 %v1976, %v1972
        %v1981 = vld [vmem:[#allocation20] sm:$0xf]
        %v1982 = vld [vmem:[#allocation20 + $0x4] sm:$0xf]
        %v1983 = vld [vmem:[#allocation20 + $0x8] sm:$0xf]
        %v1984 = vld [vmem:[#allocation20 + $0xc] sm:$0xf]
        %v1985 = vld [vmem:[#allocation20 + $0x10] sm:$0xf]
        %v1986 = vld [vmem:[#allocation20 + $0x14] sm:$0xf]
        %v1987 = vld [vmem:[#allocation20 + $0x18] sm:$0xf]
        %v1988 = vld [vmem:[#allocation20 + $0x1c] sm:$0xf]
        %v1989 = vld [vmem:[#allocation20 + $0x20] sm:$0xf]
        %v1990 = vld [vmem:[#allocation20 + $0x24] sm:$0xf]
        %v1991 = vld [vmem:[#allocation20 + $0x28] sm:$0xf]
        %v1992 = vld [vmem:[#allocation20 + $0x2c] sm:$0xf]
        %v1993 = vld [vmem:[#allocation20 + $0x30] sm:$0xf]
        %v1994 = vld [vmem:[#allocation20 + $0x34] sm:$0xf]
        %v1995 = vld [vmem:[#allocation20 + $0x38] sm:$0xf]
        %v1996 = vld [vmem:[#allocation20 + $0x3c] sm:$0xf]
        %v1997 = vld [vmem:[#allocation20 + $0x40] sm:$0xf]
        %v1998 = vld [vmem:[#allocation20 + $0x44] sm:$0xf]
        %v1999 = vld [vmem:[#allocation20 + $0x48] sm:$0xf]
        %v2000 = vld [vmem:[#allocation20 + $0x4c] sm:$0xf]
        %v2001 = vld [vmem:[#allocation20 + $0x50] sm:$0xf]
        %v2002 = vld [vmem:[#allocation20 + $0x54] sm:$0xf]
        %v2003 = vld [vmem:[#allocation20 + $0x58] sm:$0xf]
        %v2004 = vld [vmem:[#allocation20 + $0x5c] sm:$0xf]
        %v2005 = vld [vmem:[#allocation20 + $0x60] sm:$0xf]
        %v2006 = vld [vmem:[#allocation20 + $0x64] sm:$0xf]
        %v2007 = vld [vmem:[#allocation20 + $0x68] sm:$0xf]
        %v2008 = vld [vmem:[#allocation20 + $0x6c] sm:$0xf]
        %v2009 = vld [vmem:[#allocation20 + $0x70] sm:$0xf]
        %v2010 = vld [vmem:[#allocation20 + $0x74] sm:$0xf]
        %v2011 = vld [vmem:[#allocation20 + $0x78] sm:$0xf]
        %v2012 = vld [vmem:[#allocation20 + $0x7c] sm:$0xf]
        %v2013 = vld [vmem:[#allocation20 + $0x80] sm:$0xf]
        %v2014 = vld [vmem:[#allocation20 + $0x84] sm:$0xf]
        %v2015 = vld [vmem:[#allocation20 + $0x88] sm:$0xf]
        %v2016 = vld [vmem:[#allocation20 + $0x8c] sm:$0xf]
        %v2017 = vld [vmem:[#allocation20 + $0x90] sm:$0xf]
        %v2018 = vld [vmem:[#allocation20 + $0x94] sm:$0xf]
        %v2019 = vld [vmem:[#allocation20 + $0x98] sm:$0xf]
        %v2020 = vld [vmem:[#allocation20 + $0x9c] sm:$0xf]
        %v2021 = vld [vmem:[#allocation20 + $0xa0] sm:$0xf]
        %v2022 = vld [vmem:[#allocation20 + $0xa4] sm:$0xf]
        %v2023 = vld [vmem:[#allocation20 + $0xa8] sm:$0xf]
        %v2024 = vld [vmem:[#allocation20 + $0xac] sm:$0xf]
        %v2025 = vld [vmem:[#allocation20 + $0xb0] sm:$0xf]
        %v2026 = vld [vmem:[#allocation20 + $0xb4] sm:$0xf]
        %v2027 = vld [vmem:[#allocation20 + $0xb8] sm:$0xf]
        %v2028 = vld [vmem:[#allocation20 + $0xbc] sm:$0xf]
        %v2029 = vld [vmem:[#allocation20 + $0xc0] sm:$0xf]
        %v2030 = vld [vmem:[#allocation20 + $0xc4] sm:$0xf]
        %v2031 = vld [vmem:[#allocation20 + $0xc8] sm:$0xf]
        %v2032 = vld [vmem:[#allocation20 + $0xcc] sm:$0xf]
        %v2033 = vld [vmem:[#allocation20 + $0xd0] sm:$0xf]
        %v2034 = vld [vmem:[#allocation20 + $0xd4] sm:$0xf]
        %v2035 = vld [vmem:[#allocation20 + $0xd8] sm:$0xf]
        %v2036 = vld [vmem:[#allocation20 + $0xdc] sm:$0xf]
        %v2037 = vld [vmem:[#allocation20 + $0xe0] sm:$0xf]
        %v2038 = vld [vmem:[#allocation20 + $0xe4] sm:$0xf]
        %v2039 = vld [vmem:[#allocation20 + $0xe8] sm:$0xf]
        %v2040 = vld [vmem:[#allocation20 + $0xec] sm:$0xf]
        %v2041 = vld [vmem:[#allocation20 + $0xf0] sm:$0xf]
        %v2042 = vld [vmem:[#allocation20 + $0xf4] sm:$0xf]
        %v2043 = vld [vmem:[#allocation20 + $0xf8] sm:$0xf]
        %v2044 = vld [vmem:[#allocation20 + $0xfc] sm:$0xf]
        %v2045 = vld [vmem:[#allocation22] sm:$0x1]
        %v2047 = vlaneseq
        %v2048 = vshrl.u32 %v2047, 7
        %v2049 = vsub.s32 0, %v2048
        %v2050 = vrot.slane %v2045, %v2049
        %v2116 = vunpack.c.l.b16 %v1981
        %v2117 = vunpack.c.l.b16 %v1982
        %v2118 = vunpack.c.l.b16 %v1983
        %v2119 = vunpack.c.l.b16 %v1984
        %v2120 = vunpack.c.l.b16 %v1985
        %v2121 = vunpack.c.l.b16 %v1986
        %v2122 = vunpack.c.l.b16 %v1987
        %v2123 = vunpack.c.l.b16 %v1988
        %v2124 = vunpack.c.l.b16 %v1989
        %v2125 = vunpack.c.l.b16 %v1990
        %v2126 = vunpack.c.l.b16 %v1991
        %v2127 = vunpack.c.l.b16 %v1992
        %v2128 = vunpack.c.l.b16 %v1993
        %v2129 = vunpack.c.l.b16 %v1994
        %v2130 = vunpack.c.l.b16 %v1995
        %v2131 = vunpack.c.l.b16 %v1996
        %v2132 = vunpack.c.l.b16 %v1997
        %v2133 = vunpack.c.l.b16 %v1998
        %v2134 = vunpack.c.l.b16 %v1999
        %v2135 = vunpack.c.l.b16 %v2000
        %v2136 = vunpack.c.l.b16 %v2001
        %v2137 = vunpack.c.l.b16 %v2002
        %v2138 = vunpack.c.l.b16 %v2003
        %v2139 = vunpack.c.l.b16 %v2004
        %v2140 = vunpack.c.l.b16 %v2005
        %v2141 = vunpack.c.l.b16 %v2006
        %v2142 = vunpack.c.l.b16 %v2007
        %v2143 = vunpack.c.l.b16 %v2008
        %v2144 = vunpack.c.l.b16 %v2009
        %v2145 = vunpack.c.l.b16 %v2010
        %v2146 = vunpack.c.l.b16 %v2011
        %v2147 = vunpack.c.l.b16 %v2012
        %v2148 = vunpack.c.l.b16 %v2013
        %v2149 = vunpack.c.l.b16 %v2014
        %v2150 = vunpack.c.l.b16 %v2015
        %v2151 = vunpack.c.l.b16 %v2016
        %v2152 = vunpack.c.l.b16 %v2017
        %v2153 = vunpack.c.l.b16 %v2018
        %v2154 = vunpack.c.l.b16 %v2019
        %v2155 = vunpack.c.l.b16 %v2020
        %v2156 = vunpack.c.l.b16 %v2021
        %v2157 = vunpack.c.l.b16 %v2022
        %v2158 = vunpack.c.l.b16 %v2023
        %v2159 = vunpack.c.l.b16 %v2024
        %v2160 = vunpack.c.l.b16 %v2025
        %v2161 = vunpack.c.l.b16 %v2026
        %v2162 = vunpack.c.l.b16 %v2027
        %v2163 = vunpack.c.l.b16 %v2028
        %v2164 = vunpack.c.l.b16 %v2029
        %v2165 = vunpack.c.l.b16 %v2030
        %v2166 = vunpack.c.l.b16 %v2031
        %v2167 = vunpack.c.l.b16 %v2032
        %v2168 = vunpack.c.l.b16 %v2033
        %v2169 = vunpack.c.l.b16 %v2034
        %v2170 = vunpack.c.l.b16 %v2035
        %v2171 = vunpack.c.l.b16 %v2036
        %v2172 = vunpack.c.l.b16 %v2037
        %v2173 = vunpack.c.l.b16 %v2038
        %v2174 = vunpack.c.l.b16 %v2039
        %v2175 = vunpack.c.l.b16 %v2040
        %v2176 = vunpack.c.l.b16 %v2041
        %v2177 = vunpack.c.l.b16 %v2042
        %v2178 = vunpack.c.l.b16 %v2043
        %v2179 = vunpack.c.l.b16 %v2044
        %v2180 = vpack.c.b16 %v2117, %v2116
        %v2181 = vpack.c.b16 %v2119, %v2118
        %v2182 = vpack.c.b16 %v2121, %v2120
        %v2183 = vpack.c.b16 %v2123, %v2122
        %v2184 = vpack.c.b16 %v2125, %v2124
        %v2185 = vpack.c.b16 %v2127, %v2126
        %v2186 = vpack.c.b16 %v2129, %v2128
        %v2187 = vpack.c.b16 %v2131, %v2130
        %v2188 = vpack.c.b16 %v2133, %v2132
        %v2189 = vpack.c.b16 %v2135, %v2134
        %v2190 = vpack.c.b16 %v2137, %v2136
        %v2191 = vpack.c.b16 %v2139, %v2138
        %v2192 = vpack.c.b16 %v2141, %v2140
        %v2193 = vpack.c.b16 %v2143, %v2142
        %v2194 = vpack.c.b16 %v2145, %v2144
        %v2195 = vpack.c.b16 %v2147, %v2146
        %v2196 = vpack.c.b16 %v2149, %v2148
        %v2197 = vpack.c.b16 %v2151, %v2150
        %v2198 = vpack.c.b16 %v2153, %v2152
        %v2199 = vpack.c.b16 %v2155, %v2154
        %v2200 = vpack.c.b16 %v2157, %v2156
        %v2201 = vpack.c.b16 %v2159, %v2158
        %v2202 = vpack.c.b16 %v2161, %v2160
        %v2203 = vpack.c.b16 %v2163, %v2162
        %v2204 = vpack.c.b16 %v2165, %v2164
        %v2205 = vpack.c.b16 %v2167, %v2166
        %v2206 = vpack.c.b16 %v2169, %v2168
        %v2207 = vpack.c.b16 %v2171, %v2170
        %v2208 = vpack.c.b16 %v2173, %v2172
        %v2209 = vpack.c.b16 %v2175, %v2174
        %v2210 = vpack.c.b16 %v2177, %v2176
        %v2211 = vpack.c.b16 %v2179, %v2178
        %2244 = vmatprep.subr.bf16.mxu0 0
        %2245 = vmatpush1.bf16.msra.mxu0 %v2180
        %2246 = vmatprep.subr.bf16.mxu0 0
        %2247 = vmatpush1.bf16.msra.mxu0 %v2181
        %2248 = vmatprep.subr.bf16.mxu0 0
        %2249 = vmatpush1.bf16.msra.mxu0 %v2182
        %2250 = vmatprep.subr.bf16.mxu0 0
        %2251 = vmatpush1.bf16.msra.mxu0 %v2183
        %2252 = vmatprep.subr.bf16.mxu0 0
        %2253 = vmatpush1.bf16.msra.mxu0 %v2184
        %2254 = vmatprep.subr.bf16.mxu0 0
        %2255 = vmatpush1.bf16.msra.mxu0 %v2185
        %2256 = vmatprep.subr.bf16.mxu0 0
        %2257 = vmatpush1.bf16.msra.mxu0 %v2186
        %2258 = vmatprep.subr.bf16.mxu0 0
        %2259 = vmatpush1.bf16.msra.mxu0 %v2187
        %2260 = vmatprep.subr.bf16.mxu0 0
        %2261 = vmatpush1.bf16.msra.mxu0 %v2188
        %2262 = vmatprep.subr.bf16.mxu0 0
        %2263 = vmatpush1.bf16.msra.mxu0 %v2189
        %2264 = vmatprep.subr.bf16.mxu0 0
        %2265 = vmatpush1.bf16.msra.mxu0 %v2190
        %2266 = vmatprep.subr.bf16.mxu0 0
        %2267 = vmatpush1.bf16.msra.mxu0 %v2191
        %2268 = vmatprep.subr.bf16.mxu0 0
        %2269 = vmatpush1.bf16.msra.mxu0 %v2192
        %2270 = vmatprep.subr.bf16.mxu0 0
        %2271 = vmatpush1.bf16.msra.mxu0 %v2193
        %2272 = vmatprep.subr.bf16.mxu0 0
        %2273 = vmatpush1.bf16.msra.mxu0 %v2194
        %2274 = vmatprep.subr.bf16.mxu0 0
        %2275 = vmatpush1.bf16.msra.mxu0 %v2195
        %2276 = vmatprep.mubr.bf16.mxu0 %v1978
        %2277 = vmatmul.mubr.bf16.gmra.mrb[0].mxu0 %v1977
        %v2278 = vpop.f32.mrb[0].mxu0
        %v2279 = vadd.f32 %v2050, %v2278
        %v2280 = vpop.f32.mrb[0].mxu0
        %v2281 = vpop.f32.mrb[0].mxu0
        %v2282 = vadd.f32 %v2050, %v2281
        %v2283 = vpop.f32.mrb[0].mxu0
        %2284 = vdwg.mxu0
        %2285 = vmatprep.subr.bf16.mxu0 0
        %2286 = vmatpush1.bf16.msra.mxu0 %v2196
        %2287 = vmatprep.subr.bf16.mxu0 0
        %2288 = vmatpush1.bf16.msra.mxu0 %v2197
        %2289 = vmatprep.subr.bf16.mxu0 0
        %2290 = vmatpush1.bf16.msra.mxu0 %v2198
        %2291 = vmatprep.subr.bf16.mxu0 0
        %2292 = vmatpush1.bf16.msra.mxu0 %v2199
        %2293 = vmatprep.subr.bf16.mxu0 0
        %2294 = vmatpush1.bf16.msra.mxu0 %v2200
        %2295 = vmatprep.subr.bf16.mxu0 0
        %2296 = vmatpush1.bf16.msra.mxu0 %v2201
        %2297 = vmatprep.subr.bf16.mxu0 0
        %2298 = vmatpush1.bf16.msra.mxu0 %v2202
        %2299 = vmatprep.subr.bf16.mxu0 0
        %2300 = vmatpush1.bf16.msra.mxu0 %v2203
        %2301 = vmatprep.subr.bf16.mxu0 0
        %2302 = vmatpush1.bf16.msra.mxu0 %v2204
        %2303 = vmatprep.subr.bf16.mxu0 0
        %2304 = vmatpush1.bf16.msra.mxu0 %v2205
        %2305 = vmatprep.subr.bf16.mxu0 0
        %2306 = vmatpush1.bf16.msra.mxu0 %v2206
        %2307 = vmatprep.subr.bf16.mxu0 0
        %2308 = vmatpush1.bf16.msra.mxu0 %v2207
        %2309 = vmatprep.subr.bf16.mxu0 0
        %2310 = vmatpush1.bf16.msra.mxu0 %v2208
        %2311 = vmatprep.subr.bf16.mxu0 0
        %2312 = vmatpush1.bf16.msra.mxu0 %v2209
        %2313 = vmatprep.subr.bf16.mxu0 0
        %2314 = vmatpush1.bf16.msra.mxu0 %v2210
        %2315 = vmatprep.subr.bf16.mxu0 0
        %2316 = vmatpush1.bf16.msra.mxu0 %v2211
        %2317 = vmatprep.mubr.bf16.mxu0 %v1980
        %2318 = vmatmul.mubr.bf16.gmra.mrb[0].mxu0 %v1979
        %v2319 = vpop.f32.mrb[0].mxu0
        %v2320 = vadd.f32 %v2279, %v2319
        %v2321 = vpop.f32.mrb[0].mxu0
        %v2322 = vpop.f32.mrb[0].mxu0
        %v2323 = vadd.f32 %v2282, %v2322
        %v2324 = vpop.f32.mrb[0].mxu0
        %2325 = vdwg.mxu0
        %v2326 = vadd.f32 %v2320, %v1570
        %v2327 = vadd.f32 %v2323, %v1571
        %2328 = vst [vmem:[%s616] sm:$0xff] %v2326
        %2329 = vst [vmem:[%s616 + $0x8] sm:$0xff] %v2327
        %s2330 = sand.u32 %s322, 1
        %s2331 = scalar_lea.sflag [#allocation4], %s2330
        %s2332 = sand.u32 %s322, 1
        %s2333 = smul.addr %s2332, 16
        %s2334 = scalar_lea.vmem [#allocation23], %s2333
        // Predicated region
        $region125: #{tpu_custom_call.1} parent=71 // pred_check
          %p2335 = pneg %p332
        $region126: #{tpu_custom_call.1} parent=71 // pred_check_branch
          %2337 = sbr.rel (%p2335) target = $region128
        $region127: #{tpu_custom_call.1} parent=71 // pred_region
          %s2339 = ssub.s32 256, 256
          %2340 = vsyncadd %s2331, %s2339
          %s2341 = smul.addr %s36, 2
          %s2342 = smul.addr %s2341, 128
          %s2343 = scalar_lea.hbm %s13, %s2342
          %s2344 = sshll.u32 %s2334, 4
          %s2345 = int_to_ptr.vmem [resolvable:$true] %s2344
          %2350 = dma.vmem_to_hbm [thread:$0]  %s2345, 256, %s2343, %s2331, 128, 128, 8
        $region128: #{tpu_custom_call.1} parent=71 // pred_fallthru
          _
      $region72: #{tpu_custom_call.1} parent=5 // pred_fallthru
        _
      %p2351 = scmp.le.s32.totalorder 2, %s31
      // Predicated region
      $region129: #{tpu_custom_call.1} parent=5 // pred_check
        %p2352 = pneg %p2351
      $region130: #{tpu_custom_call.1} parent=5 // pred_check_branch
        %2354 = sbr.rel (%p2352) target = $region132
      $region131: #{tpu_custom_call.1} parent=5 // pred_region
        %s2355 = ssub.s32 %s31, 2
        // Predicated region
        $region133: #{tpu_custom_call.1} parent=131 // pred_check
          %p2356 = pneg %p338
        $region134: #{tpu_custom_call.1} parent=131 // pred_check_branch
          %2358 = sbr.rel (%p2356) target = $region136
        $region135: #{tpu_custom_call.1} parent=131 // pred_region
          %s2359 = sand.u32 %s323, 1
          %s2360 = scalar_lea.sflag [#allocation4], %s2359
          %s2361 = sand.u32 %s323, 1
          %s2362 = smul.addr %s2361, 16
          %s2363 = scalar_lea.vmem [#allocation23], %s2362
          %2364 = dma.done %s2360, 256
        $region136: #{tpu_custom_call.1} parent=131 // pred_fallthru
          _
      $region132: #{tpu_custom_call.1} parent=5 // pred_fallthru
        _
    $region6: #{tpu_custom_call.1} parent=1 // loop_footer
      %s35 = sadd.s32 1, %s31
    $region7: #{tpu_custom_call.1} parent=1 // loop_footer_branch
      %30 = sbr.rel target = $region3
    $region8: #{tpu_custom_call.1} parent=1 // loop_exit
      _
    %2365 = vsyncpa [#allocation3], 1
    %s2366 = scalar_lea.sflag [#allocation3], 1
    %2367 = vsyncpa %s2366, 1
    %2368 = vsyncpa [#allocation6], 1
    %2369 = vsyncpa [#allocation9], 1
    %2370 = vsyncpa [#allocation12], 1
    %2371 = vsyncpa [#allocation15], 1
    %2372 = vsyncpa [#allocation18], 1
    %2373 = vsyncpa [#allocation21], 1
    %2374 = vsyncpa [#allocation4], 1
    %s2375 = scalar_lea.sflag [#allocation4], 1
    %2376 = vsyncpa %s2375, 1

</llo_original>
